<compile_context>
chip_gen: v7x
topology: tpu7x:2x2x1
jax: 0.10.0
libtpu: 0.0.40
codegen_flags: <defaults>
</compile_context>

<pallas_src>
import functools

import jax
import jax.numpy as jnp
from jax.experimental import pallas as pl
from jax.experimental.pallas import tpu as pltpu

_NEG_BIG = -1e30  # "-inf" stand-in for masked log_softmax columns


# -----------------------------------------------------------------------------
# Pallas kernels
# -----------------------------------------------------------------------------
def _layer1_fused_kernel(a_ref, x_ref, w1_ref, b1_ref, h_ref):
    """H_tile = relu((A_tile @ X) @ W1 + b1)   (used when Fin <= hidden)."""
    ax = jnp.dot(a_ref[...], x_ref[...], preferred_element_type=jnp.float32)
    h = jnp.dot(ax.astype(jnp.bfloat16), w1_ref[...],
                preferred_element_type=jnp.float32)
    h = h + b1_ref[...]
    h_ref[...] = jnp.maximum(h, 0.0).astype(h_ref.dtype)


def _layer1_premixed_kernel(a_ref, xw1_ref, b1_ref, h_ref):
    """H_tile = relu(A_tile @ (X@W1) + b1)   (used when Fin > hidden; X@W1 hoisted)."""
    h = jnp.dot(a_ref[...], xw1_ref[...], preferred_element_type=jnp.float32)
    h = h + b1_ref[...]
    h_ref[...] = jnp.maximum(h, 0.0).astype(h_ref.dtype)


def _layer2_kernel(a_ref, h_ref, w2_ref, b2_ref, o_ref, *, fout):
    """O_tile = log_softmax((A_tile @ H) @ W2 + b2) over the first `fout` columns."""
    ah = jnp.dot(a_ref[...], h_ref[...], preferred_element_type=jnp.float32)
    z = jnp.dot(ah.astype(jnp.bfloat16), w2_ref[...],
                preferred_element_type=jnp.float32)
    z = z + b2_ref[...]
    # masked log_softmax over the real (unpadded) feature columns, all in f32
    col = jax.lax.broadcasted_iota(jnp.int32, z.shape, 1)
    valid = col < fout
    zm = jnp.where(valid, z, _NEG_BIG)
    m = jnp.max(zm, axis=1, keepdims=True)
    lse = jnp.log(jnp.sum(jnp.exp(zm - m), axis=1, keepdims=True)) + m
    o_ref[...] = jnp.where(valid, z - lse, 0.0).astype(o_ref.dtype)


# -----------------------------------------------------------------------------
# Wrapper / tiling logic
# -----------------------------------------------------------------------------
def _round_up(x, m):
    return ((x + m - 1) // m) * m


def _pad2d(a, rows, cols):
    r, c = a.shape
    return jnp.pad(a, ((0, rows - r), (0, cols - c)))


def _vmem_limit_bytes():
    # Generation-aware VMEM budget: ~3/4 of physical, capped at 96 MiB
    # (v5e/v6e: 128 MiB physical -> 96 MiB; v7x: 64 MiB -> 48 MiB).
    try:
        cap = getattr(pltpu.get_tpu_info(), "vmem_capacity_bytes", None)
        if cap:
            return int(min((cap * 3) // 4, 96 << 20))
    except Exception:
        pass
    return 32 << 20


def _pick_row_tile(n, hid_p, budget):
    # Largest row tile whose double-buffered bf16 A slab (+ resident H and a
    # double-buffered f32 output tile) fits comfortably in the VMEM budget.
    for tm in (512, 256, 128, 64, 32, 16, 8):
        need = 2 * (tm * n * 2) + n * hid_p * 2 + 2 * (tm * hid_p * 4)
        if need <= (budget * 3) // 4:
            return tm
    return 8


def diffusion_gcn_forward(a_norm, x, w1, b1, w2, b2):
    """Forward pass of DiffusionGCN (eval mode) on a dense normalized adjacency."""
    n, fin = x.shape
    hid = w1.shape[1]
    fout = w2.shape[1]
    hid_p = _round_up(hid, 128)
    fout_p = _round_up(fout, 128)

    vmem_limit = _vmem_limit_bytes()
    tm = _pick_row_tile(n, hid_p, vmem_limit)
    n_p = _round_up(n, tm)              # pad node/row dim so the grid tiles evenly
    grid = (n_p // tm,)

    # bf16 on the MXU/DMA path (halves bytes of the dominant N x N operand);
    # biases stay f32; padded feature columns / rows are zero, so exact.
    a16 = _pad2d(a_norm, n_p, n).astype(jnp.bfloat16)
    x16 = x.astype(jnp.bfloat16)
    w1p = _pad2d(w1, fin, hid_p).astype(jnp.bfloat16)
    b1p = _pad2d(b1, 1, hid_p).astype(jnp.float32)
    w2p = _pad2d(w2, hid_p, fout_p).astype(jnp.bfloat16)
    b2p = _pad2d(b2, 1, fout_p).astype(jnp.float32)

    cp = pltpu.CompilerParams(dimension_semantics=("parallel",),
                              vmem_limit_bytes=vmem_limit)

    a_spec = pl.BlockSpec((tm, n), lambda i: (i, 0))
    resident = lambda shape: pl.BlockSpec(shape, lambda i: (0, 0))
    row_out = lambda cols: pl.BlockSpec((tm, cols), lambda i: (i, 0))

    # ---- layer 1: H = relu(A @ X @ W1 + b1) ----------------------------------
    if fin <= hid:
        h = pl.pallas_call(
            _layer1_fused_kernel,
            out_shape=jax.ShapeDtypeStruct((n_p, hid_p), jnp.bfloat16),
            grid=grid,
            in_specs=[a_spec, resident((n, fin)), resident((fin, hid_p)),
                      resident((1, hid_p))],
            out_specs=row_out(hid_p),
            compiler_params=cp,
        )(a16, x16, w1p, b1p)
    else:
        # Hoist X @ W1 (done once, O(N*Fin*hid)) so the per-tile MXU work is
        # only the N^2-sized A matmul at the narrower `hidden` width.
        xw1 = jnp.dot(x16, w1p, preferred_element_type=jnp.float32)
        h = pl.pallas_call(
            _layer1_premixed_kernel,
            out_shape=jax.ShapeDtypeStruct((n_p, hid_p), jnp.bfloat16),
            grid=grid,
            in_specs=[a_spec, resident((n, hid_p)), resident((1, hid_p))],
            out_specs=row_out(hid_p),
            compiler_params=cp,
        )(a16, xw1.astype(jnp.bfloat16), b1p)

    # TODO(synk): dropout(p=0.5, training=self.training) between the layers is
    # eval-mode identity here (training parity would need pltpu.prng_seed /
    # prng_random_bits masking inside the kernel).

    if n_p != n:
        h = h[:n]                        # drop padded rows before layer 2's RHS

    # ---- layer 2 + log_softmax: O = log_softmax(A @ H @ W2 + b2) -------------
    out_p = pl.pallas_call(
        functools.partial(_layer2_kernel, fout=fout),
        out_shape=jax.ShapeDtypeStruct((n_p, fout_p), jnp.float32),
        grid=grid,
        in_specs=[a_spec, resident((n, hid_p)), resident((hid_p, fout_p)),
                  resident((1, fout_p))],
        out_specs=row_out(fout_p),
        compiler_params=cp,
    )(a16, h, w2p, b2p)

    return out_p[:n, :fout]


# -----------------------------------------------------------------------------
# Glue: dense GCN-normalized adjacency  D^{-1/2} (A + I) D^{-1/2}
# (PyG gcn_norm semantics with add_self_loops=True, fill value 1.0; duplicate
# edges are summed. Degree = row sum over target-indexed rows incl. self loop.)
# -----------------------------------------------------------------------------
def gcn_normalized_adjacency(edge_index, edge_weight, num_nodes):
    src = edge_index[0]
    dst = edge_index[1]
    a = jnp.zeros((num_nodes, num_nodes), jnp.float32)
    a = a.at[dst, src].add(edge_weight)                    # aggregate at target node
    a = a + jnp.eye(num_nodes, dtype=jnp.float32)          # self loops, weight 1
    deg = jnp.sum(a, axis=1)
    dinv = jnp.where(deg > 0, 1.0 / jnp.sqrt(deg), 0.0)
    return dinv[:, None] * a * dinv[None, :]


# -----------------------------------------------------------------------------
# Pure-JAX reference mirroring the kernel's bf16-operand / f32-accumulate math
# -----------------------------------------------------------------------------
def reference_forward(a_norm, x, w1, b1, w2, b2):
    a16 = a_norm.astype(jnp.bfloat16)
    x16 = x.astype(jnp.bfloat16)
    w1_16 = w1.astype(jnp.bfloat16)
    w2_16 = w2.astype(jnp.bfloat16)
    fin, hid = w1.shape
    if fin <= hid:
        ax = jnp.dot(a16, x16, preferred_element_type=jnp.float32)
        h = jnp.dot(ax.astype(jnp.bfloat16), w1_16,
                    preferred_element_type=jnp.float32) + b1
    else:
        xw1 = jnp.dot(x16, w1_16, preferred_element_type=jnp.float32)
        h = jnp.dot(a16, xw1.astype(jnp.bfloat16),
                    preferred_element_type=jnp.float32) + b1
    h16 = jnp.maximum(h, 0.0).astype(jnp.bfloat16)
    ah = jnp.dot(a16, h16, preferred_element_type=jnp.float32)
    z = jnp.dot(ah.astype(jnp.bfloat16), w2_16,
                preferred_element_type=jnp.float32) + b2
    return jax.nn.log_softmax(z, axis=1)


if __name__ == "__main__":
    key = jax.random.PRNGKey(0)

    # Synthetic graph: big enough to exercise row tiling (grid > 1), still small.
    num_nodes = 1024
    num_edges = 4096
    in_channels = 16
    hidden_channels = 32
    out_channels = 8

    k_x, k_e1, k_e2, k_w, k_w1, k_w2 = jax.random.split(key, 6)

    x = jax.random.normal(k_x, (num_nodes, in_channels), jnp.float32)
    edge_index = jnp.stack([
        jax.random.randint(k_e1, (num_edges,), 0, num_nodes),
        jax.random.randint(k_e2, (num_edges,), 0, num_nodes),
    ])
    edge_weight = jax.random.uniform(k_w, (num_edges,), jnp.float32, 0.5, 1.5)

    # Deterministic Glorot-style init (GCNConv: weight [Fin, Fout], bias [Fout])
    def glorot(k, fan_in, fan_out):
        limit = jnp.sqrt(6.0 / (fan_in + fan_out))
        return jax.random.uniform(k, (fan_in, fan_out), jnp.float32, -limit, limit)

    w1 = glorot(k_w1, in_channels, hidden_channels)
    b1 = jnp.zeros((1, hidden_channels), jnp.float32)
    w2 = glorot(k_w2, hidden_channels, out_channels)
    b2 = jnp.zeros((1, out_channels), jnp.float32)

    a_norm = gcn_normalized_adjacency(edge_index, edge_weight, num_nodes)

    out = diffusion_gcn_forward(a_norm, x, w1, b1, w2, b2)
    out = jax.block_until_ready(out)

    ref = reference_forward(a_norm, x, w1, b1, w2, b2)
    assert out.shape == (num_nodes, out_channels)
    assert bool(jnp.all(jnp.isfinite(out)))
    assert jnp.allclose(out, ref, atol=5e-3, rtol=5e-3)

    print("KERNEL_OK")
</pallas_src>

<mosaic_0001>
module attributes {stable_mosaic.version = 11 : i64} {
  func.func @_layer1_fused_kernel(%arg0: i32, %arg1: memref<512x1024xbf16, #tpu.memory_space<vmem>>, %arg2: memref<1024x16xbf16, #tpu.memory_space<vmem>>, %arg3: memref<16x128xbf16, #tpu.memory_space<vmem>>, %arg4: memref<1x128xf32, #tpu.memory_space<vmem>>, %arg5: memref<512x128xbf16, #tpu.memory_space<vmem>>) attributes {dimension_semantics = [#tpu.dimension_semantics<parallel>], iteration_bounds = array<i64: 2>, scalar_prefetch = 0 : i64, scratch_operands = 0 : i64, tpu.core_type = #tpu.core_type<tc>, window_params = [{transform_indices = @transform_0, window_bounds = array<i64: 512, 1024>}, {pipeline_mode = #tpu.pipeline_mode<synchronous>, transform_indices = @transform_1, window_bounds = array<i64: 1024, 16>}, {pipeline_mode = #tpu.pipeline_mode<synchronous>, transform_indices = @transform_2, window_bounds = array<i64: 16, 128>}, {pipeline_mode = #tpu.pipeline_mode<synchronous>, transform_indices = @transform_3, window_bounds = array<i64: 1, 128>}, {transform_indices = @transform_4, window_bounds = array<i64: 512, 128>}]} {
    %c0 = arith.constant 0 : index
    %c0_0 = arith.constant 0 : index
    %0 = vector.load %arg1[%c0, %c0_0] : memref<512x1024xbf16, #tpu.memory_space<vmem>>, vector<512x1024xbf16>
    %c0_1 = arith.constant 0 : index
    %c0_2 = arith.constant 0 : index
    %1 = vector.load %arg2[%c0_1, %c0_2] : memref<1024x16xbf16, #tpu.memory_space<vmem>>, vector<1024x16xbf16>
    %cst = arith.constant dense<0.000000e+00> : vector<512x16xf32>
    %2 = tpu.matmul %0, %1, %cst {dimension_numbers = #tpu.dot_dimension_numbers<[1], [0], [0], [1], [0, 0, 1, 1], [], []>} : vector<512x1024xbf16>, vector<1024x16xbf16>, vector<512x16xf32> -> vector<512x16xf32>
    %3 = arith.truncf %2 : vector<512x16xf32> to vector<512x16xbf16>
    %c0_3 = arith.constant 0 : index
    %c0_4 = arith.constant 0 : index
    %4 = vector.load %arg3[%c0_3, %c0_4] : memref<16x128xbf16, #tpu.memory_space<vmem>>, vector<16x128xbf16>
    %cst_5 = arith.constant dense<0.000000e+00> : vector<512x128xf32>
    %5 = tpu.matmul %3, %4, %cst_5 {dimension_numbers = #tpu.dot_dimension_numbers<[1], [0], [0], [1], [0, 0, 1, 1], [], []>} : vector<512x16xbf16>, vector<16x128xbf16>, vector<512x128xf32> -> vector<512x128xf32>
    %c0_6 = arith.constant 0 : index
    %c0_7 = arith.constant 0 : index
    %6 = vector.load %arg4[%c0_6, %c0_7] : memref<1x128xf32, #tpu.memory_space<vmem>>, vector<1x128xf32>
    %7 = vector.broadcast %6 : vector<1x128xf32> to vector<512x128xf32>
    %8 = arith.addf %5, %7 : vector<512x128xf32>
    %cst_8 = arith.constant 0.000000e+00 : f32
    %9 = vector.broadcast %cst_8 : f32 to vector<512x128xf32>
    %10 = arith.maximumf %8, %9 : vector<512x128xf32>
    %11 = arith.truncf %10 : vector<512x128xf32> to vector<512x128xbf16>
    %c0_9 = arith.constant 0 : index
    %c0_10 = arith.constant 0 : index
    %12 = vector.load %arg5[%c0_9, %c0_10] : memref<512x128xbf16, #tpu.memory_space<vmem>>, vector<512x128xbf16>
    tpu.vector_store %arg5[%c0_9, %c0_10], %11 {strides = array<i32>} : memref<512x128xbf16, #tpu.memory_space<vmem>>, vector<512x128xbf16>,
    return
  }
  func.func @transform_0(%arg0: i32) -> (i32, i32) {
    %c0_i32 = arith.constant 0 : i32
    %c0_i32_0 = arith.constant 0 : i32
    return %arg0, %c0_i32 : i32, i32
  }
  func.func @transform_1(%arg0: i32) -> (i32, i32) {
    %c0_i32 = arith.constant 0 : i32
    %c0_i32_0 = arith.constant 0 : i32
    %c0_i32_1 = arith.constant 0 : i32
    return %c0_i32, %c0_i32_0 : i32, i32
  }
  func.func @transform_2(%arg0: i32) -> (i32, i32) {
    %c0_i32 = arith.constant 0 : i32
    %c0_i32_0 = arith.constant 0 : i32
    %c0_i32_1 = arith.constant 0 : i32
    return %c0_i32, %c0_i32_0 : i32, i32
  }
  func.func @transform_3(%arg0: i32) -> (i32, i32) {
    %c0_i32 = arith.constant 0 : i32
    %c0_i32_0 = arith.constant 0 : i32
    %c0_i32_1 = arith.constant 0 : i32
    return %c0_i32, %c0_i32_0 : i32, i32
  }
  func.func @transform_4(%arg0: i32) -> (i32, i32) {
    %c0_i32 = arith.constant 0 : i32
    %c0_i32_0 = arith.constant 0 : i32
    return %arg0, %c0_i32 : i32, i32
  }
}

</mosaic_0001>

<llo_original>
// kernel: tpu_custom_call.1
$region0: #{tpu_custom_call.1}
  #allocation0 [shape = 'u32[]', space=smem, size = 0x4, offset = 0x4, fixed_abs, tag = 'smem constant byte address 0x4 - core index']
  #allocation1 [shape = 'u32[144,128]{1,0:T(1,128)}', space=vmem, size = 0x12000, scoped, tag = 'internal scratch']
  %s0 = inlined_call_operand.hbm [shape: bf16[1024,1024], index: 0, kind: input, shape index: {}]
  %s1 = inlined_call_operand.vmem [shape: bf16[1024,16], index: 1, kind: input, shape index: {}]
  %s2 = inlined_call_operand.hbm [shape: bf16[16,128], index: 2, kind: input, shape index: {}]
  %s3 = inlined_call_operand.hbm [shape: f32[1,128], index: 3, kind: input, shape index: {}]
  %s4 = inlined_call_operand.hbm [shape: bf16[1024,128], index: 4, kind: output, shape index: {}]
  %s5 = sld [smem:[#allocation0]]
  $region61: #{tpu_custom_call.1} parent=0
    _
  %s7 = ssub.s32 1, %s5
  %s8 = scalar_select 0, %s7, %s5
  $region1: #{tpu_custom_call.1} parent=0
    #allocation2 [shape = 'u8[2097152]{0}', space=vmem, size = 0x200000, scoped, tag = 'input window, operand 0']
    #allocation3 [shape = 's32[2]{0}', space=sflag, size = 0x8, scoped, tag = 'scoped memory for tpu_custom_call.1']
    #allocation4 [shape = 's32[2]{0}', space=sflag, size = 0x8, scoped, tag = 'scoped memory for tpu_custom_call.1']
    #allocation5 [shape = 'u8[4096]{0}', space=vmem, size = 0x1000, scoped, tag = 'input window, operand 2, single buffered']
    #allocation6 [shape = 's32[1]{0}', space=sflag, size = 0x4, scoped, tag = 'scoped memory for tpu_custom_call.1']
    #allocation7 [shape = 'u8[512]{0}', space=vmem, size = 0x400, scoped, tag = 'input window, operand 3, single buffered']
    #allocation8 [shape = 'u8[262144]{0}', space=vmem, size = 0x40000, scoped, tag = 'output window, operand 0']
    %9 = vsyncpa [#allocation3], 0
    %s10 = scalar_lea.sflag [#allocation3], 1
    %11 = vsyncpa %s10, 0
    %12 = vsyncpa [#allocation6], 0
    %13 = vsyncpa [#allocation4], 0
    %s14 = scalar_lea.sflag [#allocation4], 1
    %15 = vsyncpa %s14, 0
    loop: start=0, step=1, limit=4
    $region2: #{tpu_custom_call.1} parent=1 // loop_pre_header
      _
    $region3: #{tpu_custom_call.1} parent=1 // loop_header
      %s17 = sphi 0, %s21
      %p18 = scmp.ge.s32.totalorder %s17, 4
      %s27 = sphi 0, %s29
      %s30 = sphi 0, %s27
      %s31 = sphi 0, %s30
      %s47 = sphi 0, %s31
      %s51 = sphi 0, %s51
      %s53 = sphi 0, %s51
      %s54 = sphi 0, %s53
      %s68 = sphi 0, %s54
      %s72 = sphi 0, %s72
      %s74 = sphi 0, %s72
      %s75 = sphi 0, %s74
      %s89 = sphi 0, %s75
      %s93 = sphi 0, %s93
      %s95 = sphi 0, %s93
      %s96 = sphi 0, %s95
      %s110 = sphi 0, %s96
      %s116 = sphi 0, %s118
      %s119 = sphi 0, %s116
      %s120 = sphi 0, %s119
      %s136 = sphi 0, %s120
    $region4: #{tpu_custom_call.1} parent=1 // loop_header_branch
      %20 = sbr.rel (%p18) target = $region8
    $region5: #{tpu_custom_call.1} parent=1 // loop_body
      %s22 = ssub.s32 %s17, 1
      %s23 = ssub.s32 %s17, 2
      %s24 = sadd.s32 %s17, 1
      %s25 = ssub.s32 %s17, %s24
      %p26 = scmp.eq.s32.totalorder %s25, 0
      %s28 = sadd.s32 %s27, 1
      %s29 = scalar_select %p26, %s27, %s28
      %p32 = pneg %p26
      %p33 = scmp.eq.s32.totalorder %s17, 1
      %p34 = por %p32, %p33
      %p35 = scmp.ne.s32.totalorder %s27, %s30
      %p36 = scmp.eq.s32.totalorder %s17, 0
      %p37 = por %p35, %p36
      %p38 = scmp.ne.s32.totalorder %s27, %s30
      %p39 = scmp.eq.s32.totalorder %s22, 1
      %p40 = por %p38, %p39
      %p41 = scmp.ne.s32.totalorder %s30, %s31
      %p42 = scmp.eq.s32.totalorder %s22, 0
      %p43 = por %p41, %p42
      %p44 = scmp.ne.s32.totalorder %s30, %s31
      %p45 = scmp.eq.s32.totalorder %s23, 1
      %p46 = por %p44, %p45
      %p48 = scmp.ne.s32.totalorder %s31, %s47
      %p49 = scmp.eq.s32.totalorder %s23, 0
      %p50 = por %p48, %p49
      %s52 = sadd.s32 %s51, 1
      %p55 = scmp.eq.s32.totalorder %s17, 1
      %p56 = scmp.ne.s32.totalorder %s51, %s53
      %p57 = scmp.eq.s32.totalorder %s17, 0
      %p58 = por %p56, %p57
      %p59 = scmp.ne.s32.totalorder %s51, %s53
      %p60 = scmp.eq.s32.totalorder %s22, 1
      %p61 = por %p59, %p60
      %p62 = scmp.ne.s32.totalorder %s53, %s54
      %p63 = scmp.eq.s32.totalorder %s22, 0
      %p64 = por %p62, %p63
      %p65 = scmp.ne.s32.totalorder %s53, %s54
      %p66 = scmp.eq.s32.totalorder %s23, 1
      %p67 = por %p65, %p66
      %p69 = scmp.ne.s32.totalorder %s54, %s68
      %p70 = scmp.eq.s32.totalorder %s23, 0
      %p71 = por %p69, %p70
      %s73 = sadd.s32 %s72, 1
      %p76 = scmp.eq.s32.totalorder %s17, 1
      %p77 = scmp.ne.s32.totalorder %s72, %s74
      %p78 = scmp.eq.s32.totalorder %s17, 0
      %p79 = por %p77, %p78
      %p80 = scmp.ne.s32.totalorder %s72, %s74
      %p81 = scmp.eq.s32.totalorder %s22, 1
      %p82 = por %p80, %p81
      %p83 = scmp.ne.s32.totalorder %s74, %s75
      %p84 = scmp.eq.s32.totalorder %s22, 0
      %p85 = por %p83, %p84
      %p86 = scmp.ne.s32.totalorder %s74, %s75
      %p87 = scmp.eq.s32.totalorder %s23, 1
      %p88 = por %p86, %p87
      %p90 = scmp.ne.s32.totalorder %s75, %s89
      %p91 = scmp.eq.s32.totalorder %s23, 0
      %p92 = por %p90, %p91
      %s94 = sadd.s32 %s93, 1
      %p97 = scmp.eq.s32.totalorder %s17, 1
      %p98 = scmp.ne.s32.totalorder %s93, %s95
      %p99 = scmp.eq.s32.totalorder %s17, 0
      %p100 = por %p98, %p99
      %p101 = scmp.ne.s32.totalorder %s93, %s95
      %p102 = scmp.eq.s32.totalorder %s22, 1
      %p103 = por %p101, %p102
      %p104 = scmp.ne.s32.totalorder %s95, %s96
      %p105 = scmp.eq.s32.totalorder %s22, 0
      %p106 = por %p104, %p105
      %p107 = scmp.ne.s32.totalorder %s95, %s96
      %p108 = scmp.eq.s32.totalorder %s23, 1
      %p109 = por %p107, %p108
      %p111 = scmp.ne.s32.totalorder %s96, %s110
      %p112 = scmp.eq.s32.totalorder %s23, 0
      %p113 = por %p111, %p112
      %s114 = ssub.s32 %s17, %s24
      %p115 = scmp.eq.s32.totalorder %s114, 0
      %s117 = sadd.s32 %s116, 1
      %s118 = scalar_select %p115, %s116, %s117
      %p121 = pneg %p115
      %p122 = scmp.eq.s32.totalorder %s17, 1
      %p123 = por %p121, %p122
      %p124 = scmp.ne.s32.totalorder %s116, %s119
      %p125 = scmp.eq.s32.totalorder %s17, 0
      %p126 = por %p124, %p125
      %p127 = scmp.ne.s32.totalorder %s116, %s119
      %p128 = scmp.eq.s32.totalorder %s22, 1
      %p129 = por %p127, %p128
      %p130 = scmp.ne.s32.totalorder %s119, %s120
      %p131 = scmp.eq.s32.totalorder %s22, 0
      %p132 = por %p130, %p131
      %p133 = scmp.ne.s32.totalorder %s119, %s120
      %p134 = scmp.eq.s32.totalorder %s23, 1
      %p135 = por %p133, %p134
      %p137 = scmp.ne.s32.totalorder %s120, %s136
      %p138 = scmp.eq.s32.totalorder %s23, 0
      %p139 = por %p137, %p138
      %p140 = scmp.le.s32.totalorder 1, %s17
      %p141 = scmp.lt.s32.totalorder %s17, 3
      %p142 = pnand %p140, %p141
      %p143 = pneg %p142
      // Predicated region
      $region9: #{tpu_custom_call.1} parent=5 // pred_check
        _
      $region10: #{tpu_custom_call.1} parent=5 // pred_check_branch
        %145 = sbr.rel (%p142) target = $region12
      $region11: #{tpu_custom_call.1} parent=5 // pred_region
        %s146 = ssub.s32 %s17, 1
        // Predicated region
        $region13: #{tpu_custom_call.1} parent=11 // pred_check
          %p147 = pneg %p64
        $region14: #{tpu_custom_call.1} parent=11 // pred_check_branch
          %149 = sbr.rel (%p147) target = $region16
        $region15: #{tpu_custom_call.1} parent=11 // pred_region
          _
        $region16: #{tpu_custom_call.1} parent=11 // pred_fallthru
          _
        // Predicated region
        $region17: #{tpu_custom_call.1} parent=11 // pred_check
          %p150 = pneg %p85
        $region18: #{tpu_custom_call.1} parent=11 // pred_check_branch
          %152 = sbr.rel (%p150) target = $region20
        $region19: #{tpu_custom_call.1} parent=11 // pred_region
          %s154 = ssub.s32 128, 128
          %155 = vsyncadd [#allocation6], %s154
          %s156 = sshll.u32 [#allocation5], 4
          %s157 = int_to_ptr.vmem [resolvable:$true] %s156
          %162 = dma.hbm_to_vmem [thread:$0]  %s2, 128, %s157, [#allocation6], 64, 64, 4
        $region20: #{tpu_custom_call.1} parent=11 // pred_fallthru
          _
        // Predicated region
        $region21: #{tpu_custom_call.1} parent=11 // pred_check
          %p163 = pneg %p106
        $region22: #{tpu_custom_call.1} parent=11 // pred_check_branch
          %165 = sbr.rel (%p163) target = $region24
        $region23: #{tpu_custom_call.1} parent=11 // pred_region
          %s167 = ssub.s32 16, 16
          %168 = vsyncadd [#allocation6], %s167
          %s170 = sshll.u32 [#allocation7], 4
          %s171 = int_to_ptr.vmem [resolvable:$true] %s170
          %173 = dma.hbm_to_vmem [thread:$0]  %s3, 16, %s171, [#allocation6]
        $region24: #{tpu_custom_call.1} parent=11 // pred_fallthru
          _
      $region12: #{tpu_custom_call.1} parent=5 // pred_fallthru
        _
      %p174 = scmp.lt.s32.totalorder %s17, 2
      // Predicated region
      $region25: #{tpu_custom_call.1} parent=5 // pred_check
        %p175 = pneg %p174
      $region26: #{tpu_custom_call.1} parent=5 // pred_check_branch
        %177 = sbr.rel (%p175) target = $region28
      $region27: #{tpu_custom_call.1} parent=5 // pred_region
        // Predicated region
        $region29: #{tpu_custom_call.1} parent=27 // pred_check
          %p178 = pneg %p37
        $region30: #{tpu_custom_call.1} parent=27 // pred_check_branch
          %180 = sbr.rel (%p178) target = $region32
        $region31: #{tpu_custom_call.1} parent=27 // pred_region
          %s181 = sand.u32 %s27, 1
          %s182 = scalar_lea.sflag [#allocation3], %s181
          %s183 = sand.u32 %s27, 1
          %s184 = smul.addr %s183, 2048
          %s185 = scalar_lea.vmem [#allocation2], %s184
          %s186 = smul.u32 64, %s17
          %s188 = ssub.s32 32768, 32768
          %189 = vsyncadd %s182, %s188
          %s190 = smul.addr %s186, 8
          %s191 = smul.addr %s190, 64
          %s192 = scalar_lea.hbm %s0, %s191
          %s193 = sshll.u32 %s185, 4
          %s194 = int_to_ptr.vmem [resolvable:$true] %s193
          %199 = dma.hbm_to_vmem [thread:$0]  %s192, 32768, %s194, %s182, 512, 512, 32
        $region32: #{tpu_custom_call.1} parent=27 // pred_fallthru
          _
      $region28: #{tpu_custom_call.1} parent=5 // pred_fallthru
        _
      %p200 = scmp.le.s32.totalorder 1, %s17
      %p201 = scmp.lt.s32.totalorder %s17, 3
      %p202 = pnand %p200, %p201
      %p203 = pneg %p202
      // Predicated region
      $region33: #{tpu_custom_call.1} parent=5 // pred_check
        _
      $region34: #{tpu_custom_call.1} parent=5 // pred_check_branch
        %205 = sbr.rel (%p202) target = $region36
      $region35: #{tpu_custom_call.1} parent=5 // pred_region
        %s206 = ssub.s32 %s17, 1
        %s207 = sand.u32 %s30, 1
        %s208 = scalar_lea.sflag [#allocation3], %s207
        %s209 = sand.u32 %s30, 1
        %s210 = smul.addr %s209, 2048
        %s211 = scalar_lea.vmem [#allocation2], %s210
        // Predicated region
        $region37: #{tpu_custom_call.1} parent=35 // pred_check
          %p212 = pneg %p43
        $region38: #{tpu_custom_call.1} parent=35 // pred_check_branch
          %214 = sbr.rel (%p212) target = $region40
        $region39: #{tpu_custom_call.1} parent=35 // pred_region
          %215 = dma.done %s208, 32768
        $region40: #{tpu_custom_call.1} parent=35 // pred_fallthru
          _
        // Predicated region
        $region41: #{tpu_custom_call.1} parent=35 // pred_check
          %p216 = pneg %p85
        $region42: #{tpu_custom_call.1} parent=35 // pred_check_branch
          %218 = sbr.rel (%p216) target = $region44
        $region43: #{tpu_custom_call.1} parent=35 // pred_region
          %219 = dma.done [#allocation6], 128
        $region44: #{tpu_custom_call.1} parent=35 // pred_fallthru
          _
        // Predicated region
        $region45: #{tpu_custom_call.1} parent=35 // pred_check
          %p220 = pneg %p106
        $region46: #{tpu_custom_call.1} parent=35 // pred_check_branch
          %222 = sbr.rel (%p220) target = $region48
        $region47: #{tpu_custom_call.1} parent=35 // pred_region
          %223 = dma.done [#allocation6], 16
        $region48: #{tpu_custom_call.1} parent=35 // pred_fallthru
          _
        %s224 = sand.u32 %s30, 1
        %s225 = scalar_lea.sflag [#allocation3], %s224
        %s226 = sand.u32 %s30, 1
        %s227 = smul.addr %s226, 2048
        %s228 = scalar_lea.vmem [#allocation2], %s227
        %p229 = pneg %p43
        %p230 = pneg %p40
        %p231 = pneg %p64
        %p232 = pneg %p61
        %p233 = pneg %p85
        %p234 = pneg %p82
        %p235 = pneg %p106
        %p236 = pneg %p103
        %p237 = pneg %p132
        %p238 = pneg %p129
        %s239 = sand.u32 %s119, 1
        %s240 = scalar_lea.sflag [#allocation4], %s239
        %s241 = sand.u32 %s119, 1
        %s242 = smul.addr %s241, 256
        %s243 = scalar_lea.vmem [#allocation8], %s242
        %s244 = smul.u32 64, %s22
        %s245 = smul.u32 64, %s22
        %v247 = vld [vmem:[%s211] sm:$0xff]
        %v248 = vld [vmem:[%s211 + $0x8] sm:$0xff]
        %v249 = vld [vmem:[%s211 + $0x10] sm:$0xff]
        %v250 = vld [vmem:[%s211 + $0x18] sm:$0xff]
        %v251 = vld [vmem:[%s211 + $0x20] sm:$0xff]
        %v252 = vld [vmem:[%s211 + $0x28] sm:$0xff]
        %v253 = vld [vmem:[%s211 + $0x30] sm:$0xff]
        %v254 = vld [vmem:[%s211 + $0x38] sm:$0xff]
        %v255 = vld [vmem:[%s211 + $0x40] sm:$0xff]
        %v256 = vld [vmem:[%s211 + $0x48] sm:$0xff]
        %v257 = vld [vmem:[%s211 + $0x50] sm:$0xff]
        %v258 = vld [vmem:[%s211 + $0x58] sm:$0xff]
        %v259 = vld [vmem:[%s211 + $0x60] sm:$0xff]
        %v260 = vld [vmem:[%s211 + $0x68] sm:$0xff]
        %v261 = vld [vmem:[%s211 + $0x70] sm:$0xff]
        %v262 = vld [vmem:[%s211 + $0x78] sm:$0xff]
        %v263 = vld [vmem:[%s211 + $0x80] sm:$0xff]
        %v264 = vld [vmem:[%s211 + $0x88] sm:$0xff]
        %v265 = vld [vmem:[%s211 + $0x90] sm:$0xff]
        %v266 = vld [vmem:[%s211 + $0x98] sm:$0xff]
        %v267 = vld [vmem:[%s211 + $0xa0] sm:$0xff]
        %v268 = vld [vmem:[%s211 + $0xa8] sm:$0xff]
        %v269 = vld [vmem:[%s211 + $0xb0] sm:$0xff]
        %v270 = vld [vmem:[%s211 + $0xb8] sm:$0xff]
        %v271 = vld [vmem:[%s211 + $0xc0] sm:$0xff]
        %v272 = vld [vmem:[%s211 + $0xc8] sm:$0xff]
        %v273 = vld [vmem:[%s211 + $0xd0] sm:$0xff]
        %v274 = vld [vmem:[%s211 + $0xd8] sm:$0xff]
        %v275 = vld [vmem:[%s211 + $0xe0] sm:$0xff]
        %v276 = vld [vmem:[%s211 + $0xe8] sm:$0xff]
        %v277 = vld [vmem:[%s211 + $0xf0] sm:$0xff]
        %v278 = vld [vmem:[%s211 + $0xf8] sm:$0xff]
        %v279 = vld [vmem:[%s211 + $0x100] sm:$0xff]
        %v280 = vld [vmem:[%s211 + $0x108] sm:$0xff]
        %v281 = vld [vmem:[%s211 + $0x110] sm:$0xff]
        %v282 = vld [vmem:[%s211 + $0x118] sm:$0xff]
        %v283 = vld [vmem:[%s211 + $0x120] sm:$0xff]
        %v284 = vld [vmem:[%s211 + $0x128] sm:$0xff]
        %v285 = vld [vmem:[%s211 + $0x130] sm:$0xff]
        %v286 = vld [vmem:[%s211 + $0x138] sm:$0xff]
        %v287 = vld [vmem:[%s211 + $0x140] sm:$0xff]
        %v288 = vld [vmem:[%s211 + $0x148] sm:$0xff]
        %v289 = vld [vmem:[%s211 + $0x150] sm:$0xff]
        %v290 = vld [vmem:[%s211 + $0x158] sm:$0xff]
        %v291 = vld [vmem:[%s211 + $0x160] sm:$0xff]
        %v292 = vld [vmem:[%s211 + $0x168] sm:$0xff]
        %v293 = vld [vmem:[%s211 + $0x170] sm:$0xff]
        %v294 = vld [vmem:[%s211 + $0x178] sm:$0xff]
        %v295 = vld [vmem:[%s211 + $0x180] sm:$0xff]
        %v296 = vld [vmem:[%s211 + $0x188] sm:$0xff]
        %v297 = vld [vmem:[%s211 + $0x190] sm:$0xff]
        %v298 = vld [vmem:[%s211 + $0x198] sm:$0xff]
        %v299 = vld [vmem:[%s211 + $0x1a0] sm:$0xff]
        %v300 = vld [vmem:[%s211 + $0x1a8] sm:$0xff]
        %v301 = vld [vmem:[%s211 + $0x1b0] sm:$0xff]
        %v302 = vld [vmem:[%s211 + $0x1b8] sm:$0xff]
        %v303 = vld [vmem:[%s211 + $0x1c0] sm:$0xff]
        %v304 = vld [vmem:[%s211 + $0x1c8] sm:$0xff]
        %v305 = vld [vmem:[%s211 + $0x1d0] sm:$0xff]
        %v306 = vld [vmem:[%s211 + $0x1d8] sm:$0xff]
        %v307 = vld [vmem:[%s211 + $0x1e0] sm:$0xff]
        %v308 = vld [vmem:[%s211 + $0x1e8] sm:$0xff]
        %v309 = vld [vmem:[%s211 + $0x1f0] sm:$0xff]
        %v310 = vld [vmem:[%s211 + $0x1f8] sm:$0xff]
        %v311 = vld [vmem:[%s211 + $0x200] sm:$0xff]
        %v312 = vld [vmem:[%s211 + $0x208] sm:$0xff]
        %v313 = vld [vmem:[%s211 + $0x210] sm:$0xff]
        %v314 = vld [vmem:[%s211 + $0x218] sm:$0xff]
        %v315 = vld [vmem:[%s211 + $0x220] sm:$0xff]
        %v316 = vld [vmem:[%s211 + $0x228] sm:$0xff]
        %v317 = vld [vmem:[%s211 + $0x230] sm:$0xff]
        %v318 = vld [vmem:[%s211 + $0x238] sm:$0xff]
        %v319 = vld [vmem:[%s211 + $0x240] sm:$0xff]
        %v320 = vld [vmem:[%s211 + $0x248] sm:$0xff]
        %v321 = vld [vmem:[%s211 + $0x250] sm:$0xff]
        %v322 = vld [vmem:[%s211 + $0x258] sm:$0xff]
        %v323 = vld [vmem:[%s211 + $0x260] sm:$0xff]
        %v324 = vld [vmem:[%s211 + $0x268] sm:$0xff]
        %v325 = vld [vmem:[%s211 + $0x270] sm:$0xff]
        %v326 = vld [vmem:[%s211 + $0x278] sm:$0xff]
        %v327 = vld [vmem:[%s211 + $0x280] sm:$0xff]
        %v328 = vld [vmem:[%s211 + $0x288] sm:$0xff]
        %v329 = vld [vmem:[%s211 + $0x290] sm:$0xff]
        %v330 = vld [vmem:[%s211 + $0x298] sm:$0xff]
        %v331 = vld [vmem:[%s211 + $0x2a0] sm:$0xff]
        %v332 = vld [vmem:[%s211 + $0x2a8] sm:$0xff]
        %v333 = vld [vmem:[%s211 + $0x2b0] sm:$0xff]
        %v334 = vld [vmem:[%s211 + $0x2b8] sm:$0xff]
        %v335 = vld [vmem:[%s211 + $0x2c0] sm:$0xff]
        %v336 = vld [vmem:[%s211 + $0x2c8] sm:$0xff]
        %v337 = vld [vmem:[%s211 + $0x2d0] sm:$0xff]
        %v338 = vld [vmem:[%s211 + $0x2d8] sm:$0xff]
        %v339 = vld [vmem:[%s211 + $0x2e0] sm:$0xff]
        %v340 = vld [vmem:[%s211 + $0x2e8] sm:$0xff]
        %v341 = vld [vmem:[%s211 + $0x2f0] sm:$0xff]
        %v342 = vld [vmem:[%s211 + $0x2f8] sm:$0xff]
        %v343 = vld [vmem:[%s211 + $0x300] sm:$0xff]
        %v344 = vld [vmem:[%s211 + $0x308] sm:$0xff]
        %v345 = vld [vmem:[%s211 + $0x310] sm:$0xff]
        %v346 = vld [vmem:[%s211 + $0x318] sm:$0xff]
        %v347 = vld [vmem:[%s211 + $0x320] sm:$0xff]
        %v348 = vld [vmem:[%s211 + $0x328] sm:$0xff]
        %v349 = vld [vmem:[%s211 + $0x330] sm:$0xff]
        %v350 = vld [vmem:[%s211 + $0x338] sm:$0xff]
        %v351 = vld [vmem:[%s211 + $0x340] sm:$0xff]
        %v352 = vld [vmem:[%s211 + $0x348] sm:$0xff]
        %v353 = vld [vmem:[%s211 + $0x350] sm:$0xff]
        %v354 = vld [vmem:[%s211 + $0x358] sm:$0xff]
        %v355 = vld [vmem:[%s211 + $0x360] sm:$0xff]
        %v356 = vld [vmem:[%s211 + $0x368] sm:$0xff]
        %v357 = vld [vmem:[%s211 + $0x370] sm:$0xff]
        %v358 = vld [vmem:[%s211 + $0x378] sm:$0xff]
        %v359 = vld [vmem:[%s211 + $0x380] sm:$0xff]
        %v360 = vld [vmem:[%s211 + $0x388] sm:$0xff]
        %v361 = vld [vmem:[%s211 + $0x390] sm:$0xff]
        %v362 = vld [vmem:[%s211 + $0x398] sm:$0xff]
        %v363 = vld [vmem:[%s211 + $0x3a0] sm:$0xff]
        %v364 = vld [vmem:[%s211 + $0x3a8] sm:$0xff]
        %v365 = vld [vmem:[%s211 + $0x3b0] sm:$0xff]
        %v366 = vld [vmem:[%s211 + $0x3b8] sm:$0xff]
        %v367 = vld [vmem:[%s211 + $0x3c0] sm:$0xff]
        %v368 = vld [vmem:[%s211 + $0x3c8] sm:$0xff]
        %v369 = vld [vmem:[%s211 + $0x3d0] sm:$0xff]
        %v370 = vld [vmem:[%s211 + $0x3d8] sm:$0xff]
        %v371 = vld [vmem:[%s211 + $0x3e0] sm:$0xff]
        %v372 = vld [vmem:[%s211 + $0x3e8] sm:$0xff]
        %v373 = vld [vmem:[%s211 + $0x3f0] sm:$0xff]
        %v374 = vld [vmem:[%s211 + $0x3f8] sm:$0xff]
        %v375 = vld [vmem:[%s211 + $0x400] sm:$0xff]
        %v376 = vld [vmem:[%s211 + $0x408] sm:$0xff]
        %v377 = vld [vmem:[%s211 + $0x410] sm:$0xff]
        %v378 = vld [vmem:[%s211 + $0x418] sm:$0xff]
        %v379 = vld [vmem:[%s211 + $0x420] sm:$0xff]
        %v380 = vld [vmem:[%s211 + $0x428] sm:$0xff]
        %v381 = vld [vmem:[%s211 + $0x430] sm:$0xff]
        %v382 = vld [vmem:[%s211 + $0x438] sm:$0xff]
        %v383 = vld [vmem:[%s211 + $0x440] sm:$0xff]
        %v384 = vld [vmem:[%s211 + $0x448] sm:$0xff]
        %v385 = vld [vmem:[%s211 + $0x450] sm:$0xff]
        %v386 = vld [vmem:[%s211 + $0x458] sm:$0xff]
        %v387 = vld [vmem:[%s211 + $0x460] sm:$0xff]
        %v388 = vld [vmem:[%s211 + $0x468] sm:$0xff]
        %v389 = vld [vmem:[%s211 + $0x470] sm:$0xff]
        %v390 = vld [vmem:[%s211 + $0x478] sm:$0xff]
        %v391 = vld [vmem:[%s211 + $0x480] sm:$0xff]
        %v392 = vld [vmem:[%s211 + $0x488] sm:$0xff]
        %v393 = vld [vmem:[%s211 + $0x490] sm:$0xff]
        %v394 = vld [vmem:[%s211 + $0x498] sm:$0xff]
        %v395 = vld [vmem:[%s211 + $0x4a0] sm:$0xff]
        %v396 = vld [vmem:[%s211 + $0x4a8] sm:$0xff]
        %v397 = vld [vmem:[%s211 + $0x4b0] sm:$0xff]
        %v398 = vld [vmem:[%s211 + $0x4b8] sm:$0xff]
        %v399 = vld [vmem:[%s211 + $0x4c0] sm:$0xff]
        %v400 = vld [vmem:[%s211 + $0x4c8] sm:$0xff]
        %v401 = vld [vmem:[%s211 + $0x4d0] sm:$0xff]
        %v402 = vld [vmem:[%s211 + $0x4d8] sm:$0xff]
        %v403 = vld [vmem:[%s211 + $0x4e0] sm:$0xff]
        %v404 = vld [vmem:[%s211 + $0x4e8] sm:$0xff]
        %v405 = vld [vmem:[%s211 + $0x4f0] sm:$0xff]
        %v406 = vld [vmem:[%s211 + $0x4f8] sm:$0xff]
        %v407 = vld [vmem:[%s211 + $0x500] sm:$0xff]
        %v408 = vld [vmem:[%s211 + $0x508] sm:$0xff]
        %v409 = vld [vmem:[%s211 + $0x510] sm:$0xff]
        %v410 = vld [vmem:[%s211 + $0x518] sm:$0xff]
        %v411 = vld [vmem:[%s211 + $0x520] sm:$0xff]
        %v412 = vld [vmem:[%s211 + $0x528] sm:$0xff]
        %v413 = vld [vmem:[%s211 + $0x530] sm:$0xff]
        %v414 = vld [vmem:[%s211 + $0x538] sm:$0xff]
        %v415 = vld [vmem:[%s211 + $0x540] sm:$0xff]
        %v416 = vld [vmem:[%s211 + $0x548] sm:$0xff]
        %v417 = vld [vmem:[%s211 + $0x550] sm:$0xff]
        %v418 = vld [vmem:[%s211 + $0x558] sm:$0xff]
        %v419 = vld [vmem:[%s211 + $0x560] sm:$0xff]
        %v420 = vld [vmem:[%s211 + $0x568] sm:$0xff]
        %v421 = vld [vmem:[%s211 + $0x570] sm:$0xff]
        %v422 = vld [vmem:[%s211 + $0x578] sm:$0xff]
        %v423 = vld [vmem:[%s211 + $0x580] sm:$0xff]
        %v424 = vld [vmem:[%s211 + $0x588] sm:$0xff]
        %v425 = vld [vmem:[%s211 + $0x590] sm:$0xff]
        %v426 = vld [vmem:[%s211 + $0x598] sm:$0xff]
        %v427 = vld [vmem:[%s211 + $0x5a0] sm:$0xff]
        %v428 = vld [vmem:[%s211 + $0x5a8] sm:$0xff]
        %v429 = vld [vmem:[%s211 + $0x5b0] sm:$0xff]
        %v430 = vld [vmem:[%s211 + $0x5b8] sm:$0xff]
        %v431 = vld [vmem:[%s211 + $0x5c0] sm:$0xff]
        %v432 = vld [vmem:[%s211 + $0x5c8] sm:$0xff]
        %v433 = vld [vmem:[%s211 + $0x5d0] sm:$0xff]
        %v434 = vld [vmem:[%s211 + $0x5d8] sm:$0xff]
        %v435 = vld [vmem:[%s211 + $0x5e0] sm:$0xff]
        %v436 = vld [vmem:[%s211 + $0x5e8] sm:$0xff]
        %v437 = vld [vmem:[%s211 + $0x5f0] sm:$0xff]
        %v438 = vld [vmem:[%s211 + $0x5f8] sm:$0xff]
        %v439 = vld [vmem:[%s211 + $0x600] sm:$0xff]
        %v440 = vld [vmem:[%s211 + $0x608] sm:$0xff]
        %v441 = vld [vmem:[%s211 + $0x610] sm:$0xff]
        %v442 = vld [vmem:[%s211 + $0x618] sm:$0xff]
        %v443 = vld [vmem:[%s211 + $0x620] sm:$0xff]
        %v444 = vld [vmem:[%s211 + $0x628] sm:$0xff]
        %v445 = vld [vmem:[%s211 + $0x630] sm:$0xff]
        %v446 = vld [vmem:[%s211 + $0x638] sm:$0xff]
        %v447 = vld [vmem:[%s211 + $0x640] sm:$0xff]
        %v448 = vld [vmem:[%s211 + $0x648] sm:$0xff]
        %v449 = vld [vmem:[%s211 + $0x650] sm:$0xff]
        %v450 = vld [vmem:[%s211 + $0x658] sm:$0xff]
        %v451 = vld [vmem:[%s211 + $0x660] sm:$0xff]
        %v452 = vld [vmem:[%s211 + $0x668] sm:$0xff]
        %v453 = vld [vmem:[%s211 + $0x670] sm:$0xff]
        %v454 = vld [vmem:[%s211 + $0x678] sm:$0xff]
        %v455 = vld [vmem:[%s211 + $0x680] sm:$0xff]
        %v456 = vld [vmem:[%s211 + $0x688] sm:$0xff]
        %v457 = vld [vmem:[%s211 + $0x690] sm:$0xff]
        %v458 = vld [vmem:[%s211 + $0x698] sm:$0xff]
        %v459 = vld [vmem:[%s211 + $0x6a0] sm:$0xff]
        %v460 = vld [vmem:[%s211 + $0x6a8] sm:$0xff]
        %v461 = vld [vmem:[%s211 + $0x6b0] sm:$0xff]
        %v462 = vld [vmem:[%s211 + $0x6b8] sm:$0xff]
        %v463 = vld [vmem:[%s211 + $0x6c0] sm:$0xff]
        %v464 = vld [vmem:[%s211 + $0x6c8] sm:$0xff]
        %v465 = vld [vmem:[%s211 + $0x6d0] sm:$0xff]
        %v466 = vld [vmem:[%s211 + $0x6d8] sm:$0xff]
        %v467 = vld [vmem:[%s211 + $0x6e0] sm:$0xff]
        %v468 = vld [vmem:[%s211 + $0x6e8] sm:$0xff]
        %v469 = vld [vmem:[%s211 + $0x6f0] sm:$0xff]
        %v470 = vld [vmem:[%s211 + $0x6f8] sm:$0xff]
        %v471 = vld [vmem:[%s211 + $0x700] sm:$0xff]
        %v472 = vld [vmem:[%s211 + $0x708] sm:$0xff]
        %v473 = vld [vmem:[%s211 + $0x710] sm:$0xff]
        %v474 = vld [vmem:[%s211 + $0x718] sm:$0xff]
        %v475 = vld [vmem:[%s211 + $0x720] sm:$0xff]
        %v476 = vld [vmem:[%s211 + $0x728] sm:$0xff]
        %v477 = vld [vmem:[%s211 + $0x730] sm:$0xff]
        %v478 = vld [vmem:[%s211 + $0x738] sm:$0xff]
        %v479 = vld [vmem:[%s211 + $0x740] sm:$0xff]
        %v480 = vld [vmem:[%s211 + $0x748] sm:$0xff]
        %v481 = vld [vmem:[%s211 + $0x750] sm:$0xff]
        %v482 = vld [vmem:[%s211 + $0x758] sm:$0xff]
        %v483 = vld [vmem:[%s211 + $0x760] sm:$0xff]
        %v484 = vld [vmem:[%s211 + $0x768] sm:$0xff]
        %v485 = vld [vmem:[%s211 + $0x770] sm:$0xff]
        %v486 = vld [vmem:[%s211 + $0x778] sm:$0xff]
        %v487 = vld [vmem:[%s211 + $0x780] sm:$0xff]
        %v488 = vld [vmem:[%s211 + $0x788] sm:$0xff]
        %v489 = vld [vmem:[%s211 + $0x790] sm:$0xff]
        %v490 = vld [vmem:[%s211 + $0x798] sm:$0xff]
        %v491 = vld [vmem:[%s211 + $0x7a0] sm:$0xff]
        %v492 = vld [vmem:[%s211 + $0x7a8] sm:$0xff]
        %v493 = vld [vmem:[%s211 + $0x7b0] sm:$0xff]
        %v494 = vld [vmem:[%s211 + $0x7b8] sm:$0xff]
        %v495 = vld [vmem:[%s211 + $0x7c0] sm:$0xff]
        %v496 = vld [vmem:[%s211 + $0x7c8] sm:$0xff]
        %v497 = vld [vmem:[%s211 + $0x7d0] sm:$0xff]
        %v498 = vld [vmem:[%s211 + $0x7d8] sm:$0xff]
        %v499 = vld [vmem:[%s211 + $0x7e0] sm:$0xff]
        %v500 = vld [vmem:[%s211 + $0x7e8] sm:$0xff]
        %v501 = vld [vmem:[%s211 + $0x7f0] sm:$0xff]
        %v502 = vld [vmem:[%s211 + $0x7f8] sm:$0xff]
        %v503 = vld [vmem:[%s1] sm:$0xf]
        %v504 = vld [vmem:[%s1 + $0x4] sm:$0xf]
        %v505 = vld [vmem:[%s1 + $0x8] sm:$0xf]
        %v506 = vld [vmem:[%s1 + $0xc] sm:$0xf]
        %v507 = vld [vmem:[%s1 + $0x10] sm:$0xf]
        %v508 = vld [vmem:[%s1 + $0x14] sm:$0xf]
        %v509 = vld [vmem:[%s1 + $0x18] sm:$0xf]
        %v510 = vld [vmem:[%s1 + $0x1c] sm:$0xf]
        %v511 = vld [vmem:[%s1 + $0x20] sm:$0xf]
        %v512 = vld [vmem:[%s1 + $0x24] sm:$0xf]
        %v513 = vld [vmem:[%s1 + $0x28] sm:$0xf]
        %v514 = vld [vmem:[%s1 + $0x2c] sm:$0xf]
        %v515 = vld [vmem:[%s1 + $0x30] sm:$0xf]
        %v516 = vld [vmem:[%s1 + $0x34] sm:$0xf]
        %v517 = vld [vmem:[%s1 + $0x38] sm:$0xf]
        %v518 = vld [vmem:[%s1 + $0x3c] sm:$0xf]
        %v519 = vld [vmem:[%s1 + $0x40] sm:$0xf]
        %v520 = vld [vmem:[%s1 + $0x44] sm:$0xf]
        %v521 = vld [vmem:[%s1 + $0x48] sm:$0xf]
        %v522 = vld [vmem:[%s1 + $0x4c] sm:$0xf]
        %v523 = vld [vmem:[%s1 + $0x50] sm:$0xf]
        %v524 = vld [vmem:[%s1 + $0x54] sm:$0xf]
        %v525 = vld [vmem:[%s1 + $0x58] sm:$0xf]
        %v526 = vld [vmem:[%s1 + $0x5c] sm:$0xf]
        %v527 = vld [vmem:[%s1 + $0x60] sm:$0xf]
        %v528 = vld [vmem:[%s1 + $0x64] sm:$0xf]
        %v529 = vld [vmem:[%s1 + $0x68] sm:$0xf]
        %v530 = vld [vmem:[%s1 + $0x6c] sm:$0xf]
        %v531 = vld [vmem:[%s1 + $0x70] sm:$0xf]
        %v532 = vld [vmem:[%s1 + $0x74] sm:$0xf]
        %v533 = vld [vmem:[%s1 + $0x78] sm:$0xf]
        %v534 = vld [vmem:[%s1 + $0x7c] sm:$0xf]
        %v535 = vld [vmem:[%s1 + $0x80] sm:$0xf]
        %v536 = vld [vmem:[%s1 + $0x84] sm:$0xf]
        %v537 = vld [vmem:[%s1 + $0x88] sm:$0xf]
        %v538 = vld [vmem:[%s1 + $0x8c] sm:$0xf]
        %v539 = vld [vmem:[%s1 + $0x90] sm:$0xf]
        %v540 = vld [vmem:[%s1 + $0x94] sm:$0xf]
        %v541 = vld [vmem:[%s1 + $0x98] sm:$0xf]
        %v542 = vld [vmem:[%s1 + $0x9c] sm:$0xf]
        %v543 = vld [vmem:[%s1 + $0xa0] sm:$0xf]
        %v544 = vld [vmem:[%s1 + $0xa4] sm:$0xf]
        %v545 = vld [vmem:[%s1 + $0xa8] sm:$0xf]
        %v546 = vld [vmem:[%s1 + $0xac] sm:$0xf]
        %v547 = vld [vmem:[%s1 + $0xb0] sm:$0xf]
        %v548 = vld [vmem:[%s1 + $0xb4] sm:$0xf]
        %v549 = vld [vmem:[%s1 + $0xb8] sm:$0xf]
        %v550 = vld [vmem:[%s1 + $0xbc] sm:$0xf]
        %v551 = vld [vmem:[%s1 + $0xc0] sm:$0xf]
        %v552 = vld [vmem:[%s1 + $0xc4] sm:$0xf]
        %v553 = vld [vmem:[%s1 + $0xc8] sm:$0xf]
        %v554 = vld [vmem:[%s1 + $0xcc] sm:$0xf]
        %v555 = vld [vmem:[%s1 + $0xd0] sm:$0xf]
        %v556 = vld [vmem:[%s1 + $0xd4] sm:$0xf]
        %v557 = vld [vmem:[%s1 + $0xd8] sm:$0xf]
        %v558 = vld [vmem:[%s1 + $0xdc] sm:$0xf]
        %v559 = vld [vmem:[%s1 + $0xe0] sm:$0xf]
        %v560 = vld [vmem:[%s1 + $0xe4] sm:$0xf]
        %v561 = vld [vmem:[%s1 + $0xe8] sm:$0xf]
        %v562 = vld [vmem:[%s1 + $0xec] sm:$0xf]
        %v563 = vld [vmem:[%s1 + $0xf0] sm:$0xf]
        %v564 = vld [vmem:[%s1 + $0xf4] sm:$0xf]
        %v565 = vld [vmem:[%s1 + $0xf8] sm:$0xf]
        %v566 = vld [vmem:[%s1 + $0xfc] sm:$0xf]
        %v567 = vld [vmem:[%s1 + $0x100] sm:$0xf]
        %v568 = vld [vmem:[%s1 + $0x104] sm:$0xf]
        %v569 = vld [vmem:[%s1 + $0x108] sm:$0xf]
        %v570 = vld [vmem:[%s1 + $0x10c] sm:$0xf]
        %v571 = vld [vmem:[%s1 + $0x110] sm:$0xf]
        %v572 = vld [vmem:[%s1 + $0x114] sm:$0xf]
        %v573 = vld [vmem:[%s1 + $0x118] sm:$0xf]
        %v574 = vld [vmem:[%s1 + $0x11c] sm:$0xf]
        %v575 = vld [vmem:[%s1 + $0x120] sm:$0xf]
        %v576 = vld [vmem:[%s1 + $0x124] sm:$0xf]
        %v577 = vld [vmem:[%s1 + $0x128] sm:$0xf]
        %v578 = vld [vmem:[%s1 + $0x12c] sm:$0xf]
        %v579 = vld [vmem:[%s1 + $0x130] sm:$0xf]
        %v580 = vld [vmem:[%s1 + $0x134] sm:$0xf]
        %v581 = vld [vmem:[%s1 + $0x138] sm:$0xf]
        %v582 = vld [vmem:[%s1 + $0x13c] sm:$0xf]
        %v583 = vld [vmem:[%s1 + $0x140] sm:$0xf]
        %v584 = vld [vmem:[%s1 + $0x144] sm:$0xf]
        %v585 = vld [vmem:[%s1 + $0x148] sm:$0xf]
        %v586 = vld [vmem:[%s1 + $0x14c] sm:$0xf]
        %v587 = vld [vmem:[%s1 + $0x150] sm:$0xf]
        %v588 = vld [vmem:[%s1 + $0x154] sm:$0xf]
        %v589 = vld [vmem:[%s1 + $0x158] sm:$0xf]
        %v590 = vld [vmem:[%s1 + $0x15c] sm:$0xf]
        %v591 = vld [vmem:[%s1 + $0x160] sm:$0xf]
        %v592 = vld [vmem:[%s1 + $0x164] sm:$0xf]
        %v593 = vld [vmem:[%s1 + $0x168] sm:$0xf]
        %v594 = vld [vmem:[%s1 + $0x16c] sm:$0xf]
        %v595 = vld [vmem:[%s1 + $0x170] sm:$0xf]
        %v596 = vld [vmem:[%s1 + $0x174] sm:$0xf]
        %v597 = vld [vmem:[%s1 + $0x178] sm:$0xf]
        %v598 = vld [vmem:[%s1 + $0x17c] sm:$0xf]
        %v599 = vld [vmem:[%s1 + $0x180] sm:$0xf]
        %v600 = vld [vmem:[%s1 + $0x184] sm:$0xf]
        %v601 = vld [vmem:[%s1 + $0x188] sm:$0xf]
        %v602 = vld [vmem:[%s1 + $0x18c] sm:$0xf]
        %v603 = vld [vmem:[%s1 + $0x190] sm:$0xf]
        %v604 = vld [vmem:[%s1 + $0x194] sm:$0xf]
        %v605 = vld [vmem:[%s1 + $0x198] sm:$0xf]
        %v606 = vld [vmem:[%s1 + $0x19c] sm:$0xf]
        %v607 = vld [vmem:[%s1 + $0x1a0] sm:$0xf]
        %v608 = vld [vmem:[%s1 + $0x1a4] sm:$0xf]
        %v609 = vld [vmem:[%s1 + $0x1a8] sm:$0xf]
        %v610 = vld [vmem:[%s1 + $0x1ac] sm:$0xf]
        %v611 = vld [vmem:[%s1 + $0x1b0] sm:$0xf]
        %v612 = vld [vmem:[%s1 + $0x1b4] sm:$0xf]
        %v613 = vld [vmem:[%s1 + $0x1b8] sm:$0xf]
        %v614 = vld [vmem:[%s1 + $0x1bc] sm:$0xf]
        %v615 = vld [vmem:[%s1 + $0x1c0] sm:$0xf]
        %v616 = vld [vmem:[%s1 + $0x1c4] sm:$0xf]
        %v617 = vld [vmem:[%s1 + $0x1c8] sm:$0xf]
        %v618 = vld [vmem:[%s1 + $0x1cc] sm:$0xf]
        %v619 = vld [vmem:[%s1 + $0x1d0] sm:$0xf]
        %v620 = vld [vmem:[%s1 + $0x1d4] sm:$0xf]
        %v621 = vld [vmem:[%s1 + $0x1d8] sm:$0xf]
        %v622 = vld [vmem:[%s1 + $0x1dc] sm:$0xf]
        %v623 = vld [vmem:[%s1 + $0x1e0] sm:$0xf]
        %v624 = vld [vmem:[%s1 + $0x1e4] sm:$0xf]
        %v625 = vld [vmem:[%s1 + $0x1e8] sm:$0xf]
        %v626 = vld [vmem:[%s1 + $0x1ec] sm:$0xf]
        %v627 = vld [vmem:[%s1 + $0x1f0] sm:$0xf]
        %v628 = vld [vmem:[%s1 + $0x1f4] sm:$0xf]
        %v629 = vld [vmem:[%s1 + $0x1f8] sm:$0xf]
        %v630 = vld [vmem:[%s1 + $0x1fc] sm:$0xf]
        %v887 = vunpack.c.l.b16 %v247
        %v888 = vunpack.c.h.b16 %v247
        %v889 = vunpack.c.l.b16 %v248
        %v890 = vunpack.c.h.b16 %v248
        %v891 = vunpack.c.l.b16 %v249
        %v892 = vunpack.c.h.b16 %v249
        %v893 = vunpack.c.l.b16 %v250
        %v894 = vunpack.c.h.b16 %v250
        %v895 = vunpack.c.l.b16 %v251
        %v896 = vunpack.c.h.b16 %v251
        %v897 = vunpack.c.l.b16 %v252
        %v898 = vunpack.c.h.b16 %v252
        %v899 = vunpack.c.l.b16 %v253
        %v900 = vunpack.c.h.b16 %v253
        %v901 = vunpack.c.l.b16 %v254
        %v902 = vunpack.c.h.b16 %v254
        %v903 = vunpack.c.l.b16 %v255
        %v904 = vunpack.c.h.b16 %v255
        %v905 = vunpack.c.l.b16 %v256
        %v906 = vunpack.c.h.b16 %v256
        %v907 = vunpack.c.l.b16 %v257
        %v908 = vunpack.c.h.b16 %v257
        %v909 = vunpack.c.l.b16 %v258
        %v910 = vunpack.c.h.b16 %v258
        %v911 = vunpack.c.l.b16 %v259
        %v912 = vunpack.c.h.b16 %v259
        %v913 = vunpack.c.l.b16 %v260
        %v914 = vunpack.c.h.b16 %v260
        %v915 = vunpack.c.l.b16 %v261
        %v916 = vunpack.c.h.b16 %v261
        %v917 = vunpack.c.l.b16 %v262
        %v918 = vunpack.c.h.b16 %v262
        %v919 = vunpack.c.l.b16 %v263
        %v920 = vunpack.c.h.b16 %v263
        %v921 = vunpack.c.l.b16 %v264
        %v922 = vunpack.c.h.b16 %v264
        %v923 = vunpack.c.l.b16 %v265
        %v924 = vunpack.c.h.b16 %v265
        %v925 = vunpack.c.l.b16 %v266
        %v926 = vunpack.c.h.b16 %v266
        %v927 = vunpack.c.l.b16 %v267
        %v928 = vunpack.c.h.b16 %v267
        %v929 = vunpack.c.l.b16 %v268
        %v930 = vunpack.c.h.b16 %v268
        %v931 = vunpack.c.l.b16 %v269
        %v932 = vunpack.c.h.b16 %v269
        %v933 = vunpack.c.l.b16 %v270
        %v934 = vunpack.c.h.b16 %v270
        %v935 = vunpack.c.l.b16 %v271
        %v936 = vunpack.c.h.b16 %v271
        %v937 = vunpack.c.l.b16 %v272
        %v938 = vunpack.c.h.b16 %v272
        %v939 = vunpack.c.l.b16 %v273
        %v940 = vunpack.c.h.b16 %v273
        %v941 = vunpack.c.l.b16 %v274
        %v942 = vunpack.c.h.b16 %v274
        %v943 = vunpack.c.l.b16 %v275
        %v944 = vunpack.c.h.b16 %v275
        %v945 = vunpack.c.l.b16 %v276
        %v946 = vunpack.c.h.b16 %v276
        %v947 = vunpack.c.l.b16 %v277
        %v948 = vunpack.c.h.b16 %v277
        %v949 = vunpack.c.l.b16 %v278
        %v950 = vunpack.c.h.b16 %v278
        %v951 = vunpack.c.l.b16 %v279
        %v952 = vunpack.c.h.b16 %v279
        %v953 = vunpack.c.l.b16 %v280
        %v954 = vunpack.c.h.b16 %v280
        %v955 = vunpack.c.l.b16 %v281
        %v956 = vunpack.c.h.b16 %v281
        %v957 = vunpack.c.l.b16 %v282
        %v958 = vunpack.c.h.b16 %v282
        %v959 = vunpack.c.l.b16 %v283
        %v960 = vunpack.c.h.b16 %v283
        %v961 = vunpack.c.l.b16 %v284
        %v962 = vunpack.c.h.b16 %v284
        %v963 = vunpack.c.l.b16 %v285
        %v964 = vunpack.c.h.b16 %v285
        %v965 = vunpack.c.l.b16 %v286
        %v966 = vunpack.c.h.b16 %v286
        %v967 = vunpack.c.l.b16 %v287
        %v968 = vunpack.c.h.b16 %v287
        %v969 = vunpack.c.l.b16 %v288
        %v970 = vunpack.c.h.b16 %v288
        %v971 = vunpack.c.l.b16 %v289
        %v972 = vunpack.c.h.b16 %v289
        %v973 = vunpack.c.l.b16 %v290
        %v974 = vunpack.c.h.b16 %v290
        %v975 = vunpack.c.l.b16 %v291
        %v976 = vunpack.c.h.b16 %v291
        %v977 = vunpack.c.l.b16 %v292
        %v978 = vunpack.c.h.b16 %v292
        %v979 = vunpack.c.l.b16 %v293
        %v980 = vunpack.c.h.b16 %v293
        %v981 = vunpack.c.l.b16 %v294
        %v982 = vunpack.c.h.b16 %v294
        %v983 = vunpack.c.l.b16 %v295
        %v984 = vunpack.c.h.b16 %v295
        %v985 = vunpack.c.l.b16 %v296
        %v986 = vunpack.c.h.b16 %v296
        %v987 = vunpack.c.l.b16 %v297
        %v988 = vunpack.c.h.b16 %v297
        %v989 = vunpack.c.l.b16 %v298
        %v990 = vunpack.c.h.b16 %v298
        %v991 = vunpack.c.l.b16 %v299
        %v992 = vunpack.c.h.b16 %v299
        %v993 = vunpack.c.l.b16 %v300
        %v994 = vunpack.c.h.b16 %v300
        %v995 = vunpack.c.l.b16 %v301
        %v996 = vunpack.c.h.b16 %v301
        %v997 = vunpack.c.l.b16 %v302
        %v998 = vunpack.c.h.b16 %v302
        %v999 = vunpack.c.l.b16 %v303
        %v1000 = vunpack.c.h.b16 %v303
        %v1001 = vunpack.c.l.b16 %v304
        %v1002 = vunpack.c.h.b16 %v304
        %v1003 = vunpack.c.l.b16 %v305
        %v1004 = vunpack.c.h.b16 %v305
        %v1005 = vunpack.c.l.b16 %v306
        %v1006 = vunpack.c.h.b16 %v306
        %v1007 = vunpack.c.l.b16 %v307
        %v1008 = vunpack.c.h.b16 %v307
        %v1009 = vunpack.c.l.b16 %v308
        %v1010 = vunpack.c.h.b16 %v308
        %v1011 = vunpack.c.l.b16 %v309
        %v1012 = vunpack.c.h.b16 %v309
        %v1013 = vunpack.c.l.b16 %v310
        %v1014 = vunpack.c.h.b16 %v310
        %v1015 = vunpack.c.l.b16 %v311
        %v1016 = vunpack.c.h.b16 %v311
        %v1017 = vunpack.c.l.b16 %v312
        %v1018 = vunpack.c.h.b16 %v312
        %v1019 = vunpack.c.l.b16 %v313
        %v1020 = vunpack.c.h.b16 %v313
        %v1021 = vunpack.c.l.b16 %v314
        %v1022 = vunpack.c.h.b16 %v314
        %v1023 = vunpack.c.l.b16 %v315
        %v1024 = vunpack.c.h.b16 %v315
        %v1025 = vunpack.c.l.b16 %v316
        %v1026 = vunpack.c.h.b16 %v316
        %v1027 = vunpack.c.l.b16 %v317
        %v1028 = vunpack.c.h.b16 %v317
        %v1029 = vunpack.c.l.b16 %v318
        %v1030 = vunpack.c.h.b16 %v318
        %v1031 = vunpack.c.l.b16 %v319
        %v1032 = vunpack.c.h.b16 %v319
        %v1033 = vunpack.c.l.b16 %v320
        %v1034 = vunpack.c.h.b16 %v320
        %v1035 = vunpack.c.l.b16 %v321
        %v1036 = vunpack.c.h.b16 %v321
        %v1037 = vunpack.c.l.b16 %v322
        %v1038 = vunpack.c.h.b16 %v322
        %v1039 = vunpack.c.l.b16 %v323
        %v1040 = vunpack.c.h.b16 %v323
        %v1041 = vunpack.c.l.b16 %v324
        %v1042 = vunpack.c.h.b16 %v324
        %v1043 = vunpack.c.l.b16 %v325
        %v1044 = vunpack.c.h.b16 %v325
        %v1045 = vunpack.c.l.b16 %v326
        %v1046 = vunpack.c.h.b16 %v326
        %v1047 = vunpack.c.l.b16 %v327
        %v1048 = vunpack.c.h.b16 %v327
        %v1049 = vunpack.c.l.b16 %v328
        %v1050 = vunpack.c.h.b16 %v328
        %v1051 = vunpack.c.l.b16 %v329
        %v1052 = vunpack.c.h.b16 %v329
        %v1053 = vunpack.c.l.b16 %v330
        %v1054 = vunpack.c.h.b16 %v330
        %v1055 = vunpack.c.l.b16 %v331
        %v1056 = vunpack.c.h.b16 %v331
        %v1057 = vunpack.c.l.b16 %v332
        %v1058 = vunpack.c.h.b16 %v332
        %v1059 = vunpack.c.l.b16 %v333
        %v1060 = vunpack.c.h.b16 %v333
        %v1061 = vunpack.c.l.b16 %v334
        %v1062 = vunpack.c.h.b16 %v334
        %v1063 = vunpack.c.l.b16 %v335
        %v1064 = vunpack.c.h.b16 %v335
        %v1065 = vunpack.c.l.b16 %v336
        %v1066 = vunpack.c.h.b16 %v336
        %v1067 = vunpack.c.l.b16 %v337
        %v1068 = vunpack.c.h.b16 %v337
        %v1069 = vunpack.c.l.b16 %v338
        %v1070 = vunpack.c.h.b16 %v338
        %v1071 = vunpack.c.l.b16 %v339
        %v1072 = vunpack.c.h.b16 %v339
        %v1073 = vunpack.c.l.b16 %v340
        %v1074 = vunpack.c.h.b16 %v340
        %v1075 = vunpack.c.l.b16 %v341
        %v1076 = vunpack.c.h.b16 %v341
        %v1077 = vunpack.c.l.b16 %v342
        %v1078 = vunpack.c.h.b16 %v342
        %v1079 = vunpack.c.l.b16 %v343
        %v1080 = vunpack.c.h.b16 %v343
        %v1081 = vunpack.c.l.b16 %v344
        %v1082 = vunpack.c.h.b16 %v344
        %v1083 = vunpack.c.l.b16 %v345
        %v1084 = vunpack.c.h.b16 %v345
        %v1085 = vunpack.c.l.b16 %v346
        %v1086 = vunpack.c.h.b16 %v346
        %v1087 = vunpack.c.l.b16 %v347
        %v1088 = vunpack.c.h.b16 %v347
        %v1089 = vunpack.c.l.b16 %v348
        %v1090 = vunpack.c.h.b16 %v348
        %v1091 = vunpack.c.l.b16 %v349
        %v1092 = vunpack.c.h.b16 %v349
        %v1093 = vunpack.c.l.b16 %v350
        %v1094 = vunpack.c.h.b16 %v350
        %v1095 = vunpack.c.l.b16 %v351
        %v1096 = vunpack.c.h.b16 %v351
        %v1097 = vunpack.c.l.b16 %v352
        %v1098 = vunpack.c.h.b16 %v352
        %v1099 = vunpack.c.l.b16 %v353
        %v1100 = vunpack.c.h.b16 %v353
        %v1101 = vunpack.c.l.b16 %v354
        %v1102 = vunpack.c.h.b16 %v354
        %v1103 = vunpack.c.l.b16 %v355
        %v1104 = vunpack.c.h.b16 %v355
        %v1105 = vunpack.c.l.b16 %v356
        %v1106 = vunpack.c.h.b16 %v356
        %v1107 = vunpack.c.l.b16 %v357
        %v1108 = vunpack.c.h.b16 %v357
        %v1109 = vunpack.c.l.b16 %v358
        %v1110 = vunpack.c.h.b16 %v358
        %v1111 = vunpack.c.l.b16 %v359
        %v1112 = vunpack.c.h.b16 %v359
        %v1113 = vunpack.c.l.b16 %v360
        %v1114 = vunpack.c.h.b16 %v360
        %v1115 = vunpack.c.l.b16 %v361
        %v1116 = vunpack.c.h.b16 %v361
        %v1117 = vunpack.c.l.b16 %v362
        %v1118 = vunpack.c.h.b16 %v362
        %v1119 = vunpack.c.l.b16 %v363
        %v1120 = vunpack.c.h.b16 %v363
        %v1121 = vunpack.c.l.b16 %v364
        %v1122 = vunpack.c.h.b16 %v364
        %v1123 = vunpack.c.l.b16 %v365
        %v1124 = vunpack.c.h.b16 %v365
        %v1125 = vunpack.c.l.b16 %v366
        %v1126 = vunpack.c.h.b16 %v366
        %v1127 = vunpack.c.l.b16 %v367
        %v1128 = vunpack.c.h.b16 %v367
        %v1129 = vunpack.c.l.b16 %v368
        %v1130 = vunpack.c.h.b16 %v368
        %v1131 = vunpack.c.l.b16 %v369
        %v1132 = vunpack.c.h.b16 %v369
        %v1133 = vunpack.c.l.b16 %v370
        %v1134 = vunpack.c.h.b16 %v370
        %v1135 = vunpack.c.l.b16 %v371
        %v1136 = vunpack.c.h.b16 %v371
        %v1137 = vunpack.c.l.b16 %v372
        %v1138 = vunpack.c.h.b16 %v372
        %v1139 = vunpack.c.l.b16 %v373
        %v1140 = vunpack.c.h.b16 %v373
        %v1141 = vunpack.c.l.b16 %v374
        %v1142 = vunpack.c.h.b16 %v374
        %v1143 = vunpack.c.l.b16 %v375
        %v1144 = vunpack.c.h.b16 %v375
        %v1145 = vunpack.c.l.b16 %v376
        %v1146 = vunpack.c.h.b16 %v376
        %v1147 = vunpack.c.l.b16 %v377
        %v1148 = vunpack.c.h.b16 %v377
        %v1149 = vunpack.c.l.b16 %v378
        %v1150 = vunpack.c.h.b16 %v378
        %v1151 = vunpack.c.l.b16 %v379
        %v1152 = vunpack.c.h.b16 %v379
        %v1153 = vunpack.c.l.b16 %v380
        %v1154 = vunpack.c.h.b16 %v380
        %v1155 = vunpack.c.l.b16 %v381
        %v1156 = vunpack.c.h.b16 %v381
        %v1157 = vunpack.c.l.b16 %v382
        %v1158 = vunpack.c.h.b16 %v382
        %v1159 = vunpack.c.l.b16 %v383
        %v1160 = vunpack.c.h.b16 %v383
        %v1161 = vunpack.c.l.b16 %v384
        %v1162 = vunpack.c.h.b16 %v384
        %v1163 = vunpack.c.l.b16 %v385
        %v1164 = vunpack.c.h.b16 %v385
        %v1165 = vunpack.c.l.b16 %v386
        %v1166 = vunpack.c.h.b16 %v386
        %v1167 = vunpack.c.l.b16 %v387
        %v1168 = vunpack.c.h.b16 %v387
        %v1169 = vunpack.c.l.b16 %v388
        %v1170 = vunpack.c.h.b16 %v388
        %v1171 = vunpack.c.l.b16 %v389
        %v1172 = vunpack.c.h.b16 %v389
        %v1173 = vunpack.c.l.b16 %v390
        %v1174 = vunpack.c.h.b16 %v390
        %v1175 = vunpack.c.l.b16 %v391
        %v1176 = vunpack.c.h.b16 %v391
        %v1177 = vunpack.c.l.b16 %v392
        %v1178 = vunpack.c.h.b16 %v392
        %v1179 = vunpack.c.l.b16 %v393
        %v1180 = vunpack.c.h.b16 %v393
        %v1181 = vunpack.c.l.b16 %v394
        %v1182 = vunpack.c.h.b16 %v394
        %v1183 = vunpack.c.l.b16 %v395
        %v1184 = vunpack.c.h.b16 %v395
        %v1185 = vunpack.c.l.b16 %v396
        %v1186 = vunpack.c.h.b16 %v396
        %v1187 = vunpack.c.l.b16 %v397
        %v1188 = vunpack.c.h.b16 %v397
        %v1189 = vunpack.c.l.b16 %v398
        %v1190 = vunpack.c.h.b16 %v398
        %v1191 = vunpack.c.l.b16 %v399
        %v1192 = vunpack.c.h.b16 %v399
        %v1193 = vunpack.c.l.b16 %v400
        %v1194 = vunpack.c.h.b16 %v400
        %v1195 = vunpack.c.l.b16 %v401
        %v1196 = vunpack.c.h.b16 %v401
        %v1197 = vunpack.c.l.b16 %v402
        %v1198 = vunpack.c.h.b16 %v402
        %v1199 = vunpack.c.l.b16 %v403
        %v1200 = vunpack.c.h.b16 %v403
        %v1201 = vunpack.c.l.b16 %v404
        %v1202 = vunpack.c.h.b16 %v404
        %v1203 = vunpack.c.l.b16 %v405
        %v1204 = vunpack.c.h.b16 %v405
        %v1205 = vunpack.c.l.b16 %v406
        %v1206 = vunpack.c.h.b16 %v406
        %v1207 = vunpack.c.l.b16 %v407
        %v1208 = vunpack.c.h.b16 %v407
        %v1209 = vunpack.c.l.b16 %v408
        %v1210 = vunpack.c.h.b16 %v408
        %v1211 = vunpack.c.l.b16 %v409
        %v1212 = vunpack.c.h.b16 %v409
        %v1213 = vunpack.c.l.b16 %v410
        %v1214 = vunpack.c.h.b16 %v410
        %v1215 = vunpack.c.l.b16 %v411
        %v1216 = vunpack.c.h.b16 %v411
        %v1217 = vunpack.c.l.b16 %v412
        %v1218 = vunpack.c.h.b16 %v412
        %v1219 = vunpack.c.l.b16 %v413
        %v1220 = vunpack.c.h.b16 %v413
        %v1221 = vunpack.c.l.b16 %v414
        %v1222 = vunpack.c.h.b16 %v414
        %v1223 = vunpack.c.l.b16 %v415
        %v1224 = vunpack.c.h.b16 %v415
        %v1225 = vunpack.c.l.b16 %v416
        %v1226 = vunpack.c.h.b16 %v416
        %v1227 = vunpack.c.l.b16 %v417
        %v1228 = vunpack.c.h.b16 %v417
        %v1229 = vunpack.c.l.b16 %v418
        %v1230 = vunpack.c.h.b16 %v418
        %v1231 = vunpack.c.l.b16 %v419
        %v1232 = vunpack.c.h.b16 %v419
        %v1233 = vunpack.c.l.b16 %v420
        %v1234 = vunpack.c.h.b16 %v420
        %v1235 = vunpack.c.l.b16 %v421
        %v1236 = vunpack.c.h.b16 %v421
        %v1237 = vunpack.c.l.b16 %v422
        %v1238 = vunpack.c.h.b16 %v422
        %v1239 = vunpack.c.l.b16 %v423
        %v1240 = vunpack.c.h.b16 %v423
        %v1241 = vunpack.c.l.b16 %v424
        %v1242 = vunpack.c.h.b16 %v424
        %v1243 = vunpack.c.l.b16 %v425
        %v1244 = vunpack.c.h.b16 %v425
        %v1245 = vunpack.c.l.b16 %v426
        %v1246 = vunpack.c.h.b16 %v426
        %v1247 = vunpack.c.l.b16 %v427
        %v1248 = vunpack.c.h.b16 %v427
        %v1249 = vunpack.c.l.b16 %v428
        %v1250 = vunpack.c.h.b16 %v428
        %v1251 = vunpack.c.l.b16 %v429
        %v1252 = vunpack.c.h.b16 %v429
        %v1253 = vunpack.c.l.b16 %v430
        %v1254 = vunpack.c.h.b16 %v430
        %v1255 = vunpack.c.l.b16 %v431
        %v1256 = vunpack.c.h.b16 %v431
        %v1257 = vunpack.c.l.b16 %v432
        %v1258 = vunpack.c.h.b16 %v432
        %v1259 = vunpack.c.l.b16 %v433
        %v1260 = vunpack.c.h.b16 %v433
        %v1261 = vunpack.c.l.b16 %v434
        %v1262 = vunpack.c.h.b16 %v434
        %v1263 = vunpack.c.l.b16 %v435
        %v1264 = vunpack.c.h.b16 %v435
        %v1265 = vunpack.c.l.b16 %v436
        %v1266 = vunpack.c.h.b16 %v436
        %v1267 = vunpack.c.l.b16 %v437
        %v1268 = vunpack.c.h.b16 %v437
        %v1269 = vunpack.c.l.b16 %v438
        %v1270 = vunpack.c.h.b16 %v438
        %v1271 = vunpack.c.l.b16 %v439
        %v1272 = vunpack.c.h.b16 %v439
        %v1273 = vunpack.c.l.b16 %v440
        %v1274 = vunpack.c.h.b16 %v440
        %v1275 = vunpack.c.l.b16 %v441
        %v1276 = vunpack.c.h.b16 %v441
        %v1277 = vunpack.c.l.b16 %v442
        %v1278 = vunpack.c.h.b16 %v442
        %v1279 = vunpack.c.l.b16 %v443
        %v1280 = vunpack.c.h.b16 %v443
        %v1281 = vunpack.c.l.b16 %v444
        %v1282 = vunpack.c.h.b16 %v444
        %v1283 = vunpack.c.l.b16 %v445
        %v1284 = vunpack.c.h.b16 %v445
        %v1285 = vunpack.c.l.b16 %v446
        %v1286 = vunpack.c.h.b16 %v446
        %v1287 = vunpack.c.l.b16 %v447
        %v1288 = vunpack.c.h.b16 %v447
        %v1289 = vunpack.c.l.b16 %v448
        %v1290 = vunpack.c.h.b16 %v448
        %v1291 = vunpack.c.l.b16 %v449
        %v1292 = vunpack.c.h.b16 %v449
        %v1293 = vunpack.c.l.b16 %v450
        %v1294 = vunpack.c.h.b16 %v450
        %v1295 = vunpack.c.l.b16 %v451
        %v1296 = vunpack.c.h.b16 %v451
        %v1297 = vunpack.c.l.b16 %v452
        %v1298 = vunpack.c.h.b16 %v452
        %v1299 = vunpack.c.l.b16 %v453
        %v1300 = vunpack.c.h.b16 %v453
        %v1301 = vunpack.c.l.b16 %v454
        %v1302 = vunpack.c.h.b16 %v454
        %v1303 = vunpack.c.l.b16 %v455
        %v1304 = vunpack.c.h.b16 %v455
        %v1305 = vunpack.c.l.b16 %v456
        %v1306 = vunpack.c.h.b16 %v456
        %v1307 = vunpack.c.l.b16 %v457
        %v1308 = vunpack.c.h.b16 %v457
        %v1309 = vunpack.c.l.b16 %v458
        %v1310 = vunpack.c.h.b16 %v458
        %v1311 = vunpack.c.l.b16 %v459
        %v1312 = vunpack.c.h.b16 %v459
        %v1313 = vunpack.c.l.b16 %v460
        %v1314 = vunpack.c.h.b16 %v460
        %v1315 = vunpack.c.l.b16 %v461
        %v1316 = vunpack.c.h.b16 %v461
        %v1317 = vunpack.c.l.b16 %v462
        %v1318 = vunpack.c.h.b16 %v462
        %v1319 = vunpack.c.l.b16 %v463
        %v1320 = vunpack.c.h.b16 %v463
        %v1321 = vunpack.c.l.b16 %v464
        %v1322 = vunpack.c.h.b16 %v464
        %v1323 = vunpack.c.l.b16 %v465
        %v1324 = vunpack.c.h.b16 %v465
        %v1325 = vunpack.c.l.b16 %v466
        %v1326 = vunpack.c.h.b16 %v466
        %v1327 = vunpack.c.l.b16 %v467
        %v1328 = vunpack.c.h.b16 %v467
        %v1329 = vunpack.c.l.b16 %v468
        %v1330 = vunpack.c.h.b16 %v468
        %v1331 = vunpack.c.l.b16 %v469
        %v1332 = vunpack.c.h.b16 %v469
        %v1333 = vunpack.c.l.b16 %v470
        %v1334 = vunpack.c.h.b16 %v470
        %v1335 = vunpack.c.l.b16 %v471
        %v1336 = vunpack.c.h.b16 %v471
        %v1337 = vunpack.c.l.b16 %v472
        %v1338 = vunpack.c.h.b16 %v472
        %v1339 = vunpack.c.l.b16 %v473
        %v1340 = vunpack.c.h.b16 %v473
        %v1341 = vunpack.c.l.b16 %v474
        %v1342 = vunpack.c.h.b16 %v474
        %v1343 = vunpack.c.l.b16 %v475
        %v1344 = vunpack.c.h.b16 %v475
        %v1345 = vunpack.c.l.b16 %v476
        %v1346 = vunpack.c.h.b16 %v476
        %v1347 = vunpack.c.l.b16 %v477
        %v1348 = vunpack.c.h.b16 %v477
        %v1349 = vunpack.c.l.b16 %v478
        %v1350 = vunpack.c.h.b16 %v478
        %v1351 = vunpack.c.l.b16 %v479
        %v1352 = vunpack.c.h.b16 %v479
        %v1353 = vunpack.c.l.b16 %v480
        %v1354 = vunpack.c.h.b16 %v480
        %v1355 = vunpack.c.l.b16 %v481
        %v1356 = vunpack.c.h.b16 %v481
        %v1357 = vunpack.c.l.b16 %v482
        %v1358 = vunpack.c.h.b16 %v482
        %v1359 = vunpack.c.l.b16 %v483
        %v1360 = vunpack.c.h.b16 %v483
        %v1361 = vunpack.c.l.b16 %v484
        %v1362 = vunpack.c.h.b16 %v484
        %v1363 = vunpack.c.l.b16 %v485
        %v1364 = vunpack.c.h.b16 %v485
        %v1365 = vunpack.c.l.b16 %v486
        %v1366 = vunpack.c.h.b16 %v486
        %v1367 = vunpack.c.l.b16 %v487
        %v1368 = vunpack.c.h.b16 %v487
        %v1369 = vunpack.c.l.b16 %v488
        %v1370 = vunpack.c.h.b16 %v488
        %v1371 = vunpack.c.l.b16 %v489
        %v1372 = vunpack.c.h.b16 %v489
        %v1373 = vunpack.c.l.b16 %v490
        %v1374 = vunpack.c.h.b16 %v490
        %v1375 = vunpack.c.l.b16 %v491
        %v1376 = vunpack.c.h.b16 %v491
        %v1377 = vunpack.c.l.b16 %v492
        %v1378 = vunpack.c.h.b16 %v492
        %v1379 = vunpack.c.l.b16 %v493
        %v1380 = vunpack.c.h.b16 %v493
        %v1381 = vunpack.c.l.b16 %v494
        %v1382 = vunpack.c.h.b16 %v494
        %v1383 = vunpack.c.l.b16 %v495
        %v1384 = vunpack.c.h.b16 %v495
        %v1385 = vunpack.c.l.b16 %v496
        %v1386 = vunpack.c.h.b16 %v496
        %v1387 = vunpack.c.l.b16 %v497
        %v1388 = vunpack.c.h.b16 %v497
        %v1389 = vunpack.c.l.b16 %v498
        %v1390 = vunpack.c.h.b16 %v498
        %v1391 = vunpack.c.l.b16 %v499
        %v1392 = vunpack.c.h.b16 %v499
        %v1393 = vunpack.c.l.b16 %v500
        %v1394 = vunpack.c.h.b16 %v500
        %v1395 = vunpack.c.l.b16 %v501
        %v1396 = vunpack.c.h.b16 %v501
        %v1397 = vunpack.c.l.b16 %v502
        %v1398 = vunpack.c.h.b16 %v502
        %v1399 = vpack.c.b16 %v895, %v887
        %v1400 = vpack.c.b16 %v896, %v888
        %v1401 = vpack.c.b16 %v897, %v889
        %v1402 = vpack.c.b16 %v898, %v890
        %v1403 = vpack.c.b16 %v899, %v891
        %v1404 = vpack.c.b16 %v900, %v892
        %v1405 = vpack.c.b16 %v901, %v893
        %v1406 = vpack.c.b16 %v902, %v894
        %v1407 = vpack.c.b16 %v911, %v903
        %v1408 = vpack.c.b16 %v912, %v904
        %v1409 = vpack.c.b16 %v913, %v905
        %v1410 = vpack.c.b16 %v914, %v906
        %v1411 = vpack.c.b16 %v915, %v907
        %v1412 = vpack.c.b16 %v916, %v908
        %v1413 = vpack.c.b16 %v917, %v909
        %v1414 = vpack.c.b16 %v918, %v910
        %v1415 = vpack.c.b16 %v927, %v919
        %v1416 = vpack.c.b16 %v928, %v920
        %v1417 = vpack.c.b16 %v929, %v921
        %v1418 = vpack.c.b16 %v930, %v922
        %v1419 = vpack.c.b16 %v931, %v923
        %v1420 = vpack.c.b16 %v932, %v924
        %v1421 = vpack.c.b16 %v933, %v925
        %v1422 = vpack.c.b16 %v934, %v926
        %v1423 = vpack.c.b16 %v943, %v935
        %v1424 = vpack.c.b16 %v944, %v936
        %v1425 = vpack.c.b16 %v945, %v937
        %v1426 = vpack.c.b16 %v946, %v938
        %v1427 = vpack.c.b16 %v947, %v939
        %v1428 = vpack.c.b16 %v948, %v940
        %v1429 = vpack.c.b16 %v949, %v941
        %v1430 = vpack.c.b16 %v950, %v942
        %v1431 = vpack.c.b16 %v959, %v951
        %v1432 = vpack.c.b16 %v960, %v952
        %v1433 = vpack.c.b16 %v961, %v953
        %v1434 = vpack.c.b16 %v962, %v954
        %v1435 = vpack.c.b16 %v963, %v955
        %v1436 = vpack.c.b16 %v964, %v956
        %v1437 = vpack.c.b16 %v965, %v957
        %v1438 = vpack.c.b16 %v966, %v958
        %v1439 = vpack.c.b16 %v975, %v967
        %v1440 = vpack.c.b16 %v976, %v968
        %v1441 = vpack.c.b16 %v977, %v969
        %v1442 = vpack.c.b16 %v978, %v970
        %v1443 = vpack.c.b16 %v979, %v971
        %v1444 = vpack.c.b16 %v980, %v972
        %v1445 = vpack.c.b16 %v981, %v973
        %v1446 = vpack.c.b16 %v982, %v974
        %v1447 = vpack.c.b16 %v991, %v983
        %v1448 = vpack.c.b16 %v992, %v984
        %v1449 = vpack.c.b16 %v993, %v985
        %v1450 = vpack.c.b16 %v994, %v986
        %v1451 = vpack.c.b16 %v995, %v987
        %v1452 = vpack.c.b16 %v996, %v988
        %v1453 = vpack.c.b16 %v997, %v989
        %v1454 = vpack.c.b16 %v998, %v990
        %v1455 = vpack.c.b16 %v1007, %v999
        %v1456 = vpack.c.b16 %v1008, %v1000
        %v1457 = vpack.c.b16 %v1009, %v1001
        %v1458 = vpack.c.b16 %v1010, %v1002
        %v1459 = vpack.c.b16 %v1011, %v1003
        %v1460 = vpack.c.b16 %v1012, %v1004
        %v1461 = vpack.c.b16 %v1013, %v1005
        %v1462 = vpack.c.b16 %v1014, %v1006
        %v1463 = vpack.c.b16 %v1023, %v1015
        %v1464 = vpack.c.b16 %v1024, %v1016
        %v1465 = vpack.c.b16 %v1025, %v1017
        %v1466 = vpack.c.b16 %v1026, %v1018
        %v1467 = vpack.c.b16 %v1027, %v1019
        %v1468 = vpack.c.b16 %v1028, %v1020
        %v1469 = vpack.c.b16 %v1029, %v1021
        %v1470 = vpack.c.b16 %v1030, %v1022
        %v1471 = vpack.c.b16 %v1039, %v1031
        %v1472 = vpack.c.b16 %v1040, %v1032
        %v1473 = vpack.c.b16 %v1041, %v1033
        %v1474 = vpack.c.b16 %v1042, %v1034
        %v1475 = vpack.c.b16 %v1043, %v1035
        %v1476 = vpack.c.b16 %v1044, %v1036
        %v1477 = vpack.c.b16 %v1045, %v1037
        %v1478 = vpack.c.b16 %v1046, %v1038
        %v1479 = vpack.c.b16 %v1055, %v1047
        %v1480 = vpack.c.b16 %v1056, %v1048
        %v1481 = vpack.c.b16 %v1057, %v1049
        %v1482 = vpack.c.b16 %v1058, %v1050
        %v1483 = vpack.c.b16 %v1059, %v1051
        %v1484 = vpack.c.b16 %v1060, %v1052
        %v1485 = vpack.c.b16 %v1061, %v1053
        %v1486 = vpack.c.b16 %v1062, %v1054
        %v1487 = vpack.c.b16 %v1071, %v1063
        %v1488 = vpack.c.b16 %v1072, %v1064
        %v1489 = vpack.c.b16 %v1073, %v1065
        %v1490 = vpack.c.b16 %v1074, %v1066
        %v1491 = vpack.c.b16 %v1075, %v1067
        %v1492 = vpack.c.b16 %v1076, %v1068
        %v1493 = vpack.c.b16 %v1077, %v1069
        %v1494 = vpack.c.b16 %v1078, %v1070
        %v1495 = vpack.c.b16 %v1087, %v1079
        %v1496 = vpack.c.b16 %v1088, %v1080
        %v1497 = vpack.c.b16 %v1089, %v1081
        %v1498 = vpack.c.b16 %v1090, %v1082
        %v1499 = vpack.c.b16 %v1091, %v1083
        %v1500 = vpack.c.b16 %v1092, %v1084
        %v1501 = vpack.c.b16 %v1093, %v1085
        %v1502 = vpack.c.b16 %v1094, %v1086
        %v1503 = vpack.c.b16 %v1103, %v1095
        %v1504 = vpack.c.b16 %v1104, %v1096
        %v1505 = vpack.c.b16 %v1105, %v1097
        %v1506 = vpack.c.b16 %v1106, %v1098
        %v1507 = vpack.c.b16 %v1107, %v1099
        %v1508 = vpack.c.b16 %v1108, %v1100
        %v1509 = vpack.c.b16 %v1109, %v1101
        %v1510 = vpack.c.b16 %v1110, %v1102
        %v1511 = vpack.c.b16 %v1119, %v1111
        %v1512 = vpack.c.b16 %v1120, %v1112
        %v1513 = vpack.c.b16 %v1121, %v1113
        %v1514 = vpack.c.b16 %v1122, %v1114
        %v1515 = vpack.c.b16 %v1123, %v1115
        %v1516 = vpack.c.b16 %v1124, %v1116
        %v1517 = vpack.c.b16 %v1125, %v1117
        %v1518 = vpack.c.b16 %v1126, %v1118
        %v1519 = vpack.c.b16 %v1135, %v1127
        %v1520 = vpack.c.b16 %v1136, %v1128
        %v1521 = vpack.c.b16 %v1137, %v1129
        %v1522 = vpack.c.b16 %v1138, %v1130
        %v1523 = vpack.c.b16 %v1139, %v1131
        %v1524 = vpack.c.b16 %v1140, %v1132
        %v1525 = vpack.c.b16 %v1141, %v1133
        %v1526 = vpack.c.b16 %v1142, %v1134
        %v1527 = vpack.c.b16 %v1151, %v1143
        %v1528 = vpack.c.b16 %v1152, %v1144
        %v1529 = vpack.c.b16 %v1153, %v1145
        %v1530 = vpack.c.b16 %v1154, %v1146
        %v1531 = vpack.c.b16 %v1155, %v1147
        %v1532 = vpack.c.b16 %v1156, %v1148
        %v1533 = vpack.c.b16 %v1157, %v1149
        %v1534 = vpack.c.b16 %v1158, %v1150
        %v1535 = vpack.c.b16 %v1167, %v1159
        %v1536 = vpack.c.b16 %v1168, %v1160
        %v1537 = vpack.c.b16 %v1169, %v1161
        %v1538 = vpack.c.b16 %v1170, %v1162
        %v1539 = vpack.c.b16 %v1171, %v1163
        %v1540 = vpack.c.b16 %v1172, %v1164
        %v1541 = vpack.c.b16 %v1173, %v1165
        %v1542 = vpack.c.b16 %v1174, %v1166
        %v1543 = vpack.c.b16 %v1183, %v1175
        %v1544 = vpack.c.b16 %v1184, %v1176
        %v1545 = vpack.c.b16 %v1185, %v1177
        %v1546 = vpack.c.b16 %v1186, %v1178
        %v1547 = vpack.c.b16 %v1187, %v1179
        %v1548 = vpack.c.b16 %v1188, %v1180
        %v1549 = vpack.c.b16 %v1189, %v1181
        %v1550 = vpack.c.b16 %v1190, %v1182
        %v1551 = vpack.c.b16 %v1199, %v1191
        %v1552 = vpack.c.b16 %v1200, %v1192
        %v1553 = vpack.c.b16 %v1201, %v1193
        %v1554 = vpack.c.b16 %v1202, %v1194
        %v1555 = vpack.c.b16 %v1203, %v1195
        %v1556 = vpack.c.b16 %v1204, %v1196
        %v1557 = vpack.c.b16 %v1205, %v1197
        %v1558 = vpack.c.b16 %v1206, %v1198
        %v1559 = vpack.c.b16 %v1215, %v1207
        %v1560 = vpack.c.b16 %v1216, %v1208
        %v1561 = vpack.c.b16 %v1217, %v1209
        %v1562 = vpack.c.b16 %v1218, %v1210
        %v1563 = vpack.c.b16 %v1219, %v1211
        %v1564 = vpack.c.b16 %v1220, %v1212
        %v1565 = vpack.c.b16 %v1221, %v1213
        %v1566 = vpack.c.b16 %v1222, %v1214
        %v1567 = vpack.c.b16 %v1231, %v1223
        %v1568 = vpack.c.b16 %v1232, %v1224
        %v1569 = vpack.c.b16 %v1233, %v1225
        %v1570 = vpack.c.b16 %v1234, %v1226
        %v1571 = vpack.c.b16 %v1235, %v1227
        %v1572 = vpack.c.b16 %v1236, %v1228
        %v1573 = vpack.c.b16 %v1237, %v1229
        %v1574 = vpack.c.b16 %v1238, %v1230
        %v1575 = vpack.c.b16 %v1247, %v1239
        %v1576 = vpack.c.b16 %v1248, %v1240
        %v1577 = vpack.c.b16 %v1249, %v1241
        %v1578 = vpack.c.b16 %v1250, %v1242
        %v1579 = vpack.c.b16 %v1251, %v1243
        %v1580 = vpack.c.b16 %v1252, %v1244
        %v1581 = vpack.c.b16 %v1253, %v1245
        %v1582 = vpack.c.b16 %v1254, %v1246
        %v1583 = vpack.c.b16 %v1263, %v1255
        %v1584 = vpack.c.b16 %v1264, %v1256
        %v1585 = vpack.c.b16 %v1265, %v1257
        %v1586 = vpack.c.b16 %v1266, %v1258
        %v1587 = vpack.c.b16 %v1267, %v1259
        %v1588 = vpack.c.b16 %v1268, %v1260
        %v1589 = vpack.c.b16 %v1269, %v1261
        %v1590 = vpack.c.b16 %v1270, %v1262
        %v1591 = vpack.c.b16 %v1279, %v1271
        %v1592 = vpack.c.b16 %v1280, %v1272
        %v1593 = vpack.c.b16 %v1281, %v1273
        %v1594 = vpack.c.b16 %v1282, %v1274
        %v1595 = vpack.c.b16 %v1283, %v1275
        %v1596 = vpack.c.b16 %v1284, %v1276
        %v1597 = vpack.c.b16 %v1285, %v1277
        %v1598 = vpack.c.b16 %v1286, %v1278
        %v1599 = vpack.c.b16 %v1295, %v1287
        %v1600 = vpack.c.b16 %v1296, %v1288
        %v1601 = vpack.c.b16 %v1297, %v1289
        %v1602 = vpack.c.b16 %v1298, %v1290
        %v1603 = vpack.c.b16 %v1299, %v1291
        %v1604 = vpack.c.b16 %v1300, %v1292
        %v1605 = vpack.c.b16 %v1301, %v1293
        %v1606 = vpack.c.b16 %v1302, %v1294
        %v1607 = vpack.c.b16 %v1311, %v1303
        %v1608 = vpack.c.b16 %v1312, %v1304
        %v1609 = vpack.c.b16 %v1313, %v1305
        %v1610 = vpack.c.b16 %v1314, %v1306
        %v1611 = vpack.c.b16 %v1315, %v1307
        %v1612 = vpack.c.b16 %v1316, %v1308
        %v1613 = vpack.c.b16 %v1317, %v1309
        %v1614 = vpack.c.b16 %v1318, %v1310
        %v1615 = vpack.c.b16 %v1327, %v1319
        %v1616 = vpack.c.b16 %v1328, %v1320
        %v1617 = vpack.c.b16 %v1329, %v1321
        %v1618 = vpack.c.b16 %v1330, %v1322
        %v1619 = vpack.c.b16 %v1331, %v1323
        %v1620 = vpack.c.b16 %v1332, %v1324
        %v1621 = vpack.c.b16 %v1333, %v1325
        %v1622 = vpack.c.b16 %v1334, %v1326
        %v1623 = vpack.c.b16 %v1343, %v1335
        %v1624 = vpack.c.b16 %v1344, %v1336
        %v1625 = vpack.c.b16 %v1345, %v1337
        %v1626 = vpack.c.b16 %v1346, %v1338
        %v1627 = vpack.c.b16 %v1347, %v1339
        %v1628 = vpack.c.b16 %v1348, %v1340
        %v1629 = vpack.c.b16 %v1349, %v1341
        %v1630 = vpack.c.b16 %v1350, %v1342
        %v1631 = vpack.c.b16 %v1359, %v1351
        %v1632 = vpack.c.b16 %v1360, %v1352
        %v1633 = vpack.c.b16 %v1361, %v1353
        %v1634 = vpack.c.b16 %v1362, %v1354
        %v1635 = vpack.c.b16 %v1363, %v1355
        %v1636 = vpack.c.b16 %v1364, %v1356
        %v1637 = vpack.c.b16 %v1365, %v1357
        %v1638 = vpack.c.b16 %v1366, %v1358
        %v1639 = vpack.c.b16 %v1375, %v1367
        %v1640 = vpack.c.b16 %v1376, %v1368
        %v1641 = vpack.c.b16 %v1377, %v1369
        %v1642 = vpack.c.b16 %v1378, %v1370
        %v1643 = vpack.c.b16 %v1379, %v1371
        %v1644 = vpack.c.b16 %v1380, %v1372
        %v1645 = vpack.c.b16 %v1381, %v1373
        %v1646 = vpack.c.b16 %v1382, %v1374
        %v1647 = vpack.c.b16 %v1391, %v1383
        %v1648 = vpack.c.b16 %v1392, %v1384
        %v1649 = vpack.c.b16 %v1393, %v1385
        %v1650 = vpack.c.b16 %v1394, %v1386
        %v1651 = vpack.c.b16 %v1395, %v1387
        %v1652 = vpack.c.b16 %v1396, %v1388
        %v1653 = vpack.c.b16 %v1397, %v1389
        %v1654 = vpack.c.b16 %v1398, %v1390
        %v2039 = vunpack.c.l.b16 %v503
        %v2040 = vunpack.c.l.b16 %v504
        %v2041 = vunpack.c.l.b16 %v505
        %v2042 = vunpack.c.l.b16 %v506
        %v2043 = vunpack.c.l.b16 %v507
        %v2044 = vunpack.c.l.b16 %v508
        %v2045 = vunpack.c.l.b16 %v509
        %v2046 = vunpack.c.l.b16 %v510
        %v2047 = vunpack.c.l.b16 %v511
        %v2048 = vunpack.c.l.b16 %v512
        %v2049 = vunpack.c.l.b16 %v513
        %v2050 = vunpack.c.l.b16 %v514
        %v2051 = vunpack.c.l.b16 %v515
        %v2052 = vunpack.c.l.b16 %v516
        %v2053 = vunpack.c.l.b16 %v517
        %v2054 = vunpack.c.l.b16 %v518
        %v2055 = vunpack.c.l.b16 %v519
        %v2056 = vunpack.c.l.b16 %v520
        %v2057 = vunpack.c.l.b16 %v521
        %v2058 = vunpack.c.l.b16 %v522
        %v2059 = vunpack.c.l.b16 %v523
        %v2060 = vunpack.c.l.b16 %v524
        %v2061 = vunpack.c.l.b16 %v525
        %v2062 = vunpack.c.l.b16 %v526
        %v2063 = vunpack.c.l.b16 %v527
        %v2064 = vunpack.c.l.b16 %v528
        %v2065 = vunpack.c.l.b16 %v529
        %v2066 = vunpack.c.l.b16 %v530
        %v2067 = vunpack.c.l.b16 %v531
        %v2068 = vunpack.c.l.b16 %v532
        %v2069 = vunpack.c.l.b16 %v533
        %v2070 = vunpack.c.l.b16 %v534
        %v2071 = vunpack.c.l.b16 %v535
        %v2072 = vunpack.c.l.b16 %v536
        %v2073 = vunpack.c.l.b16 %v537
        %v2074 = vunpack.c.l.b16 %v538
        %v2075 = vunpack.c.l.b16 %v539
        %v2076 = vunpack.c.l.b16 %v540
        %v2077 = vunpack.c.l.b16 %v541
        %v2078 = vunpack.c.l.b16 %v542
        %v2079 = vunpack.c.l.b16 %v543
        %v2080 = vunpack.c.l.b16 %v544
        %v2081 = vunpack.c.l.b16 %v545
        %v2082 = vunpack.c.l.b16 %v546
        %v2083 = vunpack.c.l.b16 %v547
        %v2084 = vunpack.c.l.b16 %v548
        %v2085 = vunpack.c.l.b16 %v549
        %v2086 = vunpack.c.l.b16 %v550
        %v2087 = vunpack.c.l.b16 %v551
        %v2088 = vunpack.c.l.b16 %v552
        %v2089 = vunpack.c.l.b16 %v553
        %v2090 = vunpack.c.l.b16 %v554
        %v2091 = vunpack.c.l.b16 %v555
        %v2092 = vunpack.c.l.b16 %v556
        %v2093 = vunpack.c.l.b16 %v557
        %v2094 = vunpack.c.l.b16 %v558
        %v2095 = vunpack.c.l.b16 %v559
        %v2096 = vunpack.c.l.b16 %v560
        %v2097 = vunpack.c.l.b16 %v561
        %v2098 = vunpack.c.l.b16 %v562
        %v2099 = vunpack.c.l.b16 %v563
        %v2100 = vunpack.c.l.b16 %v564
        %v2101 = vunpack.c.l.b16 %v565
        %v2102 = vunpack.c.l.b16 %v566
        %v2103 = vunpack.c.l.b16 %v567
        %v2104 = vunpack.c.l.b16 %v568
        %v2105 = vunpack.c.l.b16 %v569
        %v2106 = vunpack.c.l.b16 %v570
        %v2107 = vunpack.c.l.b16 %v571
        %v2108 = vunpack.c.l.b16 %v572
        %v2109 = vunpack.c.l.b16 %v573
        %v2110 = vunpack.c.l.b16 %v574
        %v2111 = vunpack.c.l.b16 %v575
        %v2112 = vunpack.c.l.b16 %v576
        %v2113 = vunpack.c.l.b16 %v577
        %v2114 = vunpack.c.l.b16 %v578
        %v2115 = vunpack.c.l.b16 %v579
        %v2116 = vunpack.c.l.b16 %v580
        %v2117 = vunpack.c.l.b16 %v581
        %v2118 = vunpack.c.l.b16 %v582
        %v2119 = vunpack.c.l.b16 %v583
        %v2120 = vunpack.c.l.b16 %v584
        %v2121 = vunpack.c.l.b16 %v585
        %v2122 = vunpack.c.l.b16 %v586
        %v2123 = vunpack.c.l.b16 %v587
        %v2124 = vunpack.c.l.b16 %v588
        %v2125 = vunpack.c.l.b16 %v589
        %v2126 = vunpack.c.l.b16 %v590
        %v2127 = vunpack.c.l.b16 %v591
        %v2128 = vunpack.c.l.b16 %v592
        %v2129 = vunpack.c.l.b16 %v593
        %v2130 = vunpack.c.l.b16 %v594
        %v2131 = vunpack.c.l.b16 %v595
        %v2132 = vunpack.c.l.b16 %v596
        %v2133 = vunpack.c.l.b16 %v597
        %v2134 = vunpack.c.l.b16 %v598
        %v2135 = vunpack.c.l.b16 %v599
        %v2136 = vunpack.c.l.b16 %v600
        %v2137 = vunpack.c.l.b16 %v601
        %v2138 = vunpack.c.l.b16 %v602
        %v2139 = vunpack.c.l.b16 %v603
        %v2140 = vunpack.c.l.b16 %v604
        %v2141 = vunpack.c.l.b16 %v605
        %v2142 = vunpack.c.l.b16 %v606
        %v2143 = vunpack.c.l.b16 %v607
        %v2144 = vunpack.c.l.b16 %v608
        %v2145 = vunpack.c.l.b16 %v609
        %v2146 = vunpack.c.l.b16 %v610
        %v2147 = vunpack.c.l.b16 %v611
        %v2148 = vunpack.c.l.b16 %v612
        %v2149 = vunpack.c.l.b16 %v613
        %v2150 = vunpack.c.l.b16 %v614
        %v2151 = vunpack.c.l.b16 %v615
        %v2152 = vunpack.c.l.b16 %v616
        %v2153 = vunpack.c.l.b16 %v617
        %v2154 = vunpack.c.l.b16 %v618
        %v2155 = vunpack.c.l.b16 %v619
        %v2156 = vunpack.c.l.b16 %v620
        %v2157 = vunpack.c.l.b16 %v621
        %v2158 = vunpack.c.l.b16 %v622
        %v2159 = vunpack.c.l.b16 %v623
        %v2160 = vunpack.c.l.b16 %v624
        %v2161 = vunpack.c.l.b16 %v625
        %v2162 = vunpack.c.l.b16 %v626
        %v2163 = vunpack.c.l.b16 %v627
        %v2164 = vunpack.c.l.b16 %v628
        %v2165 = vunpack.c.l.b16 %v629
        %v2166 = vunpack.c.l.b16 %v630
        %v2167 = vpack.c.b16 %v2040, %v2039
        %v2168 = vpack.c.b16 %v2042, %v2041
        %v2169 = vpack.c.b16 %v2044, %v2043
        %v2170 = vpack.c.b16 %v2046, %v2045
        %v2171 = vpack.c.b16 %v2048, %v2047
        %v2172 = vpack.c.b16 %v2050, %v2049
        %v2173 = vpack.c.b16 %v2052, %v2051
        %v2174 = vpack.c.b16 %v2054, %v2053
        %v2175 = vpack.c.b16 %v2056, %v2055
        %v2176 = vpack.c.b16 %v2058, %v2057
        %v2177 = vpack.c.b16 %v2060, %v2059
        %v2178 = vpack.c.b16 %v2062, %v2061
        %v2179 = vpack.c.b16 %v2064, %v2063
        %v2180 = vpack.c.b16 %v2066, %v2065
        %v2181 = vpack.c.b16 %v2068, %v2067
        %v2182 = vpack.c.b16 %v2070, %v2069
        %v2183 = vpack.c.b16 %v2072, %v2071
        %v2184 = vpack.c.b16 %v2074, %v2073
        %v2185 = vpack.c.b16 %v2076, %v2075
        %v2186 = vpack.c.b16 %v2078, %v2077
        %v2187 = vpack.c.b16 %v2080, %v2079
        %v2188 = vpack.c.b16 %v2082, %v2081
        %v2189 = vpack.c.b16 %v2084, %v2083
        %v2190 = vpack.c.b16 %v2086, %v2085
        %v2191 = vpack.c.b16 %v2088, %v2087
        %v2192 = vpack.c.b16 %v2090, %v2089
        %v2193 = vpack.c.b16 %v2092, %v2091
        %v2194 = vpack.c.b16 %v2094, %v2093
        %v2195 = vpack.c.b16 %v2096, %v2095
        %v2196 = vpack.c.b16 %v2098, %v2097
        %v2197 = vpack.c.b16 %v2100, %v2099
        %v2198 = vpack.c.b16 %v2102, %v2101
        %v2199 = vpack.c.b16 %v2104, %v2103
        %v2200 = vpack.c.b16 %v2106, %v2105
        %v2201 = vpack.c.b16 %v2108, %v2107
        %v2202 = vpack.c.b16 %v2110, %v2109
        %v2203 = vpack.c.b16 %v2112, %v2111
        %v2204 = vpack.c.b16 %v2114, %v2113
        %v2205 = vpack.c.b16 %v2116, %v2115
        %v2206 = vpack.c.b16 %v2118, %v2117
        %v2207 = vpack.c.b16 %v2120, %v2119
        %v2208 = vpack.c.b16 %v2122, %v2121
        %v2209 = vpack.c.b16 %v2124, %v2123
        %v2210 = vpack.c.b16 %v2126, %v2125
        %v2211 = vpack.c.b16 %v2128, %v2127
        %v2212 = vpack.c.b16 %v2130, %v2129
        %v2213 = vpack.c.b16 %v2132, %v2131
        %v2214 = vpack.c.b16 %v2134, %v2133
        %v2215 = vpack.c.b16 %v2136, %v2135
        %v2216 = vpack.c.b16 %v2138, %v2137
        %v2217 = vpack.c.b16 %v2140, %v2139
        %v2218 = vpack.c.b16 %v2142, %v2141
        %v2219 = vpack.c.b16 %v2144, %v2143
        %v2220 = vpack.c.b16 %v2146, %v2145
        %v2221 = vpack.c.b16 %v2148, %v2147
        %v2222 = vpack.c.b16 %v2150, %v2149
        %v2223 = vpack.c.b16 %v2152, %v2151
        %v2224 = vpack.c.b16 %v2154, %v2153
        %v2225 = vpack.c.b16 %v2156, %v2155
        %v2226 = vpack.c.b16 %v2158, %v2157
        %v2227 = vpack.c.b16 %v2160, %v2159
        %v2228 = vpack.c.b16 %v2162, %v2161
        %v2229 = vpack.c.b16 %v2164, %v2163
        %v2230 = vpack.c.b16 %v2166, %v2165
        %2295 = vmatprep.subr.bf16.mxu0 0
        %2296 = vmatpush1.bf16.msra.mxu0 %v2167
        %2297 = vmatprep.subr.bf16.mxu0 0
        %2298 = vmatpush1.bf16.msra.mxu0 %v2168
        %2299 = vmatprep.subr.bf16.mxu0 0
        %2300 = vmatpush1.bf16.msra.mxu0 %v2169
        %2301 = vmatprep.subr.bf16.mxu0 0
        %2302 = vmatpush1.bf16.msra.mxu0 %v2170
        %2303 = vmatprep.subr.bf16.mxu0 0
        %2304 = vmatpush1.bf16.msra.mxu0 %v2171
        %2305 = vmatprep.subr.bf16.mxu0 0
        %2306 = vmatpush1.bf16.msra.mxu0 %v2172
        %2307 = vmatprep.subr.bf16.mxu0 0
        %2308 = vmatpush1.bf16.msra.mxu0 %v2173
        %2309 = vmatprep.subr.bf16.mxu0 0
        %2310 = vmatpush1.bf16.msra.mxu0 %v2174
        %2311 = vmatprep.subr.bf16.mxu0 0
        %2312 = vmatpush1.bf16.msra.mxu0 %v2175
        %2313 = vmatprep.subr.bf16.mxu0 0
        %2314 = vmatpush1.bf16.msra.mxu0 %v2176
        %2315 = vmatprep.subr.bf16.mxu0 0
        %2316 = vmatpush1.bf16.msra.mxu0 %v2177
        %2317 = vmatprep.subr.bf16.mxu0 0
        %2318 = vmatpush1.bf16.msra.mxu0 %v2178
        %2319 = vmatprep.subr.bf16.mxu0 0
        %2320 = vmatpush1.bf16.msra.mxu0 %v2179
        %2321 = vmatprep.subr.bf16.mxu0 0
        %2322 = vmatpush1.bf16.msra.mxu0 %v2180
        %2323 = vmatprep.subr.bf16.mxu0 0
        %2324 = vmatpush1.bf16.msra.mxu0 %v2181
        %2325 = vmatprep.subr.bf16.mxu0 0
        %2326 = vmatpush1.bf16.msra.mxu0 %v2182
        %2327 = vmatprep.mubr.bf16.mxu0 %v1400
        %2328 = vmatmul.mubr.bf16.gmra.mrb[0].mxu0 %v1399
        %v2329 = vpop.f32.mrb[0].mxu0
        %v2330 = vadd.f32 0.0, %v2329
        %v2331 = vpop.f32.mrb[0].mxu0
        %v2332 = vpop.f32.mrb[0].mxu0
        %v2333 = vadd.f32 0.0, %v2332
        %v2334 = vpop.f32.mrb[0].mxu0
        %2335 = vmatprep.mubr.bf16.mxu0 %v1408
        %2336 = vmatmul.mubr.bf16.gmra.mrb[0].mxu0 %v1407
        %v2337 = vpop.f32.mrb[0].mxu0
        %v2338 = vadd.f32 0.0, %v2337
        %v2339 = vpop.f32.mrb[0].mxu0
        %v2340 = vpop.f32.mrb[0].mxu0
        %v2341 = vadd.f32 0.0, %v2340
        %v2342 = vpop.f32.mrb[0].mxu0
        %2343 = vmatprep.mubr.bf16.mxu0 %v1416
        %2344 = vmatmul.mubr.bf16.gmra.mrb[0].mxu0 %v1415
        %v2345 = vpop.f32.mrb[0].mxu0
        %v2346 = vadd.f32 0.0, %v2345
        %v2347 = vpop.f32.mrb[0].mxu0
        %v2348 = vpop.f32.mrb[0].mxu0
        %v2349 = vadd.f32 0.0, %v2348
        %v2350 = vpop.f32.mrb[0].mxu0
        %2351 = vmatprep.mubr.bf16.mxu0 %v1424
        %2352 = vmatmul.mubr.bf16.gmra.mrb[0].mxu0 %v1423
        %v2353 = vpop.f32.mrb[0].mxu0
        %v2354 = vadd.f32 0.0, %v2353
        %v2355 = vpop.f32.mrb[0].mxu0
        %v2356 = vpop.f32.mrb[0].mxu0
        %v2357 = vadd.f32 0.0, %v2356
        %v2358 = vpop.f32.mrb[0].mxu0
        %2359 = vmatprep.mubr.bf16.mxu0 %v1432
        %2360 = vmatmul.mubr.bf16.gmra.mrb[0].mxu0 %v1431
        %v2361 = vpop.f32.mrb[0].mxu0
        %v2362 = vadd.f32 0.0, %v2361
        %v2363 = vpop.f32.mrb[0].mxu0
        %v2364 = vpop.f32.mrb[0].mxu0
        %v2365 = vadd.f32 0.0, %v2364
        %v2366 = vpop.f32.mrb[0].mxu0
        %2367 = vmatprep.mubr.bf16.mxu0 %v1440
        %2368 = vmatmul.mubr.bf16.gmra.mrb[0].mxu0 %v1439
        %v2369 = vpop.f32.mrb[0].mxu0
        %v2370 = vadd.f32 0.0, %v2369
        %v2371 = vpop.f32.mrb[0].mxu0
        %v2372 = vpop.f32.mrb[0].mxu0
        %v2373 = vadd.f32 0.0, %v2372
        %v2374 = vpop.f32.mrb[0].mxu0
        %2375 = vmatprep.mubr.bf16.mxu0 %v1448
        %2376 = vmatmul.mubr.bf16.gmra.mrb[0].mxu0 %v1447
        %v2377 = vpop.f32.mrb[0].mxu0
        %v2378 = vadd.f32 0.0, %v2377
        %v2379 = vpop.f32.mrb[0].mxu0
        %v2380 = vpop.f32.mrb[0].mxu0
        %v2381 = vadd.f32 0.0, %v2380
        %v2382 = vpop.f32.mrb[0].mxu0
        %2383 = vmatprep.mubr.bf16.mxu0 %v1456
        %2384 = vmatmul.mubr.bf16.gmra.mrb[0].mxu0 %v1455
        %v2385 = vpop.f32.mrb[0].mxu0
        %v2386 = vadd.f32 0.0, %v2385
        %v2387 = vpop.f32.mrb[0].mxu0
        %v2388 = vpop.f32.mrb[0].mxu0
        %v2389 = vadd.f32 0.0, %v2388
        %v2390 = vpop.f32.mrb[0].mxu0
        %2391 = vmatprep.mubr.bf16.mxu0 %v1464
        %2392 = vmatmul.mubr.bf16.gmra.mrb[0].mxu0 %v1463
        %v2393 = vpop.f32.mrb[0].mxu0
        %v2394 = vadd.f32 0.0, %v2393
        %v2395 = vpop.f32.mrb[0].mxu0
        %v2396 = vpop.f32.mrb[0].mxu0
        %v2397 = vadd.f32 0.0, %v2396
        %v2398 = vpop.f32.mrb[0].mxu0
        %2399 = vmatprep.mubr.bf16.mxu0 %v1472
        %2400 = vmatmul.mubr.bf16.gmra.mrb[0].mxu0 %v1471
        %v2401 = vpop.f32.mrb[0].mxu0
        %v2402 = vadd.f32 0.0, %v2401
        %v2403 = vpop.f32.mrb[0].mxu0
        %v2404 = vpop.f32.mrb[0].mxu0
        %v2405 = vadd.f32 0.0, %v2404
        %v2406 = vpop.f32.mrb[0].mxu0
        %2407 = vmatprep.mubr.bf16.mxu0 %v1480
        %2408 = vmatmul.mubr.bf16.gmra.mrb[0].mxu0 %v1479
        %v2409 = vpop.f32.mrb[0].mxu0
        %v2410 = vadd.f32 0.0, %v2409
        %v2411 = vpop.f32.mrb[0].mxu0
        %v2412 = vpop.f32.mrb[0].mxu0
        %v2413 = vadd.f32 0.0, %v2412
        %v2414 = vpop.f32.mrb[0].mxu0
        %2415 = vmatprep.mubr.bf16.mxu0 %v1488
        %2416 = vmatmul.mubr.bf16.gmra.mrb[0].mxu0 %v1487
        %v2417 = vpop.f32.mrb[0].mxu0
        %v2418 = vadd.f32 0.0, %v2417
        %v2419 = vpop.f32.mrb[0].mxu0
        %v2420 = vpop.f32.mrb[0].mxu0
        %v2421 = vadd.f32 0.0, %v2420
        %v2422 = vpop.f32.mrb[0].mxu0
        %2423 = vmatprep.mubr.bf16.mxu0 %v1496
        %2424 = vmatmul.mubr.bf16.gmra.mrb[0].mxu0 %v1495
        %v2425 = vpop.f32.mrb[0].mxu0
        %v2426 = vadd.f32 0.0, %v2425
        %v2427 = vpop.f32.mrb[0].mxu0
        %v2428 = vpop.f32.mrb[0].mxu0
        %v2429 = vadd.f32 0.0, %v2428
        %v2430 = vpop.f32.mrb[0].mxu0
        %2431 = vmatprep.mubr.bf16.mxu0 %v1504
        %2432 = vmatmul.mubr.bf16.gmra.mrb[0].mxu0 %v1503
        %v2433 = vpop.f32.mrb[0].mxu0
        %v2434 = vadd.f32 0.0, %v2433
        %v2435 = vpop.f32.mrb[0].mxu0
        %v2436 = vpop.f32.mrb[0].mxu0
        %v2437 = vadd.f32 0.0, %v2436
        %v2438 = vpop.f32.mrb[0].mxu0
        %2439 = vmatprep.mubr.bf16.mxu0 %v1512
        %2440 = vmatmul.mubr.bf16.gmra.mrb[0].mxu0 %v1511
        %v2441 = vpop.f32.mrb[0].mxu0
        %v2442 = vadd.f32 0.0, %v2441
        %v2443 = vpop.f32.mrb[0].mxu0
        %v2444 = vpop.f32.mrb[0].mxu0
        %v2445 = vadd.f32 0.0, %v2444
        %v2446 = vpop.f32.mrb[0].mxu0
        %2447 = vmatprep.mubr.bf16.mxu0 %v1520
        %2448 = vmatmul.mubr.bf16.gmra.mrb[0].mxu0 %v1519
        %v2449 = vpop.f32.mrb[0].mxu0
        %v2450 = vadd.f32 0.0, %v2449
        %v2451 = vpop.f32.mrb[0].mxu0
        %v2452 = vpop.f32.mrb[0].mxu0
        %v2453 = vadd.f32 0.0, %v2452
        %v2454 = vpop.f32.mrb[0].mxu0
        %2455 = vmatprep.mubr.bf16.mxu0 %v1528
        %2456 = vmatmul.mubr.bf16.gmra.mrb[0].mxu0 %v1527
        %v2457 = vpop.f32.mrb[0].mxu0
        %v2458 = vadd.f32 0.0, %v2457
        %v2459 = vpop.f32.mrb[0].mxu0
        %v2460 = vpop.f32.mrb[0].mxu0
        %v2461 = vadd.f32 0.0, %v2460
        %v2462 = vpop.f32.mrb[0].mxu0
        %2463 = vmatprep.mubr.bf16.mxu0 %v1536
        %2464 = vmatmul.mubr.bf16.gmra.mrb[0].mxu0 %v1535
        %v2465 = vpop.f32.mrb[0].mxu0
        %v2466 = vadd.f32 0.0, %v2465
        %v2467 = vpop.f32.mrb[0].mxu0
        %v2468 = vpop.f32.mrb[0].mxu0
        %v2469 = vadd.f32 0.0, %v2468
        %v2470 = vpop.f32.mrb[0].mxu0
        %2471 = vmatprep.mubr.bf16.mxu0 %v1544
        %2472 = vmatmul.mubr.bf16.gmra.mrb[0].mxu0 %v1543
        %v2473 = vpop.f32.mrb[0].mxu0
        %v2474 = vadd.f32 0.0, %v2473
        %v2475 = vpop.f32.mrb[0].mxu0
        %v2476 = vpop.f32.mrb[0].mxu0
        %v2477 = vadd.f32 0.0, %v2476
        %v2478 = vpop.f32.mrb[0].mxu0
        %2479 = vmatprep.mubr.bf16.mxu0 %v1552
        %2480 = vmatmul.mubr.bf16.gmra.mrb[0].mxu0 %v1551
        %v2481 = vpop.f32.mrb[0].mxu0
        %v2482 = vadd.f32 0.0, %v2481
        %v2483 = vpop.f32.mrb[0].mxu0
        %v2484 = vpop.f32.mrb[0].mxu0
        %v2485 = vadd.f32 0.0, %v2484
        %v2486 = vpop.f32.mrb[0].mxu0
        %2487 = vmatprep.mubr.bf16.mxu0 %v1560
        %2488 = vmatmul.mubr.bf16.gmra.mrb[0].mxu0 %v1559
        %v2489 = vpop.f32.mrb[0].mxu0
        %v2490 = vadd.f32 0.0, %v2489
        %v2491 = vpop.f32.mrb[0].mxu0
        %v2492 = vpop.f32.mrb[0].mxu0
        %v2493 = vadd.f32 0.0, %v2492
        %v2494 = vpop.f32.mrb[0].mxu0
        %2495 = vmatprep.mubr.bf16.mxu0 %v1568
        %2496 = vmatmul.mubr.bf16.gmra.mrb[0].mxu0 %v1567
        %v2497 = vpop.f32.mrb[0].mxu0
        %v2498 = vadd.f32 0.0, %v2497
        %v2499 = vpop.f32.mrb[0].mxu0
        %v2500 = vpop.f32.mrb[0].mxu0
        %v2501 = vadd.f32 0.0, %v2500
        %v2502 = vpop.f32.mrb[0].mxu0
        %2503 = vmatprep.mubr.bf16.mxu0 %v1576
        %2504 = vmatmul.mubr.bf16.gmra.mrb[0].mxu0 %v1575
        %v2505 = vpop.f32.mrb[0].mxu0
        %v2506 = vadd.f32 0.0, %v2505
        %v2507 = vpop.f32.mrb[0].mxu0
        %v2508 = vpop.f32.mrb[0].mxu0
        %v2509 = vadd.f32 0.0, %v2508
        %v2510 = vpop.f32.mrb[0].mxu0
        %2511 = vmatprep.mubr.bf16.mxu0 %v1584
        %2512 = vmatmul.mubr.bf16.gmra.mrb[0].mxu0 %v1583
        %v2513 = vpop.f32.mrb[0].mxu0
        %v2514 = vadd.f32 0.0, %v2513
        %v2515 = vpop.f32.mrb[0].mxu0
        %v2516 = vpop.f32.mrb[0].mxu0
        %v2517 = vadd.f32 0.0, %v2516
        %v2518 = vpop.f32.mrb[0].mxu0
        %2519 = vmatprep.mubr.bf16.mxu0 %v1592
        %2520 = vmatmul.mubr.bf16.gmra.mrb[0].mxu0 %v1591
        %v2521 = vpop.f32.mrb[0].mxu0
        %v2522 = vadd.f32 0.0, %v2521
        %v2523 = vpop.f32.mrb[0].mxu0
        %v2524 = vpop.f32.mrb[0].mxu0
        %v2525 = vadd.f32 0.0, %v2524
        %v2526 = vpop.f32.mrb[0].mxu0
        %2527 = vmatprep.mubr.bf16.mxu0 %v1600
        %2528 = vmatmul.mubr.bf16.gmra.mrb[0].mxu0 %v1599
        %v2529 = vpop.f32.mrb[0].mxu0
        %v2530 = vadd.f32 0.0, %v2529
        %v2531 = vpop.f32.mrb[0].mxu0
        %v2532 = vpop.f32.mrb[0].mxu0
        %v2533 = vadd.f32 0.0, %v2532
        %v2534 = vpop.f32.mrb[0].mxu0
        %2535 = vmatprep.mubr.bf16.mxu0 %v1608
        %2536 = vmatmul.mubr.bf16.gmra.mrb[0].mxu0 %v1607
        %v2537 = vpop.f32.mrb[0].mxu0
        %v2538 = vadd.f32 0.0, %v2537
        %v2539 = vpop.f32.mrb[0].mxu0
        %v2540 = vpop.f32.mrb[0].mxu0
        %v2541 = vadd.f32 0.0, %v2540
        %v2542 = vpop.f32.mrb[0].mxu0
        %2543 = vmatprep.mubr.bf16.mxu0 %v1616
        %2544 = vmatmul.mubr.bf16.gmra.mrb[0].mxu0 %v1615
        %v2545 = vpop.f32.mrb[0].mxu0
        %v2546 = vadd.f32 0.0, %v2545
        %v2547 = vpop.f32.mrb[0].mxu0
        %v2548 = vpop.f32.mrb[0].mxu0
        %v2549 = vadd.f32 0.0, %v2548
        %v2550 = vpop.f32.mrb[0].mxu0
        %2551 = vmatprep.mubr.bf16.mxu0 %v1624
        %2552 = vmatmul.mubr.bf16.gmra.mrb[0].mxu0 %v1623
        %v2553 = vpop.f32.mrb[0].mxu0
        %v2554 = vadd.f32 0.0, %v2553
        %v2555 = vpop.f32.mrb[0].mxu0
        %v2556 = vpop.f32.mrb[0].mxu0
        %v2557 = vadd.f32 0.0, %v2556
        %v2558 = vpop.f32.mrb[0].mxu0
        %2559 = vmatprep.mubr.bf16.mxu0 %v1632
        %2560 = vmatmul.mubr.bf16.gmra.mrb[0].mxu0 %v1631
        %v2561 = vpop.f32.mrb[0].mxu0
        %v2562 = vadd.f32 0.0, %v2561
        %v2563 = vpop.f32.mrb[0].mxu0
        %v2564 = vpop.f32.mrb[0].mxu0
        %v2565 = vadd.f32 0.0, %v2564
        %v2566 = vpop.f32.mrb[0].mxu0
        %2567 = vmatprep.mubr.bf16.mxu0 %v1640
        %2568 = vmatmul.mubr.bf16.gmra.mrb[0].mxu0 %v1639
        %v2569 = vpop.f32.mrb[0].mxu0
        %v2570 = vadd.f32 0.0, %v2569
        %v2571 = vpop.f32.mrb[0].mxu0
        %v2572 = vpop.f32.mrb[0].mxu0
        %v2573 = vadd.f32 0.0, %v2572
        %v2574 = vpop.f32.mrb[0].mxu0
        %2575 = vmatprep.mubr.bf16.mxu0 %v1648
        %2576 = vmatmul.mubr.bf16.gmra.mrb[0].mxu0 %v1647
        %v2577 = vpop.f32.mrb[0].mxu0
        %v2578 = vadd.f32 0.0, %v2577
        %v2579 = vpop.f32.mrb[0].mxu0
        %v2580 = vpop.f32.mrb[0].mxu0
        %v2581 = vadd.f32 0.0, %v2580
        %v2582 = vpop.f32.mrb[0].mxu0
        %2583 = vdwg.mxu0
        %2584 = vmatprep.subr.bf16.mxu0 0
        %2585 = vmatpush1.bf16.msra.mxu0 %v2183
        %2586 = vmatprep.subr.bf16.mxu0 0
        %2587 = vmatpush1.bf16.msra.mxu0 %v2184
        %2588 = vmatprep.subr.bf16.mxu0 0
        %2589 = vmatpush1.bf16.msra.mxu0 %v2185
        %2590 = vmatprep.subr.bf16.mxu0 0
        %2591 = vmatpush1.bf16.msra.mxu0 %v2186
        %2592 = vmatprep.subr.bf16.mxu0 0
        %2593 = vmatpush1.bf16.msra.mxu0 %v2187
        %2594 = vmatprep.subr.bf16.mxu0 0
        %2595 = vmatpush1.bf16.msra.mxu0 %v2188
        %2596 = vmatprep.subr.bf16.mxu0 0
        %2597 = vmatpush1.bf16.msra.mxu0 %v2189
        %2598 = vmatprep.subr.bf16.mxu0 0
        %2599 = vmatpush1.bf16.msra.mxu0 %v2190
        %2600 = vmatprep.subr.bf16.mxu0 0
        %2601 = vmatpush1.bf16.msra.mxu0 %v2191
        %2602 = vmatprep.subr.bf16.mxu0 0
        %2603 = vmatpush1.bf16.msra.mxu0 %v2192
        %2604 = vmatprep.subr.bf16.mxu0 0
        %2605 = vmatpush1.bf16.msra.mxu0 %v2193
        %2606 = vmatprep.subr.bf16.mxu0 0
        %2607 = vmatpush1.bf16.msra.mxu0 %v2194
        %2608 = vmatprep.subr.bf16.mxu0 0
        %2609 = vmatpush1.bf16.msra.mxu0 %v2195
        %2610 = vmatprep.subr.bf16.mxu0 0
        %2611 = vmatpush1.bf16.msra.mxu0 %v2196
        %2612 = vmatprep.subr.bf16.mxu0 0
        %2613 = vmatpush1.bf16.msra.mxu0 %v2197
        %2614 = vmatprep.subr.bf16.mxu0 0
        %2615 = vmatpush1.bf16.msra.mxu0 %v2198
        %2616 = vmatprep.mubr.bf16.mxu0 %v1402
        %2617 = vmatmul.mubr.bf16.gmra.mrb[0].mxu0 %v1401
        %v2618 = vpop.f32.mrb[0].mxu0
        %v2619 = vadd.f32 %v2330, %v2618
        %v2620 = vpop.f32.mrb[0].mxu0
        %v2621 = vpop.f32.mrb[0].mxu0
        %v2622 = vadd.f32 %v2333, %v2621
        %v2623 = vpop.f32.mrb[0].mxu0
        %2624 = vmatprep.mubr.bf16.mxu0 %v1410
        %2625 = vmatmul.mubr.bf16.gmra.mrb[0].mxu0 %v1409
        %v2626 = vpop.f32.mrb[0].mxu0
        %v2627 = vadd.f32 %v2338, %v2626
        %v2628 = vpop.f32.mrb[0].mxu0
        %v2629 = vpop.f32.mrb[0].mxu0
        %v2630 = vadd.f32 %v2341, %v2629
        %v2631 = vpop.f32.mrb[0].mxu0
        %2632 = vmatprep.mubr.bf16.mxu0 %v1418
        %2633 = vmatmul.mubr.bf16.gmra.mrb[0].mxu0 %v1417
        %v2634 = vpop.f32.mrb[0].mxu0
        %v2635 = vadd.f32 %v2346, %v2634
        %v2636 = vpop.f32.mrb[0].mxu0
        %v2637 = vpop.f32.mrb[0].mxu0
        %v2638 = vadd.f32 %v2349, %v2637
        %v2639 = vpop.f32.mrb[0].mxu0
        %2640 = vmatprep.mubr.bf16.mxu0 %v1426
        %2641 = vmatmul.mubr.bf16.gmra.mrb[0].mxu0 %v1425
        %v2642 = vpop.f32.mrb[0].mxu0
        %v2643 = vadd.f32 %v2354, %v2642
        %v2644 = vpop.f32.mrb[0].mxu0
        %v2645 = vpop.f32.mrb[0].mxu0
        %v2646 = vadd.f32 %v2357, %v2645
        %v2647 = vpop.f32.mrb[0].mxu0
        %2648 = vmatprep.mubr.bf16.mxu0 %v1434
        %2649 = vmatmul.mubr.bf16.gmra.mrb[0].mxu0 %v1433
        %v2650 = vpop.f32.mrb[0].mxu0
        %v2651 = vadd.f32 %v2362, %v2650
        %v2652 = vpop.f32.mrb[0].mxu0
        %v2653 = vpop.f32.mrb[0].mxu0
        %v2654 = vadd.f32 %v2365, %v2653
        %v2655 = vpop.f32.mrb[0].mxu0
        %2656 = vmatprep.mubr.bf16.mxu0 %v1442
        %2657 = vmatmul.mubr.bf16.gmra.mrb[0].mxu0 %v1441
        %v2658 = vpop.f32.mrb[0].mxu0
        %v2659 = vadd.f32 %v2370, %v2658
        %v2660 = vpop.f32.mrb[0].mxu0
        %v2661 = vpop.f32.mrb[0].mxu0
        %v2662 = vadd.f32 %v2373, %v2661
        %v2663 = vpop.f32.mrb[0].mxu0
        %2664 = vmatprep.mubr.bf16.mxu0 %v1450
        %2665 = vmatmul.mubr.bf16.gmra.mrb[0].mxu0 %v1449
        %v2666 = vpop.f32.mrb[0].mxu0
        %v2667 = vadd.f32 %v2378, %v2666
        %v2668 = vpop.f32.mrb[0].mxu0
        %v2669 = vpop.f32.mrb[0].mxu0
        %v2670 = vadd.f32 %v2381, %v2669
        %v2671 = vpop.f32.mrb[0].mxu0
        %2672 = vmatprep.mubr.bf16.mxu0 %v1458
        %2673 = vmatmul.mubr.bf16.gmra.mrb[0].mxu0 %v1457
        %v2674 = vpop.f32.mrb[0].mxu0
        %v2675 = vadd.f32 %v2386, %v2674
        %v2676 = vpop.f32.mrb[0].mxu0
        %v2677 = vpop.f32.mrb[0].mxu0
        %v2678 = vadd.f32 %v2389, %v2677
        %v2679 = vpop.f32.mrb[0].mxu0
        %2680 = vmatprep.mubr.bf16.mxu0 %v1466
        %2681 = vmatmul.mubr.bf16.gmra.mrb[0].mxu0 %v1465
        %v2682 = vpop.f32.mrb[0].mxu0
        %v2683 = vadd.f32 %v2394, %v2682
        %v2684 = vpop.f32.mrb[0].mxu0
        %v2685 = vpop.f32.mrb[0].mxu0
        %v2686 = vadd.f32 %v2397, %v2685
        %v2687 = vpop.f32.mrb[0].mxu0
        %2688 = vmatprep.mubr.bf16.mxu0 %v1474
        %2689 = vmatmul.mubr.bf16.gmra.mrb[0].mxu0 %v1473
        %v2690 = vpop.f32.mrb[0].mxu0
        %v2691 = vadd.f32 %v2402, %v2690
        %v2692 = vpop.f32.mrb[0].mxu0
        %v2693 = vpop.f32.mrb[0].mxu0
        %v2694 = vadd.f32 %v2405, %v2693
        %v2695 = vpop.f32.mrb[0].mxu0
        %2696 = vmatprep.mubr.bf16.mxu0 %v1482
        %2697 = vmatmul.mubr.bf16.gmra.mrb[0].mxu0 %v1481
        %v2698 = vpop.f32.mrb[0].mxu0
        %v2699 = vadd.f32 %v2410, %v2698
        %v2700 = vpop.f32.mrb[0].mxu0
        %v2701 = vpop.f32.mrb[0].mxu0
        %v2702 = vadd.f32 %v2413, %v2701
        %v2703 = vpop.f32.mrb[0].mxu0
        %2704 = vmatprep.mubr.bf16.mxu0 %v1490
        %2705 = vmatmul.mubr.bf16.gmra.mrb[0].mxu0 %v1489
        %v2706 = vpop.f32.mrb[0].mxu0
        %v2707 = vadd.f32 %v2418, %v2706
        %v2708 = vpop.f32.mrb[0].mxu0
        %v2709 = vpop.f32.mrb[0].mxu0
        %v2710 = vadd.f32 %v2421, %v2709
        %v2711 = vpop.f32.mrb[0].mxu0
        %2712 = vmatprep.mubr.bf16.mxu0 %v1498
        %2713 = vmatmul.mubr.bf16.gmra.mrb[0].mxu0 %v1497
        %v2714 = vpop.f32.mrb[0].mxu0
        %v2715 = vadd.f32 %v2426, %v2714
        %v2716 = vpop.f32.mrb[0].mxu0
        %v2717 = vpop.f32.mrb[0].mxu0
        %v2718 = vadd.f32 %v2429, %v2717
        %v2719 = vpop.f32.mrb[0].mxu0
        %2720 = vmatprep.mubr.bf16.mxu0 %v1506
        %2721 = vmatmul.mubr.bf16.gmra.mrb[0].mxu0 %v1505
        %v2722 = vpop.f32.mrb[0].mxu0
        %v2723 = vadd.f32 %v2434, %v2722
        %v2724 = vpop.f32.mrb[0].mxu0
        %v2725 = vpop.f32.mrb[0].mxu0
        %v2726 = vadd.f32 %v2437, %v2725
        %v2727 = vpop.f32.mrb[0].mxu0
        %2728 = vmatprep.mubr.bf16.mxu0 %v1514
        %2729 = vmatmul.mubr.bf16.gmra.mrb[0].mxu0 %v1513
        %v2730 = vpop.f32.mrb[0].mxu0
        %v2731 = vadd.f32 %v2442, %v2730
        %v2732 = vpop.f32.mrb[0].mxu0
        %v2733 = vpop.f32.mrb[0].mxu0
        %v2734 = vadd.f32 %v2445, %v2733
        %v2735 = vpop.f32.mrb[0].mxu0
        %2736 = vmatprep.mubr.bf16.mxu0 %v1522
        %2737 = vmatmul.mubr.bf16.gmra.mrb[0].mxu0 %v1521
        %v2738 = vpop.f32.mrb[0].mxu0
        %v2739 = vadd.f32 %v2450, %v2738
        %v2740 = vpop.f32.mrb[0].mxu0
        %v2741 = vpop.f32.mrb[0].mxu0
        %v2742 = vadd.f32 %v2453, %v2741
        %v2743 = vpop.f32.mrb[0].mxu0
        %2744 = vmatprep.mubr.bf16.mxu0 %v1530
        %2745 = vmatmul.mubr.bf16.gmra.mrb[0].mxu0 %v1529
        %v2746 = vpop.f32.mrb[0].mxu0
        %v2747 = vadd.f32 %v2458, %v2746
        %v2748 = vpop.f32.mrb[0].mxu0
        %v2749 = vpop.f32.mrb[0].mxu0
        %v2750 = vadd.f32 %v2461, %v2749
        %v2751 = vpop.f32.mrb[0].mxu0
        %2752 = vmatprep.mubr.bf16.mxu0 %v1538
        %2753 = vmatmul.mubr.bf16.gmra.mrb[0].mxu0 %v1537
        %v2754 = vpop.f32.mrb[0].mxu0
        %v2755 = vadd.f32 %v2466, %v2754
        %v2756 = vpop.f32.mrb[0].mxu0
        %v2757 = vpop.f32.mrb[0].mxu0
        %v2758 = vadd.f32 %v2469, %v2757
        %v2759 = vpop.f32.mrb[0].mxu0
        %2760 = vmatprep.mubr.bf16.mxu0 %v1546
        %2761 = vmatmul.mubr.bf16.gmra.mrb[0].mxu0 %v1545
        %v2762 = vpop.f32.mrb[0].mxu0
        %v2763 = vadd.f32 %v2474, %v2762
        %v2764 = vpop.f32.mrb[0].mxu0
        %v2765 = vpop.f32.mrb[0].mxu0
        %v2766 = vadd.f32 %v2477, %v2765
        %v2767 = vpop.f32.mrb[0].mxu0
        %2768 = vmatprep.mubr.bf16.mxu0 %v1554
        %2769 = vmatmul.mubr.bf16.gmra.mrb[0].mxu0 %v1553
        %v2770 = vpop.f32.mrb[0].mxu0
        %v2771 = vadd.f32 %v2482, %v2770
        %v2772 = vpop.f32.mrb[0].mxu0
        %v2773 = vpop.f32.mrb[0].mxu0
        %v2774 = vadd.f32 %v2485, %v2773
        %v2775 = vpop.f32.mrb[0].mxu0
        %2776 = vmatprep.mubr.bf16.mxu0 %v1562
        %2777 = vmatmul.mubr.bf16.gmra.mrb[0].mxu0 %v1561
        %v2778 = vpop.f32.mrb[0].mxu0
        %v2779 = vadd.f32 %v2490, %v2778
        %v2780 = vpop.f32.mrb[0].mxu0
        %v2781 = vpop.f32.mrb[0].mxu0
        %v2782 = vadd.f32 %v2493, %v2781
        %v2783 = vpop.f32.mrb[0].mxu0
        %2784 = vmatprep.mubr.bf16.mxu0 %v1570
        %2785 = vmatmul.mubr.bf16.gmra.mrb[0].mxu0 %v1569
        %v2786 = vpop.f32.mrb[0].mxu0
        %v2787 = vadd.f32 %v2498, %v2786
        %v2788 = vpop.f32.mrb[0].mxu0
        %v2789 = vpop.f32.mrb[0].mxu0
        %v2790 = vadd.f32 %v2501, %v2789
        %v2791 = vpop.f32.mrb[0].mxu0
        %2792 = vmatprep.mubr.bf16.mxu0 %v1578
        %2793 = vmatmul.mubr.bf16.gmra.mrb[0].mxu0 %v1577
        %v2794 = vpop.f32.mrb[0].mxu0
        %v2795 = vadd.f32 %v2506, %v2794
        %v2796 = vpop.f32.mrb[0].mxu0
        %v2797 = vpop.f32.mrb[0].mxu0
        %v2798 = vadd.f32 %v2509, %v2797
        %v2799 = vpop.f32.mrb[0].mxu0
        %2800 = vmatprep.mubr.bf16.mxu0 %v1586
        %2801 = vmatmul.mubr.bf16.gmra.mrb[0].mxu0 %v1585
        %v2802 = vpop.f32.mrb[0].mxu0
        %v2803 = vadd.f32 %v2514, %v2802
        %v2804 = vpop.f32.mrb[0].mxu0
        %v2805 = vpop.f32.mrb[0].mxu0
        %v2806 = vadd.f32 %v2517, %v2805
        %v2807 = vpop.f32.mrb[0].mxu0
        %2808 = vmatprep.mubr.bf16.mxu0 %v1594
        %2809 = vmatmul.mubr.bf16.gmra.mrb[0].mxu0 %v1593
        %v2810 = vpop.f32.mrb[0].mxu0
        %v2811 = vadd.f32 %v2522, %v2810
        %v2812 = vpop.f32.mrb[0].mxu0
        %v2813 = vpop.f32.mrb[0].mxu0
        %v2814 = vadd.f32 %v2525, %v2813
        %v2815 = vpop.f32.mrb[0].mxu0
        %2816 = vmatprep.mubr.bf16.mxu0 %v1602
        %2817 = vmatmul.mubr.bf16.gmra.mrb[0].mxu0 %v1601
        %v2818 = vpop.f32.mrb[0].mxu0
        %v2819 = vadd.f32 %v2530, %v2818
        %v2820 = vpop.f32.mrb[0].mxu0
        %v2821 = vpop.f32.mrb[0].mxu0
        %v2822 = vadd.f32 %v2533, %v2821
        %v2823 = vpop.f32.mrb[0].mxu0
        %2824 = vmatprep.mubr.bf16.mxu0 %v1610
        %2825 = vmatmul.mubr.bf16.gmra.mrb[0].mxu0 %v1609
        %v2826 = vpop.f32.mrb[0].mxu0
        %v2827 = vadd.f32 %v2538, %v2826
        %v2828 = vpop.f32.mrb[0].mxu0
        %v2829 = vpop.f32.mrb[0].mxu0
        %v2830 = vadd.f32 %v2541, %v2829
        %v2831 = vpop.f32.mrb[0].mxu0
        %2832 = vmatprep.mubr.bf16.mxu0 %v1618
        %2833 = vmatmul.mubr.bf16.gmra.mrb[0].mxu0 %v1617
        %v2834 = vpop.f32.mrb[0].mxu0
        %v2835 = vadd.f32 %v2546, %v2834
        %v2836 = vpop.f32.mrb[0].mxu0
        %v2837 = vpop.f32.mrb[0].mxu0
        %v2838 = vadd.f32 %v2549, %v2837
        %v2839 = vpop.f32.mrb[0].mxu0
        %2840 = vmatprep.mubr.bf16.mxu0 %v1626
        %2841 = vmatmul.mubr.bf16.gmra.mrb[0].mxu0 %v1625
        %v2842 = vpop.f32.mrb[0].mxu0
        %v2843 = vadd.f32 %v2554, %v2842
        %v2844 = vpop.f32.mrb[0].mxu0
        %v2845 = vpop.f32.mrb[0].mxu0
        %v2846 = vadd.f32 %v2557, %v2845
        %v2847 = vpop.f32.mrb[0].mxu0
        %2848 = vmatprep.mubr.bf16.mxu0 %v1634
        %2849 = vmatmul.mubr.bf16.gmra.mrb[0].mxu0 %v1633
        %v2850 = vpop.f32.mrb[0].mxu0
        %v2851 = vadd.f32 %v2562, %v2850
        %v2852 = vpop.f32.mrb[0].mxu0
        %v2853 = vpop.f32.mrb[0].mxu0
        %v2854 = vadd.f32 %v2565, %v2853
        %v2855 = vpop.f32.mrb[0].mxu0
        %2856 = vmatprep.mubr.bf16.mxu0 %v1642
        %2857 = vmatmul.mubr.bf16.gmra.mrb[0].mxu0 %v1641
        %v2858 = vpop.f32.mrb[0].mxu0
        %v2859 = vadd.f32 %v2570, %v2858
        %v2860 = vpop.f32.mrb[0].mxu0
        %v2861 = vpop.f32.mrb[0].mxu0
        %v2862 = vadd.f32 %v2573, %v2861
        %v2863 = vpop.f32.mrb[0].mxu0
        %2864 = vmatprep.mubr.bf16.mxu0 %v1650
        %2865 = vmatmul.mubr.bf16.gmra.mrb[0].mxu0 %v1649
        %v2866 = vpop.f32.mrb[0].mxu0
        %v2867 = vadd.f32 %v2578, %v2866
        %v2868 = vpop.f32.mrb[0].mxu0
        %v2869 = vpop.f32.mrb[0].mxu0
        %v2870 = vadd.f32 %v2581, %v2869
        %v2871 = vpop.f32.mrb[0].mxu0
        %2872 = vdwg.mxu0
        %2873 = vmatprep.subr.bf16.mxu0 0
        %2874 = vmatpush1.bf16.msra.mxu0 %v2199
        %2875 = vmatprep.subr.bf16.mxu0 0
        %2876 = vmatpush1.bf16.msra.mxu0 %v2200
        %2877 = vmatprep.subr.bf16.mxu0 0
        %2878 = vmatpush1.bf16.msra.mxu0 %v2201
        %2879 = vmatprep.subr.bf16.mxu0 0
        %2880 = vmatpush1.bf16.msra.mxu0 %v2202
        %2881 = vmatprep.subr.bf16.mxu0 0
        %2882 = vmatpush1.bf16.msra.mxu0 %v2203
        %2883 = vmatprep.subr.bf16.mxu0 0
        %2884 = vmatpush1.bf16.msra.mxu0 %v2204
        %2885 = vmatprep.subr.bf16.mxu0 0
        %2886 = vmatpush1.bf16.msra.mxu0 %v2205
        %2887 = vmatprep.subr.bf16.mxu0 0
        %2888 = vmatpush1.bf16.msra.mxu0 %v2206
        %2889 = vmatprep.subr.bf16.mxu0 0
        %2890 = vmatpush1.bf16.msra.mxu0 %v2207
        %2891 = vmatprep.subr.bf16.mxu0 0
        %2892 = vmatpush1.bf16.msra.mxu0 %v2208
        %2893 = vmatprep.subr.bf16.mxu0 0
        %2894 = vmatpush1.bf16.msra.mxu0 %v2209
        %2895 = vmatprep.subr.bf16.mxu0 0
        %2896 = vmatpush1.bf16.msra.mxu0 %v2210
        %2897 = vmatprep.subr.bf16.mxu0 0
        %2898 = vmatpush1.bf16.msra.mxu0 %v2211
        %2899 = vmatprep.subr.bf16.mxu0 0
        %2900 = vmatpush1.bf16.msra.mxu0 %v2212
        %2901 = vmatprep.subr.bf16.mxu0 0
        %2902 = vmatpush1.bf16.msra.mxu0 %v2213
        %2903 = vmatprep.subr.bf16.mxu0 0
        %2904 = vmatpush1.bf16.msra.mxu0 %v2214
        %2905 = vmatprep.mubr.bf16.mxu0 %v1404
        %2906 = vmatmul.mubr.bf16.gmra.mrb[0].mxu0 %v1403
        %v2907 = vpop.f32.mrb[0].mxu0
        %v2908 = vadd.f32 %v2619, %v2907
        %v2909 = vpop.f32.mrb[0].mxu0
        %v2910 = vpop.f32.mrb[0].mxu0
        %v2911 = vadd.f32 %v2622, %v2910
        %v2912 = vpop.f32.mrb[0].mxu0
        %2913 = vmatprep.mubr.bf16.mxu0 %v1412
        %2914 = vmatmul.mubr.bf16.gmra.mrb[0].mxu0 %v1411
        %v2915 = vpop.f32.mrb[0].mxu0
        %v2916 = vadd.f32 %v2627, %v2915
        %v2917 = vpop.f32.mrb[0].mxu0
        %v2918 = vpop.f32.mrb[0].mxu0
        %v2919 = vadd.f32 %v2630, %v2918
        %v2920 = vpop.f32.mrb[0].mxu0
        %2921 = vmatprep.mubr.bf16.mxu0 %v1420
        %2922 = vmatmul.mubr.bf16.gmra.mrb[0].mxu0 %v1419
        %v2923 = vpop.f32.mrb[0].mxu0
        %v2924 = vadd.f32 %v2635, %v2923
        %v2925 = vpop.f32.mrb[0].mxu0
        %v2926 = vpop.f32.mrb[0].mxu0
        %v2927 = vadd.f32 %v2638, %v2926
        %v2928 = vpop.f32.mrb[0].mxu0
        %2929 = vmatprep.mubr.bf16.mxu0 %v1428
        %2930 = vmatmul.mubr.bf16.gmra.mrb[0].mxu0 %v1427
        %v2931 = vpop.f32.mrb[0].mxu0
        %v2932 = vadd.f32 %v2643, %v2931
        %v2933 = vpop.f32.mrb[0].mxu0
        %v2934 = vpop.f32.mrb[0].mxu0
        %v2935 = vadd.f32 %v2646, %v2934
        %v2936 = vpop.f32.mrb[0].mxu0
        %2937 = vmatprep.mubr.bf16.mxu0 %v1436
        %2938 = vmatmul.mubr.bf16.gmra.mrb[0].mxu0 %v1435
        %v2939 = vpop.f32.mrb[0].mxu0
        %v2940 = vadd.f32 %v2651, %v2939
        %v2941 = vpop.f32.mrb[0].mxu0
        %v2942 = vpop.f32.mrb[0].mxu0
        %v2943 = vadd.f32 %v2654, %v2942
        %v2944 = vpop.f32.mrb[0].mxu0
        %2945 = vmatprep.mubr.bf16.mxu0 %v1444
        %2946 = vmatmul.mubr.bf16.gmra.mrb[0].mxu0 %v1443
        %v2947 = vpop.f32.mrb[0].mxu0
        %v2948 = vadd.f32 %v2659, %v2947
        %v2949 = vpop.f32.mrb[0].mxu0
        %v2950 = vpop.f32.mrb[0].mxu0
        %v2951 = vadd.f32 %v2662, %v2950
        %v2952 = vpop.f32.mrb[0].mxu0
        %2953 = vmatprep.mubr.bf16.mxu0 %v1452
        %2954 = vmatmul.mubr.bf16.gmra.mrb[0].mxu0 %v1451
        %v2955 = vpop.f32.mrb[0].mxu0
        %v2956 = vadd.f32 %v2667, %v2955
        %v2957 = vpop.f32.mrb[0].mxu0
        %v2958 = vpop.f32.mrb[0].mxu0
        %v2959 = vadd.f32 %v2670, %v2958
        %v2960 = vpop.f32.mrb[0].mxu0
        %2961 = vmatprep.mubr.bf16.mxu0 %v1460
        %2962 = vmatmul.mubr.bf16.gmra.mrb[0].mxu0 %v1459
        %v2963 = vpop.f32.mrb[0].mxu0
        %v2964 = vadd.f32 %v2675, %v2963
        %v2965 = vpop.f32.mrb[0].mxu0
        %v2966 = vpop.f32.mrb[0].mxu0
        %v2967 = vadd.f32 %v2678, %v2966
        %v2968 = vpop.f32.mrb[0].mxu0
        %2969 = vmatprep.mubr.bf16.mxu0 %v1468
        %2970 = vmatmul.mubr.bf16.gmra.mrb[0].mxu0 %v1467
        %v2971 = vpop.f32.mrb[0].mxu0
        %v2972 = vadd.f32 %v2683, %v2971
        %v2973 = vpop.f32.mrb[0].mxu0
        %v2974 = vpop.f32.mrb[0].mxu0
        %v2975 = vadd.f32 %v2686, %v2974
        %v2976 = vpop.f32.mrb[0].mxu0
        %2977 = vmatprep.mubr.bf16.mxu0 %v1476
        %2978 = vmatmul.mubr.bf16.gmra.mrb[0].mxu0 %v1475
        %v2979 = vpop.f32.mrb[0].mxu0
        %v2980 = vadd.f32 %v2691, %v2979
        %v2981 = vpop.f32.mrb[0].mxu0
        %v2982 = vpop.f32.mrb[0].mxu0
        %v2983 = vadd.f32 %v2694, %v2982
        %v2984 = vpop.f32.mrb[0].mxu0
        %2985 = vmatprep.mubr.bf16.mxu0 %v1484
        %2986 = vmatmul.mubr.bf16.gmra.mrb[0].mxu0 %v1483
        %v2987 = vpop.f32.mrb[0].mxu0
        %v2988 = vadd.f32 %v2699, %v2987
        %v2989 = vpop.f32.mrb[0].mxu0
        %v2990 = vpop.f32.mrb[0].mxu0
        %v2991 = vadd.f32 %v2702, %v2990
        %v2992 = vpop.f32.mrb[0].mxu0
        %2993 = vmatprep.mubr.bf16.mxu0 %v1492
        %2994 = vmatmul.mubr.bf16.gmra.mrb[0].mxu0 %v1491
        %v2995 = vpop.f32.mrb[0].mxu0
        %v2996 = vadd.f32 %v2707, %v2995
        %v2997 = vpop.f32.mrb[0].mxu0
        %v2998 = vpop.f32.mrb[0].mxu0
        %v2999 = vadd.f32 %v2710, %v2998
        %v3000 = vpop.f32.mrb[0].mxu0
        %3001 = vmatprep.mubr.bf16.mxu0 %v1500
        %3002 = vmatmul.mubr.bf16.gmra.mrb[0].mxu0 %v1499
        %v3003 = vpop.f32.mrb[0].mxu0
        %v3004 = vadd.f32 %v2715, %v3003
        %v3005 = vpop.f32.mrb[0].mxu0
        %v3006 = vpop.f32.mrb[0].mxu0
        %v3007 = vadd.f32 %v2718, %v3006
        %v3008 = vpop.f32.mrb[0].mxu0
        %3009 = vmatprep.mubr.bf16.mxu0 %v1508
        %3010 = vmatmul.mubr.bf16.gmra.mrb[0].mxu0 %v1507
        %v3011 = vpop.f32.mrb[0].mxu0
        %v3012 = vadd.f32 %v2723, %v3011
        %v3013 = vpop.f32.mrb[0].mxu0
        %v3014 = vpop.f32.mrb[0].mxu0
        %v3015 = vadd.f32 %v2726, %v3014
        %v3016 = vpop.f32.mrb[0].mxu0
        %3017 = vmatprep.mubr.bf16.mxu0 %v1516
        %3018 = vmatmul.mubr.bf16.gmra.mrb[0].mxu0 %v1515
        %v3019 = vpop.f32.mrb[0].mxu0
        %v3020 = vadd.f32 %v2731, %v3019
        %v3021 = vpop.f32.mrb[0].mxu0
        %v3022 = vpop.f32.mrb[0].mxu0
        %v3023 = vadd.f32 %v2734, %v3022
        %v3024 = vpop.f32.mrb[0].mxu0
        %3025 = vmatprep.mubr.bf16.mxu0 %v1524
        %3026 = vmatmul.mubr.bf16.gmra.mrb[0].mxu0 %v1523
        %v3027 = vpop.f32.mrb[0].mxu0
        %v3028 = vadd.f32 %v2739, %v3027
        %v3029 = vpop.f32.mrb[0].mxu0
        %v3030 = vpop.f32.mrb[0].mxu0
        %v3031 = vadd.f32 %v2742, %v3030
        %v3032 = vpop.f32.mrb[0].mxu0
        %3033 = vmatprep.mubr.bf16.mxu0 %v1532
        %3034 = vmatmul.mubr.bf16.gmra.mrb[0].mxu0 %v1531
        %v3035 = vpop.f32.mrb[0].mxu0
        %v3036 = vadd.f32 %v2747, %v3035
        %v3037 = vpop.f32.mrb[0].mxu0
        %v3038 = vpop.f32.mrb[0].mxu0
        %v3039 = vadd.f32 %v2750, %v3038
        %v3040 = vpop.f32.mrb[0].mxu0
        %3041 = vmatprep.mubr.bf16.mxu0 %v1540
        %3042 = vmatmul.mubr.bf16.gmra.mrb[0].mxu0 %v1539
        %v3043 = vpop.f32.mrb[0].mxu0
        %v3044 = vadd.f32 %v2755, %v3043
        %v3045 = vpop.f32.mrb[0].mxu0
        %v3046 = vpop.f32.mrb[0].mxu0
        %v3047 = vadd.f32 %v2758, %v3046
        %v3048 = vpop.f32.mrb[0].mxu0
        %3049 = vmatprep.mubr.bf16.mxu0 %v1548
        %3050 = vmatmul.mubr.bf16.gmra.mrb[0].mxu0 %v1547
        %v3051 = vpop.f32.mrb[0].mxu0
        %v3052 = vadd.f32 %v2763, %v3051
        %v3053 = vpop.f32.mrb[0].mxu0
        %v3054 = vpop.f32.mrb[0].mxu0
        %v3055 = vadd.f32 %v2766, %v3054
        %v3056 = vpop.f32.mrb[0].mxu0
        %3057 = vmatprep.mubr.bf16.mxu0 %v1556
        %3058 = vmatmul.mubr.bf16.gmra.mrb[0].mxu0 %v1555
        %v3059 = vpop.f32.mrb[0].mxu0
        %v3060 = vadd.f32 %v2771, %v3059
        %v3061 = vpop.f32.mrb[0].mxu0
        %v3062 = vpop.f32.mrb[0].mxu0
        %v3063 = vadd.f32 %v2774, %v3062
        %v3064 = vpop.f32.mrb[0].mxu0
        %3065 = vmatprep.mubr.bf16.mxu0 %v1564
        %3066 = vmatmul.mubr.bf16.gmra.mrb[0].mxu0 %v1563
        %v3067 = vpop.f32.mrb[0].mxu0
        %v3068 = vadd.f32 %v2779, %v3067
        %v3069 = vpop.f32.mrb[0].mxu0
        %v3070 = vpop.f32.mrb[0].mxu0
        %v3071 = vadd.f32 %v2782, %v3070
        %v3072 = vpop.f32.mrb[0].mxu0
        %3073 = vmatprep.mubr.bf16.mxu0 %v1572
        %3074 = vmatmul.mubr.bf16.gmra.mrb[0].mxu0 %v1571
        %v3075 = vpop.f32.mrb[0].mxu0
        %v3076 = vadd.f32 %v2787, %v3075
        %v3077 = vpop.f32.mrb[0].mxu0
        %v3078 = vpop.f32.mrb[0].mxu0
        %v3079 = vadd.f32 %v2790, %v3078
        %v3080 = vpop.f32.mrb[0].mxu0
        %3081 = vmatprep.mubr.bf16.mxu0 %v1580
        %3082 = vmatmul.mubr.bf16.gmra.mrb[0].mxu0 %v1579
        %v3083 = vpop.f32.mrb[0].mxu0
        %v3084 = vadd.f32 %v2795, %v3083
        %v3085 = vpop.f32.mrb[0].mxu0
        %v3086 = vpop.f32.mrb[0].mxu0
        %v3087 = vadd.f32 %v2798, %v3086
        %v3088 = vpop.f32.mrb[0].mxu0
        %3089 = vmatprep.mubr.bf16.mxu0 %v1588
        %3090 = vmatmul.mubr.bf16.gmra.mrb[0].mxu0 %v1587
        %v3091 = vpop.f32.mrb[0].mxu0
        %v3092 = vadd.f32 %v2803, %v3091
        %v3093 = vpop.f32.mrb[0].mxu0
        %v3094 = vpop.f32.mrb[0].mxu0
        %v3095 = vadd.f32 %v2806, %v3094
        %v3096 = vpop.f32.mrb[0].mxu0
        %3097 = vmatprep.mubr.bf16.mxu0 %v1596
        %3098 = vmatmul.mubr.bf16.gmra.mrb[0].mxu0 %v1595
        %v3099 = vpop.f32.mrb[0].mxu0
        %v3100 = vadd.f32 %v2811, %v3099
        %v3101 = vpop.f32.mrb[0].mxu0
        %v3102 = vpop.f32.mrb[0].mxu0
        %v3103 = vadd.f32 %v2814, %v3102
        %v3104 = vpop.f32.mrb[0].mxu0
        %3105 = vmatprep.mubr.bf16.mxu0 %v1604
        %3106 = vmatmul.mubr.bf16.gmra.mrb[0].mxu0 %v1603
        %v3107 = vpop.f32.mrb[0].mxu0
        %v3108 = vadd.f32 %v2819, %v3107
        %v3109 = vpop.f32.mrb[0].mxu0
        %v3110 = vpop.f32.mrb[0].mxu0
        %v3111 = vadd.f32 %v2822, %v3110
        %v3112 = vpop.f32.mrb[0].mxu0
        %3113 = vmatprep.mubr.bf16.mxu0 %v1612
        %3114 = vmatmul.mubr.bf16.gmra.mrb[0].mxu0 %v1611
        %v3115 = vpop.f32.mrb[0].mxu0
        %v3116 = vadd.f32 %v2827, %v3115
        %v3117 = vpop.f32.mrb[0].mxu0
        %v3118 = vpop.f32.mrb[0].mxu0
        %v3119 = vadd.f32 %v2830, %v3118
        %v3120 = vpop.f32.mrb[0].mxu0
        %3121 = vmatprep.mubr.bf16.mxu0 %v1620
        %3122 = vmatmul.mubr.bf16.gmra.mrb[0].mxu0 %v1619
        %v3123 = vpop.f32.mrb[0].mxu0
        %v3124 = vadd.f32 %v2835, %v3123
        %v3125 = vpop.f32.mrb[0].mxu0
        %v3126 = vpop.f32.mrb[0].mxu0
        %v3127 = vadd.f32 %v2838, %v3126
        %v3128 = vpop.f32.mrb[0].mxu0
        %3129 = vmatprep.mubr.bf16.mxu0 %v1628
        %3130 = vmatmul.mubr.bf16.gmra.mrb[0].mxu0 %v1627
        %v3131 = vpop.f32.mrb[0].mxu0
        %v3132 = vadd.f32 %v2843, %v3131
        %v3133 = vpop.f32.mrb[0].mxu0
        %v3134 = vpop.f32.mrb[0].mxu0
        %v3135 = vadd.f32 %v2846, %v3134
        %v3136 = vpop.f32.mrb[0].mxu0
        %3137 = vmatprep.mubr.bf16.mxu0 %v1636
        %3138 = vmatmul.mubr.bf16.gmra.mrb[0].mxu0 %v1635
        %v3139 = vpop.f32.mrb[0].mxu0
        %v3140 = vadd.f32 %v2851, %v3139
        %v3141 = vpop.f32.mrb[0].mxu0
        %v3142 = vpop.f32.mrb[0].mxu0
        %v3143 = vadd.f32 %v2854, %v3142
        %v3144 = vpop.f32.mrb[0].mxu0
        %3145 = vmatprep.mubr.bf16.mxu0 %v1644
        %3146 = vmatmul.mubr.bf16.gmra.mrb[0].mxu0 %v1643
        %v3147 = vpop.f32.mrb[0].mxu0
        %v3148 = vadd.f32 %v2859, %v3147
        %v3149 = vpop.f32.mrb[0].mxu0
        %v3150 = vpop.f32.mrb[0].mxu0
        %v3151 = vadd.f32 %v2862, %v3150
        %v3152 = vpop.f32.mrb[0].mxu0
        %3153 = vmatprep.mubr.bf16.mxu0 %v1652
        %3154 = vmatmul.mubr.bf16.gmra.mrb[0].mxu0 %v1651
        %v3155 = vpop.f32.mrb[0].mxu0
        %v3156 = vadd.f32 %v2867, %v3155
        %v3157 = vpop.f32.mrb[0].mxu0
        %v3158 = vpop.f32.mrb[0].mxu0
        %v3159 = vadd.f32 %v2870, %v3158
        %v3160 = vpop.f32.mrb[0].mxu0
        %3161 = vdwg.mxu0
        %3162 = vmatprep.subr.bf16.mxu0 0
        %3163 = vmatpush1.bf16.msra.mxu0 %v2215
        %3164 = vmatprep.subr.bf16.mxu0 0
        %3165 = vmatpush1.bf16.msra.mxu0 %v2216
        %3166 = vmatprep.subr.bf16.mxu0 0
        %3167 = vmatpush1.bf16.msra.mxu0 %v2217
        %3168 = vmatprep.subr.bf16.mxu0 0
        %3169 = vmatpush1.bf16.msra.mxu0 %v2218
        %3170 = vmatprep.subr.bf16.mxu0 0
        %3171 = vmatpush1.bf16.msra.mxu0 %v2219
        %3172 = vmatprep.subr.bf16.mxu0 0
        %3173 = vmatpush1.bf16.msra.mxu0 %v2220
        %3174 = vmatprep.subr.bf16.mxu0 0
        %3175 = vmatpush1.bf16.msra.mxu0 %v2221
        %3176 = vmatprep.subr.bf16.mxu0 0
        %3177 = vmatpush1.bf16.msra.mxu0 %v2222
        %3178 = vmatprep.subr.bf16.mxu0 0
        %3179 = vmatpush1.bf16.msra.mxu0 %v2223
        %3180 = vmatprep.subr.bf16.mxu0 0
        %3181 = vmatpush1.bf16.msra.mxu0 %v2224
        %3182 = vmatprep.subr.bf16.mxu0 0
        %3183 = vmatpush1.bf16.msra.mxu0 %v2225
        %3184 = vmatprep.subr.bf16.mxu0 0
        %3185 = vmatpush1.bf16.msra.mxu0 %v2226
        %3186 = vmatprep.subr.bf16.mxu0 0
        %3187 = vmatpush1.bf16.msra.mxu0 %v2227
        %3188 = vmatprep.subr.bf16.mxu0 0
        %3189 = vmatpush1.bf16.msra.mxu0 %v2228
        %3190 = vmatprep.subr.bf16.mxu0 0
        %3191 = vmatpush1.bf16.msra.mxu0 %v2229
        %3192 = vmatprep.subr.bf16.mxu0 0
        %3193 = vmatpush1.bf16.msra.mxu0 %v2230
        %3194 = vmatprep.mubr.bf16.mxu0 %v1406
        %3195 = vmatmul.mubr.bf16.gmra.mrb[0].mxu0 %v1405
        %v3196 = vpop.f32.mrb[0].mxu0
        %v3197 = vadd.f32 %v2908, %v3196
        %v3198 = vpop.f32.mrb[0].mxu0
        %v3199 = vpop.f32.mrb[0].mxu0
        %v3200 = vadd.f32 %v2911, %v3199
        %v3201 = vpop.f32.mrb[0].mxu0
        %3202 = vmatprep.mubr.bf16.mxu0 %v1414
        %3203 = vmatmul.mubr.bf16.gmra.mrb[0].mxu0 %v1413
        %v3204 = vpop.f32.mrb[0].mxu0
        %v3205 = vadd.f32 %v2916, %v3204
        %v3206 = vpop.f32.mrb[0].mxu0
        %v3207 = vpop.f32.mrb[0].mxu0
        %v3208 = vadd.f32 %v2919, %v3207
        %v3209 = vpop.f32.mrb[0].mxu0
        %3210 = vmatprep.mubr.bf16.mxu0 %v1422
        %3211 = vmatmul.mubr.bf16.gmra.mrb[0].mxu0 %v1421
        %v3212 = vpop.f32.mrb[0].mxu0
        %v3213 = vadd.f32 %v2924, %v3212
        %v3214 = vpop.f32.mrb[0].mxu0
        %v3215 = vpop.f32.mrb[0].mxu0
        %v3216 = vadd.f32 %v2927, %v3215
        %v3217 = vpop.f32.mrb[0].mxu0
        %3218 = vmatprep.mubr.bf16.mxu0 %v1430
        %3219 = vmatmul.mubr.bf16.gmra.mrb[0].mxu0 %v1429
        %v3220 = vpop.f32.mrb[0].mxu0
        %v3221 = vadd.f32 %v2932, %v3220
        %v3222 = vpop.f32.mrb[0].mxu0
        %v3223 = vpop.f32.mrb[0].mxu0
        %v3224 = vadd.f32 %v2935, %v3223
        %v3225 = vpop.f32.mrb[0].mxu0
        %3226 = vmatprep.mubr.bf16.mxu0 %v1438
        %3227 = vmatmul.mubr.bf16.gmra.mrb[0].mxu0 %v1437
        %v3228 = vpop.f32.mrb[0].mxu0
        %v3229 = vadd.f32 %v2940, %v3228
        %v3230 = vpop.f32.mrb[0].mxu0
        %v3231 = vpop.f32.mrb[0].mxu0
        %v3232 = vadd.f32 %v2943, %v3231
        %v3233 = vpop.f32.mrb[0].mxu0
        %3234 = vmatprep.mubr.bf16.mxu0 %v1446
        %3235 = vmatmul.mubr.bf16.gmra.mrb[0].mxu0 %v1445
        %v3236 = vpop.f32.mrb[0].mxu0
        %v3237 = vadd.f32 %v2948, %v3236
        %v3238 = vpop.f32.mrb[0].mxu0
        %v3239 = vpop.f32.mrb[0].mxu0
        %v3240 = vadd.f32 %v2951, %v3239
        %v3241 = vpop.f32.mrb[0].mxu0
        %3242 = vmatprep.mubr.bf16.mxu0 %v1454
        %3243 = vmatmul.mubr.bf16.gmra.mrb[0].mxu0 %v1453
        %v3244 = vpop.f32.mrb[0].mxu0
        %v3245 = vadd.f32 %v2956, %v3244
        %v3246 = vpop.f32.mrb[0].mxu0
        %v3247 = vpop.f32.mrb[0].mxu0
        %v3248 = vadd.f32 %v2959, %v3247
        %v3249 = vpop.f32.mrb[0].mxu0
        %3250 = vmatprep.mubr.bf16.mxu0 %v1462
        %3251 = vmatmul.mubr.bf16.gmra.mrb[0].mxu0 %v1461
        %v3252 = vpop.f32.mrb[0].mxu0
        %v3253 = vadd.f32 %v2964, %v3252
        %v3254 = vpop.f32.mrb[0].mxu0
        %v3255 = vpop.f32.mrb[0].mxu0
        %v3256 = vadd.f32 %v2967, %v3255
        %v3257 = vpop.f32.mrb[0].mxu0
        %3258 = vmatprep.mubr.bf16.mxu0 %v1470
        %3259 = vmatmul.mubr.bf16.gmra.mrb[0].mxu0 %v1469
        %v3260 = vpop.f32.mrb[0].mxu0
        %v3261 = vadd.f32 %v2972, %v3260
        %v3262 = vpop.f32.mrb[0].mxu0
        %v3263 = vpop.f32.mrb[0].mxu0
        %v3264 = vadd.f32 %v2975, %v3263
        %v3265 = vpop.f32.mrb[0].mxu0
        %3266 = vmatprep.mubr.bf16.mxu0 %v1478
        %3267 = vmatmul.mubr.bf16.gmra.mrb[0].mxu0 %v1477
        %v3268 = vpop.f32.mrb[0].mxu0
        %v3269 = vadd.f32 %v2980, %v3268
        %v3270 = vpop.f32.mrb[0].mxu0
        %v3271 = vpop.f32.mrb[0].mxu0
        %v3272 = vadd.f32 %v2983, %v3271
        %v3273 = vpop.f32.mrb[0].mxu0
        %3274 = vmatprep.mubr.bf16.mxu0 %v1486
        %3275 = vmatmul.mubr.bf16.gmra.mrb[0].mxu0 %v1485
        %v3276 = vpop.f32.mrb[0].mxu0
        %v3277 = vadd.f32 %v2988, %v3276
        %v3278 = vpop.f32.mrb[0].mxu0
        %v3279 = vpop.f32.mrb[0].mxu0
        %v3280 = vadd.f32 %v2991, %v3279
        %v3281 = vpop.f32.mrb[0].mxu0
        %3282 = vmatprep.mubr.bf16.mxu0 %v1494
        %3283 = vmatmul.mubr.bf16.gmra.mrb[0].mxu0 %v1493
        %v3284 = vpop.f32.mrb[0].mxu0
        %v3285 = vadd.f32 %v2996, %v3284
        %v3286 = vpop.f32.mrb[0].mxu0
        %v3287 = vpop.f32.mrb[0].mxu0
        %v3288 = vadd.f32 %v2999, %v3287
        %v3289 = vpop.f32.mrb[0].mxu0
        %3290 = vmatprep.mubr.bf16.mxu0 %v1502
        %3291 = vmatmul.mubr.bf16.gmra.mrb[0].mxu0 %v1501
        %v3292 = vpop.f32.mrb[0].mxu0
        %v3293 = vadd.f32 %v3004, %v3292
        %v3294 = vpop.f32.mrb[0].mxu0
        %v3295 = vpop.f32.mrb[0].mxu0
        %v3296 = vadd.f32 %v3007, %v3295
        %v3297 = vpop.f32.mrb[0].mxu0
        %3298 = vmatprep.mubr.bf16.mxu0 %v1510
        %3299 = vmatmul.mubr.bf16.gmra.mrb[0].mxu0 %v1509
        %v3300 = vpop.f32.mrb[0].mxu0
        %v3301 = vadd.f32 %v3012, %v3300
        %v3302 = vpop.f32.mrb[0].mxu0
        %v3303 = vpop.f32.mrb[0].mxu0
        %v3304 = vadd.f32 %v3015, %v3303
        %v3305 = vpop.f32.mrb[0].mxu0
        %3306 = vmatprep.mubr.bf16.mxu0 %v1518
        %3307 = vmatmul.mubr.bf16.gmra.mrb[0].mxu0 %v1517
        %v3308 = vpop.f32.mrb[0].mxu0
        %v3309 = vadd.f32 %v3020, %v3308
        %v3310 = vpop.f32.mrb[0].mxu0
        %v3311 = vpop.f32.mrb[0].mxu0
        %v3312 = vadd.f32 %v3023, %v3311
        %v3313 = vpop.f32.mrb[0].mxu0
        %3314 = vmatprep.mubr.bf16.mxu0 %v1526
        %3315 = vmatmul.mubr.bf16.gmra.mrb[0].mxu0 %v1525
        %v3316 = vpop.f32.mrb[0].mxu0
        %v3317 = vadd.f32 %v3028, %v3316
        %v3318 = vpop.f32.mrb[0].mxu0
        %v3319 = vpop.f32.mrb[0].mxu0
        %v3320 = vadd.f32 %v3031, %v3319
        %v3321 = vpop.f32.mrb[0].mxu0
        %3322 = vmatprep.mubr.bf16.mxu0 %v1534
        %3323 = vmatmul.mubr.bf16.gmra.mrb[0].mxu0 %v1533
        %v3324 = vpop.f32.mrb[0].mxu0
        %v3325 = vadd.f32 %v3036, %v3324
        %v3326 = vpop.f32.mrb[0].mxu0
        %v3327 = vpop.f32.mrb[0].mxu0
        %v3328 = vadd.f32 %v3039, %v3327
        %v3329 = vpop.f32.mrb[0].mxu0
        %3330 = vmatprep.mubr.bf16.mxu0 %v1542
        %3331 = vmatmul.mubr.bf16.gmra.mrb[0].mxu0 %v1541
        %v3332 = vpop.f32.mrb[0].mxu0
        %v3333 = vadd.f32 %v3044, %v3332
        %v3334 = vpop.f32.mrb[0].mxu0
        %v3335 = vpop.f32.mrb[0].mxu0
        %v3336 = vadd.f32 %v3047, %v3335
        %v3337 = vpop.f32.mrb[0].mxu0
        %3338 = vmatprep.mubr.bf16.mxu0 %v1550
        %3339 = vmatmul.mubr.bf16.gmra.mrb[0].mxu0 %v1549
        %v3340 = vpop.f32.mrb[0].mxu0
        %v3341 = vadd.f32 %v3052, %v3340
        %v3342 = vpop.f32.mrb[0].mxu0
        %v3343 = vpop.f32.mrb[0].mxu0
        %v3344 = vadd.f32 %v3055, %v3343
        %v3345 = vpop.f32.mrb[0].mxu0
        %3346 = vmatprep.mubr.bf16.mxu0 %v1558
        %3347 = vmatmul.mubr.bf16.gmra.mrb[0].mxu0 %v1557
        %v3348 = vpop.f32.mrb[0].mxu0
        %v3349 = vadd.f32 %v3060, %v3348
        %v3350 = vpop.f32.mrb[0].mxu0
        %v3351 = vpop.f32.mrb[0].mxu0
        %v3352 = vadd.f32 %v3063, %v3351
        %v3353 = vpop.f32.mrb[0].mxu0
        %3354 = vmatprep.mubr.bf16.mxu0 %v1566
        %3355 = vmatmul.mubr.bf16.gmra.mrb[0].mxu0 %v1565
        %v3356 = vpop.f32.mrb[0].mxu0
        %v3357 = vadd.f32 %v3068, %v3356
        %v3358 = vpop.f32.mrb[0].mxu0
        %v3359 = vpop.f32.mrb[0].mxu0
        %v3360 = vadd.f32 %v3071, %v3359
        %v3361 = vpop.f32.mrb[0].mxu0
        %3362 = vmatprep.mubr.bf16.mxu0 %v1574
        %3363 = vmatmul.mubr.bf16.gmra.mrb[0].mxu0 %v1573
        %v3364 = vpop.f32.mrb[0].mxu0
        %v3365 = vadd.f32 %v3076, %v3364
        %v3366 = vpop.f32.mrb[0].mxu0
        %v3367 = vpop.f32.mrb[0].mxu0
        %v3368 = vadd.f32 %v3079, %v3367
        %v3369 = vpop.f32.mrb[0].mxu0
        %3370 = vmatprep.mubr.bf16.mxu0 %v1582
        %3371 = vmatmul.mubr.bf16.gmra.mrb[0].mxu0 %v1581
        %v3372 = vpop.f32.mrb[0].mxu0
        %v3373 = vadd.f32 %v3084, %v3372
        %v3374 = vpop.f32.mrb[0].mxu0
        %v3375 = vpop.f32.mrb[0].mxu0
        %v3376 = vadd.f32 %v3087, %v3375
        %v3377 = vpop.f32.mrb[0].mxu0
        %3378 = vmatprep.mubr.bf16.mxu0 %v1590
        %3379 = vmatmul.mubr.bf16.gmra.mrb[0].mxu0 %v1589
        %v3380 = vpop.f32.mrb[0].mxu0
        %v3381 = vadd.f32 %v3092, %v3380
        %v3382 = vpop.f32.mrb[0].mxu0
        %v3383 = vpop.f32.mrb[0].mxu0
        %v3384 = vadd.f32 %v3095, %v3383
        %v3385 = vpop.f32.mrb[0].mxu0
        %3386 = vmatprep.mubr.bf16.mxu0 %v1598
        %3387 = vmatmul.mubr.bf16.gmra.mrb[0].mxu0 %v1597
        %v3388 = vpop.f32.mrb[0].mxu0
        %v3389 = vadd.f32 %v3100, %v3388
        %v3390 = vpop.f32.mrb[0].mxu0
        %v3391 = vpop.f32.mrb[0].mxu0
        %v3392 = vadd.f32 %v3103, %v3391
        %v3393 = vpop.f32.mrb[0].mxu0
        %3394 = vmatprep.mubr.bf16.mxu0 %v1606
        %3395 = vmatmul.mubr.bf16.gmra.mrb[0].mxu0 %v1605
        %v3396 = vpop.f32.mrb[0].mxu0
        %v3397 = vadd.f32 %v3108, %v3396
        %v3398 = vpop.f32.mrb[0].mxu0
        %v3399 = vpop.f32.mrb[0].mxu0
        %v3400 = vadd.f32 %v3111, %v3399
        %v3401 = vpop.f32.mrb[0].mxu0
        %3402 = vmatprep.mubr.bf16.mxu0 %v1614
        %3403 = vmatmul.mubr.bf16.gmra.mrb[0].mxu0 %v1613
        %v3404 = vpop.f32.mrb[0].mxu0
        %v3405 = vadd.f32 %v3116, %v3404
        %v3406 = vpop.f32.mrb[0].mxu0
        %v3407 = vpop.f32.mrb[0].mxu0
        %v3408 = vadd.f32 %v3119, %v3407
        %v3409 = vpop.f32.mrb[0].mxu0
        %3410 = vmatprep.mubr.bf16.mxu0 %v1622
        %3411 = vmatmul.mubr.bf16.gmra.mrb[0].mxu0 %v1621
        %v3412 = vpop.f32.mrb[0].mxu0
        %v3413 = vadd.f32 %v3124, %v3412
        %v3414 = vpop.f32.mrb[0].mxu0
        %v3415 = vpop.f32.mrb[0].mxu0
        %v3416 = vadd.f32 %v3127, %v3415
        %v3417 = vpop.f32.mrb[0].mxu0
        %3418 = vmatprep.mubr.bf16.mxu0 %v1630
        %3419 = vmatmul.mubr.bf16.gmra.mrb[0].mxu0 %v1629
        %v3420 = vpop.f32.mrb[0].mxu0
        %v3421 = vadd.f32 %v3132, %v3420
        %v3422 = vpop.f32.mrb[0].mxu0
        %v3423 = vpop.f32.mrb[0].mxu0
        %v3424 = vadd.f32 %v3135, %v3423
        %v3425 = vpop.f32.mrb[0].mxu0
        %3426 = vmatprep.mubr.bf16.mxu0 %v1638
        %3427 = vmatmul.mubr.bf16.gmra.mrb[0].mxu0 %v1637
        %v3428 = vpop.f32.mrb[0].mxu0
        %v3429 = vadd.f32 %v3140, %v3428
        %v3430 = vpop.f32.mrb[0].mxu0
        %v3431 = vpop.f32.mrb[0].mxu0
        %v3432 = vadd.f32 %v3143, %v3431
        %v3433 = vpop.f32.mrb[0].mxu0
        %3434 = vmatprep.mubr.bf16.mxu0 %v1646
        %3435 = vmatmul.mubr.bf16.gmra.mrb[0].mxu0 %v1645
        %v3436 = vpop.f32.mrb[0].mxu0
        %v3437 = vadd.f32 %v3148, %v3436
        %v3438 = vpop.f32.mrb[0].mxu0
        %v3439 = vpop.f32.mrb[0].mxu0
        %v3440 = vadd.f32 %v3151, %v3439
        %v3441 = vpop.f32.mrb[0].mxu0
        %3442 = vmatprep.mubr.bf16.mxu0 %v1654
        %3443 = vmatmul.mubr.bf16.gmra.mrb[0].mxu0 %v1653
        %v3444 = vpop.f32.mrb[0].mxu0
        %v3445 = vadd.f32 %v3156, %v3444
        %v3446 = vpop.f32.mrb[0].mxu0
        %v3447 = vpop.f32.mrb[0].mxu0
        %v3448 = vadd.f32 %v3159, %v3447
        %v3449 = vpop.f32.mrb[0].mxu0
        %3450 = vdwg.mxu0
        %v3451 = vpack.c.bf16 %v3200, %v3197
        %v3452 = vpack.c.bf16 %v3208, %v3205
        %v3453 = vpack.c.bf16 %v3216, %v3213
        %v3454 = vpack.c.bf16 %v3224, %v3221
        %v3455 = vpack.c.bf16 %v3232, %v3229
        %v3456 = vpack.c.bf16 %v3240, %v3237
        %v3457 = vpack.c.bf16 %v3248, %v3245
        %v3458 = vpack.c.bf16 %v3256, %v3253
        %v3459 = vpack.c.bf16 %v3264, %v3261
        %v3460 = vpack.c.bf16 %v3272, %v3269
        %v3461 = vpack.c.bf16 %v3280, %v3277
        %v3462 = vpack.c.bf16 %v3288, %v3285
        %v3463 = vpack.c.bf16 %v3296, %v3293
        %v3464 = vpack.c.bf16 %v3304, %v3301
        %v3465 = vpack.c.bf16 %v3312, %v3309
        %v3466 = vpack.c.bf16 %v3320, %v3317
        %v3467 = vpack.c.bf16 %v3328, %v3325
        %v3468 = vpack.c.bf16 %v3336, %v3333
        %v3469 = vpack.c.bf16 %v3344, %v3341
        %v3470 = vpack.c.bf16 %v3352, %v3349
        %v3471 = vpack.c.bf16 %v3360, %v3357
        %v3472 = vpack.c.bf16 %v3368, %v3365
        %v3473 = vpack.c.bf16 %v3376, %v3373
        %v3474 = vpack.c.bf16 %v3384, %v3381
        %v3475 = vpack.c.bf16 %v3392, %v3389
        %v3476 = vpack.c.bf16 %v3400, %v3397
        %v3477 = vpack.c.bf16 %v3408, %v3405
        %v3478 = vpack.c.bf16 %v3416, %v3413
        %v3479 = vpack.c.bf16 %v3424, %v3421
        %v3480 = vpack.c.bf16 %v3432, %v3429
        %v3481 = vpack.c.bf16 %v3440, %v3437
        %v3482 = vpack.c.bf16 %v3448, %v3445
        %v3483 = vld [vmem:[#allocation5] sm:$0xf]
        %v3484 = vld [vmem:[#allocation5 + $0x4] sm:$0xf]
        %v3485 = vld [vmem:[#allocation7] sm:$0x1]
        %v3487 = vlaneseq
        %v3488 = vshrl.u32 %v3487, 7
        %v3489 = vsub.s32 0, %v3488
        %v3490 = vrot.slane %v3485, %v3489
        %v3494 = vunpack.c.l.b16 %v3483
        %v3495 = vunpack.c.l.b16 %v3484
        %v3496 = vpack.c.b16 %v3495, %v3494
        %vm3498 = vcmask 130048
        %v3500 = vsel %vm3498, %v3451, 0
        %v3503 = vsel %vm3498, %v3452, 0
        %v3506 = vsel %vm3498, %v3453, 0
        %v3509 = vsel %vm3498, %v3454, 0
        %v3512 = vsel %vm3498, %v3455, 0
        %v3515 = vsel %vm3498, %v3456, 0
        %v3518 = vsel %vm3498, %v3457, 0
        %v3521 = vsel %vm3498, %v3458, 0
        %v3524 = vsel %vm3498, %v3459, 0
        %v3527 = vsel %vm3498, %v3460, 0
        %v3530 = vsel %vm3498, %v3461, 0
        %v3533 = vsel %vm3498, %v3462, 0
        %v3536 = vsel %vm3498, %v3463, 0
        %v3539 = vsel %vm3498, %v3464, 0
        %v3542 = vsel %vm3498, %v3465, 0
        %v3545 = vsel %vm3498, %v3466, 0
        %v3548 = vsel %vm3498, %v3467, 0
        %v3551 = vsel %vm3498, %v3468, 0
        %v3554 = vsel %vm3498, %v3469, 0
        %v3557 = vsel %vm3498, %v3470, 0
        %v3560 = vsel %vm3498, %v3471, 0
        %v3563 = vsel %vm3498, %v3472, 0
        %v3566 = vsel %vm3498, %v3473, 0
        %v3569 = vsel %vm3498, %v3474, 0
        %v3572 = vsel %vm3498, %v3475, 0
        %v3575 = vsel %vm3498, %v3476, 0
        %v3578 = vsel %vm3498, %v3477, 0
        %v3581 = vsel %vm3498, %v3478, 0
        %v3584 = vsel %vm3498, %v3479, 0
        %v3587 = vsel %vm3498, %v3480, 0
        %v3590 = vsel %vm3498, %v3481, 0
        %v3593 = vsel %vm3498, %v3482, 0
        %3595 = vmatprep.subr.bf16.mxu0 0
        %3596 = vmatpush1.bf16.msra.mxu0 %v3496
        %3597 = vmatprep.subr.bf16.mxu0 0
        %3598 = vmatpush1.bf16.msra.mxu0 0
        %3599 = vmatprep.subr.bf16.mxu0 0
        %3600 = vmatpush1.bf16.msra.mxu0 0
        %3601 = vmatprep.subr.bf16.mxu0 0
        %3602 = vmatpush1.bf16.msra.mxu0 0
        %3603 = vmatprep.subr.bf16.mxu0 0
        %3604 = vmatpush1.bf16.msra.mxu0 0
        %3605 = vmatprep.subr.bf16.mxu0 0
        %3606 = vmatpush1.bf16.msra.mxu0 0
        %3607 = vmatprep.subr.bf16.mxu0 0
        %3608 = vmatpush1.bf16.msra.mxu0 0
        %3609 = vmatprep.subr.bf16.mxu0 0
        %3610 = vmatpush1.bf16.msra.mxu0 0
        %3611 = vmatprep.subr.bf16.mxu0 0
        %3612 = vmatpush1.bf16.msra.mxu0 0
        %3613 = vmatprep.subr.bf16.mxu0 0
        %3614 = vmatpush1.bf16.msra.mxu0 0
        %3615 = vmatprep.subr.bf16.mxu0 0
        %3616 = vmatpush1.bf16.msra.mxu0 0
        %3617 = vmatprep.subr.bf16.mxu0 0
        %3618 = vmatpush1.bf16.msra.mxu0 0
        %3619 = vmatprep.subr.bf16.mxu0 0
        %3620 = vmatpush1.bf16.msra.mxu0 0
        %3621 = vmatprep.subr.bf16.mxu0 0
        %3622 = vmatpush1.bf16.msra.mxu0 0
        %3623 = vmatprep.subr.bf16.mxu0 0
        %3624 = vmatpush1.bf16.msra.mxu0 0
        %3625 = vmatprep.subr.bf16.mxu0 0
        %3626 = vmatpush1.bf16.msra.mxu0 0
        %3627 = vmatprep.mubr.bf16.mxu0 0
        %3628 = vmatmul.mubr.bf16.gmra.mrb[0].mxu0 %v3500
        %v3629 = vpop.f32.mrb[0].mxu0
        %v3630 = vadd.f32 %v3490, %v3629
        %v3631 = vpop.f32.mrb[0].mxu0
        %v3632 = vpop.f32.mrb[0].mxu0
        %v3633 = vadd.f32 %v3490, %v3632
        %v3634 = vpop.f32.mrb[0].mxu0
        %3635 = vmatprep.mubr.bf16.mxu0 0
        %3636 = vmatmul.mubr.bf16.gmra.mrb[0].mxu0 %v3503
        %v3637 = vpop.f32.mrb[0].mxu0
        %v3638 = vadd.f32 %v3490, %v3637
        %v3639 = vpop.f32.mrb[0].mxu0
        %v3640 = vpop.f32.mrb[0].mxu0
        %v3641 = vadd.f32 %v3490, %v3640
        %v3642 = vpop.f32.mrb[0].mxu0
        %3643 = vmatprep.mubr.bf16.mxu0 0
        %3644 = vmatmul.mubr.bf16.gmra.mrb[0].mxu0 %v3506
        %v3645 = vpop.f32.mrb[0].mxu0
        %v3646 = vadd.f32 %v3490, %v3645
        %v3647 = vpop.f32.mrb[0].mxu0
        %v3648 = vpop.f32.mrb[0].mxu0
        %v3649 = vadd.f32 %v3490, %v3648
        %v3650 = vpop.f32.mrb[0].mxu0
        %3651 = vmatprep.mubr.bf16.mxu0 0
        %3652 = vmatmul.mubr.bf16.gmra.mrb[0].mxu0 %v3509
        %v3653 = vpop.f32.mrb[0].mxu0
        %v3654 = vadd.f32 %v3490, %v3653
        %v3655 = vpop.f32.mrb[0].mxu0
        %v3656 = vpop.f32.mrb[0].mxu0
        %v3657 = vadd.f32 %v3490, %v3656
        %v3658 = vpop.f32.mrb[0].mxu0
        %3659 = vmatprep.mubr.bf16.mxu0 0
        %3660 = vmatmul.mubr.bf16.gmra.mrb[0].mxu0 %v3512
        %v3661 = vpop.f32.mrb[0].mxu0
        %v3662 = vadd.f32 %v3490, %v3661
        %v3663 = vpop.f32.mrb[0].mxu0
        %v3664 = vpop.f32.mrb[0].mxu0
        %v3665 = vadd.f32 %v3490, %v3664
        %v3666 = vpop.f32.mrb[0].mxu0
        %3667 = vmatprep.mubr.bf16.mxu0 0
        %3668 = vmatmul.mubr.bf16.gmra.mrb[0].mxu0 %v3515
        %v3669 = vpop.f32.mrb[0].mxu0
        %v3670 = vadd.f32 %v3490, %v3669
        %v3671 = vpop.f32.mrb[0].mxu0
        %v3672 = vpop.f32.mrb[0].mxu0
        %v3673 = vadd.f32 %v3490, %v3672
        %v3674 = vpop.f32.mrb[0].mxu0
        %3675 = vmatprep.mubr.bf16.mxu0 0
        %3676 = vmatmul.mubr.bf16.gmra.mrb[0].mxu0 %v3518
        %v3677 = vpop.f32.mrb[0].mxu0
        %v3678 = vadd.f32 %v3490, %v3677
        %v3679 = vpop.f32.mrb[0].mxu0
        %v3680 = vpop.f32.mrb[0].mxu0
        %v3681 = vadd.f32 %v3490, %v3680
        %v3682 = vpop.f32.mrb[0].mxu0
        %3683 = vmatprep.mubr.bf16.mxu0 0
        %3684 = vmatmul.mubr.bf16.gmra.mrb[0].mxu0 %v3521
        %v3685 = vpop.f32.mrb[0].mxu0
        %v3686 = vadd.f32 %v3490, %v3685
        %v3687 = vpop.f32.mrb[0].mxu0
        %v3688 = vpop.f32.mrb[0].mxu0
        %v3689 = vadd.f32 %v3490, %v3688
        %v3690 = vpop.f32.mrb[0].mxu0
        %3691 = vmatprep.mubr.bf16.mxu0 0
        %3692 = vmatmul.mubr.bf16.gmra.mrb[0].mxu0 %v3524
        %v3693 = vpop.f32.mrb[0].mxu0
        %v3694 = vadd.f32 %v3490, %v3693
        %v3695 = vpop.f32.mrb[0].mxu0
        %v3696 = vpop.f32.mrb[0].mxu0
        %v3697 = vadd.f32 %v3490, %v3696
        %v3698 = vpop.f32.mrb[0].mxu0
        %3699 = vmatprep.mubr.bf16.mxu0 0
        %3700 = vmatmul.mubr.bf16.gmra.mrb[0].mxu0 %v3527
        %v3701 = vpop.f32.mrb[0].mxu0
        %v3702 = vadd.f32 %v3490, %v3701
        %v3703 = vpop.f32.mrb[0].mxu0
        %v3704 = vpop.f32.mrb[0].mxu0
        %v3705 = vadd.f32 %v3490, %v3704
        %v3706 = vpop.f32.mrb[0].mxu0
        %3707 = vmatprep.mubr.bf16.mxu0 0
        %3708 = vmatmul.mubr.bf16.gmra.mrb[0].mxu0 %v3530
        %v3709 = vpop.f32.mrb[0].mxu0
        %v3710 = vadd.f32 %v3490, %v3709
        %v3711 = vpop.f32.mrb[0].mxu0
        %v3712 = vpop.f32.mrb[0].mxu0
        %v3713 = vadd.f32 %v3490, %v3712
        %v3714 = vpop.f32.mrb[0].mxu0
        %3715 = vmatprep.mubr.bf16.mxu0 0
        %3716 = vmatmul.mubr.bf16.gmra.mrb[0].mxu0 %v3533
        %v3717 = vpop.f32.mrb[0].mxu0
        %v3718 = vadd.f32 %v3490, %v3717
        %v3719 = vpop.f32.mrb[0].mxu0
        %v3720 = vpop.f32.mrb[0].mxu0
        %v3721 = vadd.f32 %v3490, %v3720
        %v3722 = vpop.f32.mrb[0].mxu0
        %3723 = vmatprep.mubr.bf16.mxu0 0
        %3724 = vmatmul.mubr.bf16.gmra.mrb[0].mxu0 %v3536
        %v3725 = vpop.f32.mrb[0].mxu0
        %v3726 = vadd.f32 %v3490, %v3725
        %v3727 = vpop.f32.mrb[0].mxu0
        %v3728 = vpop.f32.mrb[0].mxu0
        %v3729 = vadd.f32 %v3490, %v3728
        %v3730 = vpop.f32.mrb[0].mxu0
        %3731 = vmatprep.mubr.bf16.mxu0 0
        %3732 = vmatmul.mubr.bf16.gmra.mrb[0].mxu0 %v3539
        %v3733 = vpop.f32.mrb[0].mxu0
        %v3734 = vadd.f32 %v3490, %v3733
        %v3735 = vpop.f32.mrb[0].mxu0
        %v3736 = vpop.f32.mrb[0].mxu0
        %v3737 = vadd.f32 %v3490, %v3736
        %v3738 = vpop.f32.mrb[0].mxu0
        %3739 = vmatprep.mubr.bf16.mxu0 0
        %3740 = vmatmul.mubr.bf16.gmra.mrb[0].mxu0 %v3542
        %v3741 = vpop.f32.mrb[0].mxu0
        %v3742 = vadd.f32 %v3490, %v3741
        %v3743 = vpop.f32.mrb[0].mxu0
        %v3744 = vpop.f32.mrb[0].mxu0
        %v3745 = vadd.f32 %v3490, %v3744
        %v3746 = vpop.f32.mrb[0].mxu0
        %3747 = vmatprep.mubr.bf16.mxu0 0
        %3748 = vmatmul.mubr.bf16.gmra.mrb[0].mxu0 %v3545
        %v3749 = vpop.f32.mrb[0].mxu0
        %v3750 = vadd.f32 %v3490, %v3749
        %v3751 = vpop.f32.mrb[0].mxu0
        %v3752 = vpop.f32.mrb[0].mxu0
        %v3753 = vadd.f32 %v3490, %v3752
        %v3754 = vpop.f32.mrb[0].mxu0
        %3755 = vmatprep.mubr.bf16.mxu0 0
        %3756 = vmatmul.mubr.bf16.gmra.mrb[0].mxu0 %v3548
        %v3757 = vpop.f32.mrb[0].mxu0
        %v3758 = vadd.f32 %v3490, %v3757
        %v3759 = vpop.f32.mrb[0].mxu0
        %v3760 = vpop.f32.mrb[0].mxu0
        %v3761 = vadd.f32 %v3490, %v3760
        %v3762 = vpop.f32.mrb[0].mxu0
        %3763 = vmatprep.mubr.bf16.mxu0 0
        %3764 = vmatmul.mubr.bf16.gmra.mrb[0].mxu0 %v3551
        %v3765 = vpop.f32.mrb[0].mxu0
        %v3766 = vadd.f32 %v3490, %v3765
        %v3767 = vpop.f32.mrb[0].mxu0
        %v3768 = vpop.f32.mrb[0].mxu0
        %v3769 = vadd.f32 %v3490, %v3768
        %v3770 = vpop.f32.mrb[0].mxu0
        %3771 = vmatprep.mubr.bf16.mxu0 0
        %3772 = vmatmul.mubr.bf16.gmra.mrb[0].mxu0 %v3554
        %v3773 = vpop.f32.mrb[0].mxu0
        %v3774 = vadd.f32 %v3490, %v3773
        %v3775 = vpop.f32.mrb[0].mxu0
        %v3776 = vpop.f32.mrb[0].mxu0
        %v3777 = vadd.f32 %v3490, %v3776
        %v3778 = vpop.f32.mrb[0].mxu0
        %3779 = vmatprep.mubr.bf16.mxu0 0
        %3780 = vmatmul.mubr.bf16.gmra.mrb[0].mxu0 %v3557
        %v3781 = vpop.f32.mrb[0].mxu0
        %v3782 = vadd.f32 %v3490, %v3781
        %v3783 = vpop.f32.mrb[0].mxu0
        %v3784 = vpop.f32.mrb[0].mxu0
        %v3785 = vadd.f32 %v3490, %v3784
        %v3786 = vpop.f32.mrb[0].mxu0
        %3787 = vmatprep.mubr.bf16.mxu0 0
        %3788 = vmatmul.mubr.bf16.gmra.mrb[0].mxu0 %v3560
        %v3789 = vpop.f32.mrb[0].mxu0
        %v3790 = vadd.f32 %v3490, %v3789
        %v3791 = vpop.f32.mrb[0].mxu0
        %v3792 = vpop.f32.mrb[0].mxu0
        %v3793 = vadd.f32 %v3490, %v3792
        %v3794 = vpop.f32.mrb[0].mxu0
        %3795 = vmatprep.mubr.bf16.mxu0 0
        %3796 = vmatmul.mubr.bf16.gmra.mrb[0].mxu0 %v3563
        %v3797 = vpop.f32.mrb[0].mxu0
        %v3798 = vadd.f32 %v3490, %v3797
        %v3799 = vpop.f32.mrb[0].mxu0
        %v3800 = vpop.f32.mrb[0].mxu0
        %v3801 = vadd.f32 %v3490, %v3800
        %v3802 = vpop.f32.mrb[0].mxu0
        %3803 = vmatprep.mubr.bf16.mxu0 0
        %3804 = vmatmul.mubr.bf16.gmra.mrb[0].mxu0 %v3566
        %v3805 = vpop.f32.mrb[0].mxu0
        %v3806 = vadd.f32 %v3490, %v3805
        %v3807 = vpop.f32.mrb[0].mxu0
        %v3808 = vpop.f32.mrb[0].mxu0
        %v3809 = vadd.f32 %v3490, %v3808
        %v3810 = vpop.f32.mrb[0].mxu0
        %3811 = vmatprep.mubr.bf16.mxu0 0
        %3812 = vmatmul.mubr.bf16.gmra.mrb[0].mxu0 %v3569
        %v3813 = vpop.f32.mrb[0].mxu0
        %v3814 = vadd.f32 %v3490, %v3813
        %v3815 = vpop.f32.mrb[0].mxu0
        %v3816 = vpop.f32.mrb[0].mxu0
        %v3817 = vadd.f32 %v3490, %v3816
        %v3818 = vpop.f32.mrb[0].mxu0
        %3819 = vmatprep.mubr.bf16.mxu0 0
        %3820 = vmatmul.mubr.bf16.gmra.mrb[0].mxu0 %v3572
        %v3821 = vpop.f32.mrb[0].mxu0
        %v3822 = vadd.f32 %v3490, %v3821
        %v3823 = vpop.f32.mrb[0].mxu0
        %v3824 = vpop.f32.mrb[0].mxu0
        %v3825 = vadd.f32 %v3490, %v3824
        %v3826 = vpop.f32.mrb[0].mxu0
        %3827 = vmatprep.mubr.bf16.mxu0 0
        %3828 = vmatmul.mubr.bf16.gmra.mrb[0].mxu0 %v3575
        %v3829 = vpop.f32.mrb[0].mxu0
        %v3830 = vadd.f32 %v3490, %v3829
        %v3831 = vpop.f32.mrb[0].mxu0
        %v3832 = vpop.f32.mrb[0].mxu0
        %v3833 = vadd.f32 %v3490, %v3832
        %v3834 = vpop.f32.mrb[0].mxu0
        %3835 = vmatprep.mubr.bf16.mxu0 0
        %3836 = vmatmul.mubr.bf16.gmra.mrb[0].mxu0 %v3578
        %v3837 = vpop.f32.mrb[0].mxu0
        %v3838 = vadd.f32 %v3490, %v3837
        %v3839 = vpop.f32.mrb[0].mxu0
        %v3840 = vpop.f32.mrb[0].mxu0
        %v3841 = vadd.f32 %v3490, %v3840
        %v3842 = vpop.f32.mrb[0].mxu0
        %3843 = vmatprep.mubr.bf16.mxu0 0
        %3844 = vmatmul.mubr.bf16.gmra.mrb[0].mxu0 %v3581
        %v3845 = vpop.f32.mrb[0].mxu0
        %v3846 = vadd.f32 %v3490, %v3845
        %v3847 = vpop.f32.mrb[0].mxu0
        %v3848 = vpop.f32.mrb[0].mxu0
        %v3849 = vadd.f32 %v3490, %v3848
        %v3850 = vpop.f32.mrb[0].mxu0
        %3851 = vmatprep.mubr.bf16.mxu0 0
        %3852 = vmatmul.mubr.bf16.gmra.mrb[0].mxu0 %v3584
        %v3853 = vpop.f32.mrb[0].mxu0
        %v3854 = vadd.f32 %v3490, %v3853
        %v3855 = vpop.f32.mrb[0].mxu0
        %v3856 = vpop.f32.mrb[0].mxu0
        %v3857 = vadd.f32 %v3490, %v3856
        %v3858 = vpop.f32.mrb[0].mxu0
        %3859 = vmatprep.mubr.bf16.mxu0 0
        %3860 = vmatmul.mubr.bf16.gmra.mrb[0].mxu0 %v3587
        %v3861 = vpop.f32.mrb[0].mxu0
        %v3862 = vadd.f32 %v3490, %v3861
        %v3863 = vpop.f32.mrb[0].mxu0
        %v3864 = vpop.f32.mrb[0].mxu0
        %v3865 = vadd.f32 %v3490, %v3864
        %v3866 = vpop.f32.mrb[0].mxu0
        %3867 = vmatprep.mubr.bf16.mxu0 0
        %3868 = vmatmul.mubr.bf16.gmra.mrb[0].mxu0 %v3590
        %v3869 = vpop.f32.mrb[0].mxu0
        %v3870 = vadd.f32 %v3490, %v3869
        %v3871 = vpop.f32.mrb[0].mxu0
        %v3872 = vpop.f32.mrb[0].mxu0
        %v3873 = vadd.f32 %v3490, %v3872
        %v3874 = vpop.f32.mrb[0].mxu0
        %3875 = vmatprep.mubr.bf16.mxu0 0
        %3876 = vmatmul.mubr.bf16.gmra.mrb[0].mxu0 %v3593
        %v3877 = vpop.f32.mrb[0].mxu0
        %v3878 = vadd.f32 %v3490, %v3877
        %v3879 = vpop.f32.mrb[0].mxu0
        %v3880 = vpop.f32.mrb[0].mxu0
        %v3881 = vadd.f32 %v3490, %v3880
        %v3882 = vpop.f32.mrb[0].mxu0
        %3883 = vdwg.mxu0
        %v3884 = vmax.f32 %v3630, 0.0
        %v3885 = vmax.f32 %v3633, 0.0
        %v3886 = vmax.f32 %v3638, 0.0
        %v3887 = vmax.f32 %v3641, 0.0
        %v3888 = vmax.f32 %v3646, 0.0
        %v3889 = vmax.f32 %v3649, 0.0
        %v3890 = vmax.f32 %v3654, 0.0
        %v3891 = vmax.f32 %v3657, 0.0
        %v3892 = vmax.f32 %v3662, 0.0
        %v3893 = vmax.f32 %v3665, 0.0
        %v3894 = vmax.f32 %v3670, 0.0
        %v3895 = vmax.f32 %v3673, 0.0
        %v3896 = vmax.f32 %v3678, 0.0
        %v3897 = vmax.f32 %v3681, 0.0
        %v3898 = vmax.f32 %v3686, 0.0
        %v3899 = vmax.f32 %v3689, 0.0
        %v3900 = vmax.f32 %v3694, 0.0
        %v3901 = vmax.f32 %v3697, 0.0
        %v3902 = vmax.f32 %v3702, 0.0
        %v3903 = vmax.f32 %v3705, 0.0
        %v3904 = vmax.f32 %v3710, 0.0
        %v3905 = vmax.f32 %v3713, 0.0
        %v3906 = vmax.f32 %v3718, 0.0
        %v3907 = vmax.f32 %v3721, 0.0
        %v3908 = vmax.f32 %v3726, 0.0
        %v3909 = vmax.f32 %v3729, 0.0
        %v3910 = vmax.f32 %v3734, 0.0
        %v3911 = vmax.f32 %v3737, 0.0
        %v3912 = vmax.f32 %v3742, 0.0
        %v3913 = vmax.f32 %v3745, 0.0
        %v3914 = vmax.f32 %v3750, 0.0
        %v3915 = vmax.f32 %v3753, 0.0
        %v3916 = vmax.f32 %v3758, 0.0
        %v3917 = vmax.f32 %v3761, 0.0
        %v3918 = vmax.f32 %v3766, 0.0
        %v3919 = vmax.f32 %v3769, 0.0
        %v3920 = vmax.f32 %v3774, 0.0
        %v3921 = vmax.f32 %v3777, 0.0
        %v3922 = vmax.f32 %v3782, 0.0
        %v3923 = vmax.f32 %v3785, 0.0
        %v3924 = vmax.f32 %v3790, 0.0
        %v3925 = vmax.f32 %v3793, 0.0
        %v3926 = vmax.f32 %v3798, 0.0
        %v3927 = vmax.f32 %v3801, 0.0
        %v3928 = vmax.f32 %v3806, 0.0
        %v3929 = vmax.f32 %v3809, 0.0
        %v3930 = vmax.f32 %v3814, 0.0
        %v3931 = vmax.f32 %v3817, 0.0
        %v3932 = vmax.f32 %v3822, 0.0
        %v3933 = vmax.f32 %v3825, 0.0
        %v3934 = vmax.f32 %v3830, 0.0
        %v3935 = vmax.f32 %v3833, 0.0
        %v3936 = vmax.f32 %v3838, 0.0
        %v3937 = vmax.f32 %v3841, 0.0
        %v3938 = vmax.f32 %v3846, 0.0
        %v3939 = vmax.f32 %v3849, 0.0
        %v3940 = vmax.f32 %v3854, 0.0
        %v3941 = vmax.f32 %v3857, 0.0
        %v3942 = vmax.f32 %v3862, 0.0
        %v3943 = vmax.f32 %v3865, 0.0
        %v3944 = vmax.f32 %v3870, 0.0
        %v3945 = vmax.f32 %v3873, 0.0
        %v3946 = vmax.f32 %v3878, 0.0
        %v3947 = vmax.f32 %v3881, 0.0
        %v3948 = vpack.c.bf16 %v3885, %v3884
        %v3949 = vpack.c.bf16 %v3887, %v3886
        %v3950 = vpack.c.bf16 %v3889, %v3888
        %v3951 = vpack.c.bf16 %v3891, %v3890
        %v3952 = vpack.c.bf16 %v3893, %v3892
        %v3953 = vpack.c.bf16 %v3895, %v3894
        %v3954 = vpack.c.bf16 %v3897, %v3896
        %v3955 = vpack.c.bf16 %v3899, %v3898
        %v3956 = vpack.c.bf16 %v3901, %v3900
        %v3957 = vpack.c.bf16 %v3903, %v3902
        %v3958 = vpack.c.bf16 %v3905, %v3904
        %v3959 = vpack.c.bf16 %v3907, %v3906
        %v3960 = vpack.c.bf16 %v3909, %v3908
        %v3961 = vpack.c.bf16 %v3911, %v3910
        %v3962 = vpack.c.bf16 %v3913, %v3912
        %v3963 = vpack.c.bf16 %v3915, %v3914
        %v3964 = vpack.c.bf16 %v3917, %v3916
        %v3965 = vpack.c.bf16 %v3919, %v3918
        %v3966 = vpack.c.bf16 %v3921, %v3920
        %v3967 = vpack.c.bf16 %v3923, %v3922
        %v3968 = vpack.c.bf16 %v3925, %v3924
        %v3969 = vpack.c.bf16 %v3927, %v3926
        %v3970 = vpack.c.bf16 %v3929, %v3928
        %v3971 = vpack.c.bf16 %v3931, %v3930
        %v3972 = vpack.c.bf16 %v3933, %v3932
        %v3973 = vpack.c.bf16 %v3935, %v3934
        %v3974 = vpack.c.bf16 %v3937, %v3936
        %v3975 = vpack.c.bf16 %v3939, %v3938
        %v3976 = vpack.c.bf16 %v3941, %v3940
        %v3977 = vpack.c.bf16 %v3943, %v3942
        %v3978 = vpack.c.bf16 %v3945, %v3944
        %v3979 = vpack.c.bf16 %v3947, %v3946
        %v4012 = vunpack.c.l.b16 %v3948
        %v4013 = vunpack.c.h.b16 %v3948
        %v4014 = vunpack.c.l.b16 %v3949
        %v4015 = vunpack.c.h.b16 %v3949
        %v4016 = vunpack.c.l.b16 %v3950
        %v4017 = vunpack.c.h.b16 %v3950
        %v4018 = vunpack.c.l.b16 %v3951
        %v4019 = vunpack.c.h.b16 %v3951
        %v4020 = vunpack.c.l.b16 %v3952
        %v4021 = vunpack.c.h.b16 %v3952
        %v4022 = vunpack.c.l.b16 %v3953
        %v4023 = vunpack.c.h.b16 %v3953
        %v4024 = vunpack.c.l.b16 %v3954
        %v4025 = vunpack.c.h.b16 %v3954
        %v4026 = vunpack.c.l.b16 %v3955
        %v4027 = vunpack.c.h.b16 %v3955
        %v4028 = vunpack.c.l.b16 %v3956
        %v4029 = vunpack.c.h.b16 %v3956
        %v4030 = vunpack.c.l.b16 %v3957
        %v4031 = vunpack.c.h.b16 %v3957
        %v4032 = vunpack.c.l.b16 %v3958
        %v4033 = vunpack.c.h.b16 %v3958
        %v4034 = vunpack.c.l.b16 %v3959
        %v4035 = vunpack.c.h.b16 %v3959
        %v4036 = vunpack.c.l.b16 %v3960
        %v4037 = vunpack.c.h.b16 %v3960
        %v4038 = vunpack.c.l.b16 %v3961
        %v4039 = vunpack.c.h.b16 %v3961
        %v4040 = vunpack.c.l.b16 %v3962
        %v4041 = vunpack.c.h.b16 %v3962
        %v4042 = vunpack.c.l.b16 %v3963
        %v4043 = vunpack.c.h.b16 %v3963
        %v4044 = vunpack.c.l.b16 %v3964
        %v4045 = vunpack.c.h.b16 %v3964
        %v4046 = vunpack.c.l.b16 %v3965
        %v4047 = vunpack.c.h.b16 %v3965
        %v4048 = vunpack.c.l.b16 %v3966
        %v4049 = vunpack.c.h.b16 %v3966
        %v4050 = vunpack.c.l.b16 %v3967
        %v4051 = vunpack.c.h.b16 %v3967
        %v4052 = vunpack.c.l.b16 %v3968
        %v4053 = vunpack.c.h.b16 %v3968
        %v4054 = vunpack.c.l.b16 %v3969
        %v4055 = vunpack.c.h.b16 %v3969
        %v4056 = vunpack.c.l.b16 %v3970
        %v4057 = vunpack.c.h.b16 %v3970
        %v4058 = vunpack.c.l.b16 %v3971
        %v4059 = vunpack.c.h.b16 %v3971
        %v4060 = vunpack.c.l.b16 %v3972
        %v4061 = vunpack.c.h.b16 %v3972
        %v4062 = vunpack.c.l.b16 %v3973
        %v4063 = vunpack.c.h.b16 %v3973
        %v4064 = vunpack.c.l.b16 %v3974
        %v4065 = vunpack.c.h.b16 %v3974
        %v4066 = vunpack.c.l.b16 %v3975
        %v4067 = vunpack.c.h.b16 %v3975
        %v4068 = vunpack.c.l.b16 %v3976
        %v4069 = vunpack.c.h.b16 %v3976
        %v4070 = vunpack.c.l.b16 %v3977
        %v4071 = vunpack.c.h.b16 %v3977
        %v4072 = vunpack.c.l.b16 %v3978
        %v4073 = vunpack.c.h.b16 %v3978
        %v4074 = vunpack.c.l.b16 %v3979
        %v4075 = vunpack.c.h.b16 %v3979
        %v4076 = vpack.c.b16 %v4012, %v4012
        %v4077 = vpack.c.b16 %v4013, %v4013
        %v4078 = vpack.c.b16 %v4014, %v4014
        %v4079 = vpack.c.b16 %v4015, %v4015
        %v4080 = vpack.c.b16 %v4016, %v4016
        %v4081 = vpack.c.b16 %v4017, %v4017
        %v4082 = vpack.c.b16 %v4018, %v4018
        %v4083 = vpack.c.b16 %v4019, %v4019
        %v4084 = vpack.c.b16 %v4020, %v4020
        %v4085 = vpack.c.b16 %v4021, %v4021
        %v4086 = vpack.c.b16 %v4022, %v4022
        %v4087 = vpack.c.b16 %v4023, %v4023
        %v4088 = vpack.c.b16 %v4024, %v4024
        %v4089 = vpack.c.b16 %v4025, %v4025
        %v4090 = vpack.c.b16 %v4026, %v4026
        %v4091 = vpack.c.b16 %v4027, %v4027
        %v4092 = vpack.c.b16 %v4028, %v4028
        %v4093 = vpack.c.b16 %v4029, %v4029
        %v4094 = vpack.c.b16 %v4030, %v4030
        %v4095 = vpack.c.b16 %v4031, %v4031
        %v4096 = vpack.c.b16 %v4032, %v4032
        %v4097 = vpack.c.b16 %v4033, %v4033
        %v4098 = vpack.c.b16 %v4034, %v4034
        %v4099 = vpack.c.b16 %v4035, %v4035
        %v4100 = vpack.c.b16 %v4036, %v4036
        %v4101 = vpack.c.b16 %v4037, %v4037
        %v4102 = vpack.c.b16 %v4038, %v4038
        %v4103 = vpack.c.b16 %v4039, %v4039
        %v4104 = vpack.c.b16 %v4040, %v4040
        %v4105 = vpack.c.b16 %v4041, %v4041
        %v4106 = vpack.c.b16 %v4042, %v4042
        %v4107 = vpack.c.b16 %v4043, %v4043
        %v4108 = vpack.c.b16 %v4044, %v4044
        %v4109 = vpack.c.b16 %v4045, %v4045
        %v4110 = vpack.c.b16 %v4046, %v4046
        %v4111 = vpack.c.b16 %v4047, %v4047
        %v4112 = vpack.c.b16 %v4048, %v4048
        %v4113 = vpack.c.b16 %v4049, %v4049
        %v4114 = vpack.c.b16 %v4050, %v4050
        %v4115 = vpack.c.b16 %v4051, %v4051
        %v4116 = vpack.c.b16 %v4052, %v4052
        %v4117 = vpack.c.b16 %v4053, %v4053
        %v4118 = vpack.c.b16 %v4054, %v4054
        %v4119 = vpack.c.b16 %v4055, %v4055
        %v4120 = vpack.c.b16 %v4056, %v4056
        %v4121 = vpack.c.b16 %v4057, %v4057
        %v4122 = vpack.c.b16 %v4058, %v4058
        %v4123 = vpack.c.b16 %v4059, %v4059
        %v4124 = vpack.c.b16 %v4060, %v4060
        %v4125 = vpack.c.b16 %v4061, %v4061
        %v4126 = vpack.c.b16 %v4062, %v4062
        %v4127 = vpack.c.b16 %v4063, %v4063
        %v4128 = vpack.c.b16 %v4064, %v4064
        %v4129 = vpack.c.b16 %v4065, %v4065
        %v4130 = vpack.c.b16 %v4066, %v4066
        %v4131 = vpack.c.b16 %v4067, %v4067
        %v4132 = vpack.c.b16 %v4068, %v4068
        %v4133 = vpack.c.b16 %v4069, %v4069
        %v4134 = vpack.c.b16 %v4070, %v4070
        %v4135 = vpack.c.b16 %v4071, %v4071
        %v4136 = vpack.c.b16 %v4072, %v4072
        %v4137 = vpack.c.b16 %v4073, %v4073
        %v4138 = vpack.c.b16 %v4074, %v4074
        %v4139 = vpack.c.b16 %v4075, %v4075
        %4204 = vst [vmem:[%s243] sm:$0xf] %v4076
        %4205 = vst [vmem:[%s243 + $0x4] sm:$0xf] %v4077
        %4206 = vst [vmem:[%s243 + $0x8] sm:$0xf] %v4078
        %4207 = vst [vmem:[%s243 + $0xc] sm:$0xf] %v4079
        %4208 = vst [vmem:[%s243 + $0x10] sm:$0xf] %v4080
        %4209 = vst [vmem:[%s243 + $0x14] sm:$0xf] %v4081
        %4210 = vst [vmem:[%s243 + $0x18] sm:$0xf] %v4082
        %4211 = vst [vmem:[%s243 + $0x1c] sm:$0xf] %v4083
        %4212 = vst [vmem:[%s243 + $0x20] sm:$0xf] %v4084
        %4213 = vst [vmem:[%s243 + $0x24] sm:$0xf] %v4085
        %4214 = vst [vmem:[%s243 + $0x28] sm:$0xf] %v4086
        %4215 = vst [vmem:[%s243 + $0x2c] sm:$0xf] %v4087
        %4216 = vst [vmem:[%s243 + $0x30] sm:$0xf] %v4088
        %4217 = vst [vmem:[%s243 + $0x34] sm:$0xf] %v4089
        %4218 = vst [vmem:[%s243 + $0x38] sm:$0xf] %v4090
        %4219 = vst [vmem:[%s243 + $0x3c] sm:$0xf] %v4091
        %4220 = vst [vmem:[%s243 + $0x40] sm:$0xf] %v4092
        %4221 = vst [vmem:[%s243 + $0x44] sm:$0xf] %v4093
        %4222 = vst [vmem:[%s243 + $0x48] sm:$0xf] %v4094
        %4223 = vst [vmem:[%s243 + $0x4c] sm:$0xf] %v4095
        %4224 = vst [vmem:[%s243 + $0x50] sm:$0xf] %v4096
        %4225 = vst [vmem:[%s243 + $0x54] sm:$0xf] %v4097
        %4226 = vst [vmem:[%s243 + $0x58] sm:$0xf] %v4098
        %4227 = vst [vmem:[%s243 + $0x5c] sm:$0xf] %v4099
        %4228 = vst [vmem:[%s243 + $0x60] sm:$0xf] %v4100
        %4229 = vst [vmem:[%s243 + $0x64] sm:$0xf] %v4101
        %4230 = vst [vmem:[%s243 + $0x68] sm:$0xf] %v4102
        %4231 = vst [vmem:[%s243 + $0x6c] sm:$0xf] %v4103
        %4232 = vst [vmem:[%s243 + $0x70] sm:$0xf] %v4104
        %4233 = vst [vmem:[%s243 + $0x74] sm:$0xf] %v4105
        %4234 = vst [vmem:[%s243 + $0x78] sm:$0xf] %v4106
        %4235 = vst [vmem:[%s243 + $0x7c] sm:$0xf] %v4107
        %4236 = vst [vmem:[%s243 + $0x80] sm:$0xf] %v4108
        %4237 = vst [vmem:[%s243 + $0x84] sm:$0xf] %v4109
        %4238 = vst [vmem:[%s243 + $0x88] sm:$0xf] %v4110
        %4239 = vst [vmem:[%s243 + $0x8c] sm:$0xf] %v4111
        %4240 = vst [vmem:[%s243 + $0x90] sm:$0xf] %v4112
        %4241 = vst [vmem:[%s243 + $0x94] sm:$0xf] %v4113
        %4242 = vst [vmem:[%s243 + $0x98] sm:$0xf] %v4114
        %4243 = vst [vmem:[%s243 + $0x9c] sm:$0xf] %v4115
        %4244 = vst [vmem:[%s243 + $0xa0] sm:$0xf] %v4116
        %4245 = vst [vmem:[%s243 + $0xa4] sm:$0xf] %v4117
        %4246 = vst [vmem:[%s243 + $0xa8] sm:$0xf] %v4118
        %4247 = vst [vmem:[%s243 + $0xac] sm:$0xf] %v4119
        %4248 = vst [vmem:[%s243 + $0xb0] sm:$0xf] %v4120
        %4249 = vst [vmem:[%s243 + $0xb4] sm:$0xf] %v4121
        %4250 = vst [vmem:[%s243 + $0xb8] sm:$0xf] %v4122
        %4251 = vst [vmem:[%s243 + $0xbc] sm:$0xf] %v4123
        %4252 = vst [vmem:[%s243 + $0xc0] sm:$0xf] %v4124
        %4253 = vst [vmem:[%s243 + $0xc4] sm:$0xf] %v4125
        %4254 = vst [vmem:[%s243 + $0xc8] sm:$0xf] %v4126
        %4255 = vst [vmem:[%s243 + $0xcc] sm:$0xf] %v4127
        %4256 = vst [vmem:[%s243 + $0xd0] sm:$0xf] %v4128
        %4257 = vst [vmem:[%s243 + $0xd4] sm:$0xf] %v4129
        %4258 = vst [vmem:[%s243 + $0xd8] sm:$0xf] %v4130
        %4259 = vst [vmem:[%s243 + $0xdc] sm:$0xf] %v4131
        %4260 = vst [vmem:[%s243 + $0xe0] sm:$0xf] %v4132
        %4261 = vst [vmem:[%s243 + $0xe4] sm:$0xf] %v4133
        %4262 = vst [vmem:[%s243 + $0xe8] sm:$0xf] %v4134
        %4263 = vst [vmem:[%s243 + $0xec] sm:$0xf] %v4135
        %4264 = vst [vmem:[%s243 + $0xf0] sm:$0xf] %v4136
        %4265 = vst [vmem:[%s243 + $0xf4] sm:$0xf] %v4137
        %4266 = vst [vmem:[%s243 + $0xf8] sm:$0xf] %v4138
        %4267 = vst [vmem:[%s243 + $0xfc] sm:$0xf] %v4139
        %s4268 = sand.u32 %s119, 1
        %s4269 = scalar_lea.sflag [#allocation4], %s4268
        %s4270 = sand.u32 %s119, 1
        %s4271 = smul.addr %s4270, 256
        %s4272 = scalar_lea.vmem [#allocation8], %s4271
        // Predicated region
        $region49: #{tpu_custom_call.1} parent=35 // pred_check
          %p4273 = pneg %p129
        $region50: #{tpu_custom_call.1} parent=35 // pred_check_branch
          %4275 = sbr.rel (%p4273) target = $region52
        $region51: #{tpu_custom_call.1} parent=35 // pred_region
          %s4276 = smul.u32 64, %s22
          %s4278 = ssub.s32 4096, 4096
          %4279 = vsyncadd %s4269, %s4278
          %s4280 = smul.addr %s4276, 64
          %s4281 = scalar_lea.hbm %s4, %s4280
          %s4282 = sshll.u32 %s4272, 4
          %s4283 = int_to_ptr.vmem [resolvable:$true] %s4282
          %4288 = dma.vmem_to_hbm [thread:$0]  %s4283, 4096, %s4281, %s4269, 64, 64, 4
        $region52: #{tpu_custom_call.1} parent=35 // pred_fallthru
          _
      $region36: #{tpu_custom_call.1} parent=5 // pred_fallthru
        _
      %p4289 = scmp.le.s32.totalorder 2, %s17
      // Predicated region
      $region53: #{tpu_custom_call.1} parent=5 // pred_check
        %p4290 = pneg %p4289
      $region54: #{tpu_custom_call.1} parent=5 // pred_check_branch
        %4292 = sbr.rel (%p4290) target = $region56
      $region55: #{tpu_custom_call.1} parent=5 // pred_region
        %s4293 = ssub.s32 %s17, 2
        // Predicated region
        $region57: #{tpu_custom_call.1} parent=55 // pred_check
          %p4294 = pneg %p135
        $region58: #{tpu_custom_call.1} parent=55 // pred_check_branch
          %4296 = sbr.rel (%p4294) target = $region60
        $region59: #{tpu_custom_call.1} parent=55 // pred_region
          %s4297 = sand.u32 %s120, 1
          %s4298 = scalar_lea.sflag [#allocation4], %s4297
          %s4299 = sand.u32 %s120, 1
          %s4300 = smul.addr %s4299, 256
          %s4301 = scalar_lea.vmem [#allocation8], %s4300
          %4302 = dma.done %s4298, 4096
        $region60: #{tpu_custom_call.1} parent=55 // pred_fallthru
          _
      $region56: #{tpu_custom_call.1} parent=5 // pred_fallthru
        _
    $region6: #{tpu_custom_call.1} parent=1 // loop_footer
      %s21 = sadd.s32 1, %s17
    $region7: #{tpu_custom_call.1} parent=1 // loop_footer_branch
      %16 = sbr.rel target = $region3
    $region8: #{tpu_custom_call.1} parent=1 // loop_exit
      _
    %4303 = vsyncpa [#allocation3], 1
    %s4304 = scalar_lea.sflag [#allocation3], 1
    %4305 = vsyncpa %s4304, 1
    %4306 = vsyncpa [#allocation6], 1
    %4307 = vsyncpa [#allocation4], 1
    %s4308 = scalar_lea.sflag [#allocation4], 1
    %4309 = vsyncpa %s4308, 1

</llo_original>
